<compile_context>
chip_gen: v7x
topology: tpu7x:2x2x1
jax: 0.10.0
libtpu: 0.0.40
codegen_flags: <defaults>
</compile_context>

<pallas_src>
import functools

import jax
import jax.numpy as jnp
from jax import lax
from jax.experimental import pallas as pl
from jax.experimental.pallas import tpu as pltpu

KSIZE = 7
PAD = (KSIZE - 1) // 2


def _spatial_gate_kernel(x_ref, w_ref, o_ref, pad_ref, scale_ref, *, H, W):
    # x_ref:     (C, H*W)      one image, lane-dense flat spatial layout (native dtype)
    # w_ref:     (98,)         f32 conv weights in SMEM (scalar reads)
    # o_ref:     (C, H*W)      gated output
    # pad_ref:   (2, H+6, W+6) f32 VMEM scratch: zero-padded pooled planes
    # scale_ref: (1, H*W)      f32 VMEM scratch: flattened sigmoid gate
    C = x_ref.shape[0]
    Hp = H + 2 * PAD
    Wp = W + 2 * PAD

    # --- ChannelPool (lane-dense).  max is exact in the native dtype; the mean
    # --- accumulates in f32.  Nothing C*H*W-sized stays live past this point.
    ch_max = jnp.max(x_ref[...], axis=0, keepdims=True).astype(jnp.float32)      # (1, HW)
    ch_mean = jnp.sum(x_ref[...], axis=0, keepdims=True,
                      dtype=jnp.float32) * (1.0 / C)                             # (1, HW)

    # --- Refresh only the 3-wide zero border of the padded planes every step (the
    # --- interior is fully overwritten below).  Not gated on program_id==0 because a
    # --- "parallel" batch axis may start at a non-zero id on the second TensorCore.
    pad_ref[:, 0:PAD, 0:Wp] = jnp.zeros((2, PAD, Wp), jnp.float32)
    pad_ref[:, PAD + H:Hp, 0:Wp] = jnp.zeros((2, PAD, Wp), jnp.float32)
    pad_ref[:, 0:Hp, 0:PAD] = jnp.zeros((2, Hp, PAD), jnp.float32)
    pad_ref[:, 0:Hp, PAD + W:Wp] = jnp.zeros((2, Hp, PAD), jnp.float32)

    # --- Scatter the pooled rows into the 2-D padded planes (tiny: 2*H*W floats).
    for y in range(H):
        row = slice(y * W, (y + 1) * W)
        pad_ref[0:1, PAD + y, PAD:PAD + W] = ch_max[:, row]
        pad_ref[1:2, PAD + y, PAD:PAD + W] = ch_mean[:, row]

    # --- 7x7 "same" conv (2 -> 1, no bias) on the VPU: 14 row-block loads, SMEM
    # --- scalar taps, kx shifts as value lane-shifts, 4 partial accumulators.
    accs = [jnp.zeros((H, W), jnp.float32) for _ in range(4)]
    tap_idx = 0
    for c in range(2):
        for ky in range(KSIZE):
            rows = pad_ref[c, ky:ky + H, 0:Wp]                 # (H, W+6) f32, one load
            base = (c * KSIZE + ky) * KSIZE
            for kx in range(KSIZE):
                tap = w_ref[base + kx]                          # f32 scalar from SMEM
                win = rows[:, kx:kx + W]                        # (H, W) shifted window
                accs[tap_idx % 4] = accs[tap_idx % 4] + tap * win
                tap_idx += 1
    conv = (accs[0] + accs[1]) + (accs[2] + accs[3])            # (H, W) f32
    gate = jax.nn.sigmoid(conv)

    # --- Flatten the gate back into the lane-dense layout (tiny: H*W floats).
    for y in range(H):
        scale_ref[0:1, y * W:(y + 1) * W] = gate[y:y + 1, :]

    # --- Gating: re-read the resident VMEM input block, write lane-dense output.
    o_ref[...] = (x_ref[...] * scale_ref[...]).astype(o_ref.dtype)


def spatial_gate(x, conv_weight):
    """x: (B, C, H, W). conv_weight: (1, 2, 7, 7) = Conv2d(2, 1, 7, bias=False).weight."""
    B, C, H, W = x.shape
    HW = H * W
    Hp, Wp = H + 2 * PAD, W + 2 * PAD

    x_flat = x.reshape(B, C, HW)                               # zero-copy HBM relabel
    w_flat = conv_weight.reshape(2 * KSIZE * KSIZE).astype(jnp.float32)
    itemsize = jnp.dtype(x.dtype).itemsize

    kernel = functools.partial(_spatial_gate_kernel, H=H, W=W)

    # TODO(synk): for production CNN shapes (large C*H*W per image) add an H-tiled grid
    # axis with a 3-row halo (or a scale-then-gate two-kernel split) so each block stays
    # well under v7x's 64 MiB VMEM and both v7x TensorCores stay busy at small B.
    out_flat = pl.pallas_call(
        kernel,
        out_shape=jax.ShapeDtypeStruct((B, C, HW), x.dtype),
        grid_spec=pltpu.PrefetchScalarGridSpec(
            num_scalar_prefetch=0,
            grid=(B,),
            in_specs=[
                # One full image per grid step (batch dim squeezed out of the kernel ref).
                pl.BlockSpec((None, C, HW), lambda b: (b, 0, 0)),
                # 98 conv weights as SMEM scalars, resident across the whole grid.
                pl.BlockSpec(memory_space=pltpu.MemorySpace.SMEM),
            ],
            out_specs=pl.BlockSpec((None, C, HW), lambda b: (b, 0, 0)),
            scratch_shapes=[
                pltpu.VMEM((2, Hp, Wp), jnp.float32),   # zero-padded pooled planes
                pltpu.VMEM((1, HW), jnp.float32),       # flattened sigmoid gate
            ],
        ),
        compiler_params=pltpu.CompilerParams(
            dimension_semantics=("parallel",),
            # Default scoped VMEM is only 16/32 MiB on v5e/v6e; 64 MiB keeps large
            # resident image blocks double-buffered and is also v7x-safe.
            vmem_limit_bytes=64 * 1024 * 1024,
        ),
        cost_estimate=pl.CostEstimate(
            flops=B * (3 * C + 2 * 2 * KSIZE * KSIZE) * HW,
            transcendentals=B * HW,
            bytes_accessed=2 * B * C * HW * itemsize + 2 * KSIZE * KSIZE * 4,
        ),
    )(x_flat, w_flat)
    return out_flat.reshape(B, C, H, W)


if __name__ == "__main__":
    key = jax.random.PRNGKey(0)
    kx_key, kw_key = jax.random.split(key)

    B, C, H, W = 2, 4, 16, 16
    x = jax.random.normal(kx_key, (B, C, H, W), dtype=jnp.float32)
    # Deterministic conv weight, same role as Conv2d(2, 1, 7, bias=False).weight
    conv_weight = 0.1 * jax.random.normal(kw_key, (1, 2, KSIZE, KSIZE), dtype=jnp.float32)

    y = spatial_gate(x, conv_weight)
    y = jax.block_until_ready(y)

    # Pure-JAX reference: ChannelPool -> conv2d(2->1, k=7, pad=3, no bias) -> sigmoid -> gate
    pooled = jnp.concatenate(
        [jnp.max(x, axis=1, keepdims=True), jnp.mean(x, axis=1, keepdims=True)], axis=1)
    conv = lax.conv_general_dilated(
        pooled, conv_weight, window_strides=(1, 1),
        padding=((PAD, PAD), (PAD, PAD)),
        dimension_numbers=("NCHW", "OIHW", "NCHW"))
    ref = x * jax.nn.sigmoid(conv)

    err = jnp.max(jnp.abs(y - ref))
    assert jnp.allclose(y, ref, atol=1e-4, rtol=1e-4), f"mismatch vs reference, max abs err={err}"
    print("KERNEL_OK")
</pallas_src>

<mosaic_0001>
module attributes {stable_mosaic.version = 11 : i64} {
  func.func @_spatial_gate_kernel(%arg0: i32, %arg1: memref<1x4x256xf32, #tpu.memory_space<vmem>>, %arg2: memref<98xf32, #tpu.memory_space<smem>>, %arg3: memref<1x4x256xf32, #tpu.memory_space<vmem>>, %arg4: memref<2x22x22xf32, #tpu.memory_space<vmem>>, %arg5: memref<1x256xf32, #tpu.memory_space<vmem>>) attributes {dimension_semantics = [#tpu.dimension_semantics<parallel>], iteration_bounds = array<i64: 2>, scalar_prefetch = 0 : i64, scratch_operands = 2 : i64, tpu.core_type = #tpu.core_type<tc>, window_params = [{transform_indices = @transform_0, window_bounds = array<i64: 1, 4, 256>}, {transform_indices = @transform_1, window_bounds = array<i64: 98>}, {transform_indices = @transform_2, window_bounds = array<i64: 1, 4, 256>}]} {
    %c0 = arith.constant 0 : index
    %c0_0 = arith.constant 0 : index
    %c0_1 = arith.constant 0 : index
    %0 = vector.load %arg1[%c0, %c0_0, %c0_1] : memref<1x4x256xf32, #tpu.memory_space<vmem>>, vector<1x4x256xf32>
    %1 = vector.shape_cast %0 : vector<1x4x256xf32> to vector<4x256xf32>
    %cst = arith.constant dense<0xFF800000> : vector<256xf32>
    %2 = vector.multi_reduction <maximumf>, %1, %cst [0] : vector<4x256xf32> to vector<256xf32>
    %3 = vector.shape_cast %2 : vector<256xf32> to vector<1x256xf32>
    %c0_2 = arith.constant 0 : index
    %c0_3 = arith.constant 0 : index
    %c0_4 = arith.constant 0 : index
    %4 = vector.load %arg1[%c0_2, %c0_3, %c0_4] : memref<1x4x256xf32, #tpu.memory_space<vmem>>, vector<1x4x256xf32>
    %5 = vector.shape_cast %4 : vector<1x4x256xf32> to vector<4x256xf32>
    %cst_5 = arith.constant dense<0.000000e+00> : vector<256xf32>
    %6 = vector.multi_reduction <add>, %5, %cst_5 [0] : vector<4x256xf32> to vector<256xf32>
    %7 = vector.shape_cast %6 : vector<256xf32> to vector<1x256xf32>
    %cst_6 = arith.constant 2.500000e-01 : f32
    %8 = vector.broadcast %cst_6 : f32 to vector<1x256xf32>
    %9 = arith.mulf %7, %8 : vector<1x256xf32>
    %cst_7 = arith.constant 0.000000e+00 : f32
    %10 = vector.broadcast %cst_7 : f32 to vector<2x3x22xf32>
    %c0_8 = arith.constant 0 : index
    %c0_9 = arith.constant 0 : index
    %c0_10 = arith.constant 0 : index
    %11 = vector.load %arg4[%c0_8, %c0_9, %c0_10] : memref<2x22x22xf32, #tpu.memory_space<vmem>>, vector<2x3x22xf32>
    tpu.vector_store %arg4[%c0_8, %c0_9, %c0_10], %10 {strides = array<i32>} : memref<2x22x22xf32, #tpu.memory_space<vmem>>, vector<2x3x22xf32>,
    %cst_11 = arith.constant 0.000000e+00 : f32
    %12 = vector.broadcast %cst_11 : f32 to vector<2x3x22xf32>
    %c0_12 = arith.constant 0 : index
    %c19 = arith.constant 19 : index
    %c0_13 = arith.constant 0 : index
    %13 = vector.load %arg4[%c0_12, %c19, %c0_13] : memref<2x22x22xf32, #tpu.memory_space<vmem>>, vector<2x3x22xf32>
    tpu.vector_store %arg4[%c0_12, %c19, %c0_13], %12 {strides = array<i32>} : memref<2x22x22xf32, #tpu.memory_space<vmem>>, vector<2x3x22xf32>,
    %cst_14 = arith.constant 0.000000e+00 : f32
    %14 = vector.broadcast %cst_14 : f32 to vector<2x22x3xf32>
    %c0_15 = arith.constant 0 : index
    %c0_16 = arith.constant 0 : index
    %c0_17 = arith.constant 0 : index
    %15 = vector.load %arg4[%c0_15, %c0_16, %c0_17] : memref<2x22x22xf32, #tpu.memory_space<vmem>>, vector<2x22x3xf32>
    tpu.vector_store %arg4[%c0_15, %c0_16, %c0_17], %14 {strides = array<i32>} : memref<2x22x22xf32, #tpu.memory_space<vmem>>, vector<2x22x3xf32>,
    %cst_18 = arith.constant 0.000000e+00 : f32
    %16 = vector.broadcast %cst_18 : f32 to vector<2x22x3xf32>
    %c0_19 = arith.constant 0 : index
    %c0_20 = arith.constant 0 : index
    %c19_21 = arith.constant 19 : index
    %17 = vector.load %arg4[%c0_19, %c0_20, %c19_21] : memref<2x22x22xf32, #tpu.memory_space<vmem>>, vector<2x22x3xf32>
    tpu.vector_store %arg4[%c0_19, %c0_20, %c19_21], %16 {strides = array<i32>} : memref<2x22x22xf32, #tpu.memory_space<vmem>>, vector<2x22x3xf32>,
    %18 = vector.extract_strided_slice %3 {offsets = [0, 0], sizes = [1, 16], strides = [1, 1]} : vector<1x256xf32> to vector<1x16xf32>
    %c0_22 = arith.constant 0 : index
    %c3 = arith.constant 3 : index
    %c3_23 = arith.constant 3 : index
    %19 = vector.load %arg4[%c0_22, %c3, %c3_23] : memref<2x22x22xf32, #tpu.memory_space<vmem>>, vector<1x1x16xf32>
    %20 = vector.shape_cast %19 : vector<1x1x16xf32> to vector<1x16xf32>
    %21 = vector.shape_cast %18 : vector<1x16xf32> to vector<1x1x16xf32>
    tpu.vector_store %arg4[%c0_22, %c3, %c3_23], %21 {strides = array<i32>} : memref<2x22x22xf32, #tpu.memory_space<vmem>>, vector<1x1x16xf32>,
    %22 = vector.extract_strided_slice %9 {offsets = [0, 0], sizes = [1, 16], strides = [1, 1]} : vector<1x256xf32> to vector<1x16xf32>
    %c1 = arith.constant 1 : index
    %c3_24 = arith.constant 3 : index
    %c3_25 = arith.constant 3 : index
    %23 = vector.load %arg4[%c1, %c3_24, %c3_25] : memref<2x22x22xf32, #tpu.memory_space<vmem>>, vector<1x1x16xf32>
    %24 = vector.shape_cast %23 : vector<1x1x16xf32> to vector<1x16xf32>
    %25 = vector.shape_cast %22 : vector<1x16xf32> to vector<1x1x16xf32>
    tpu.vector_store %arg4[%c1, %c3_24, %c3_25], %25 {strides = array<i32>} : memref<2x22x22xf32, #tpu.memory_space<vmem>>, vector<1x1x16xf32>,
    %26 = vector.extract_strided_slice %3 {offsets = [0, 16], sizes = [1, 16], strides = [1, 1]} : vector<1x256xf32> to vector<1x16xf32>
    %c0_26 = arith.constant 0 : index
    %c4 = arith.constant 4 : index
    %c3_27 = arith.constant 3 : index
    %27 = vector.load %arg4[%c0_26, %c4, %c3_27] : memref<2x22x22xf32, #tpu.memory_space<vmem>>, vector<1x1x16xf32>
    %28 = vector.shape_cast %27 : vector<1x1x16xf32> to vector<1x16xf32>
    %29 = vector.shape_cast %26 : vector<1x16xf32> to vector<1x1x16xf32>
    tpu.vector_store %arg4[%c0_26, %c4, %c3_27], %29 {strides = array<i32>} : memref<2x22x22xf32, #tpu.memory_space<vmem>>, vector<1x1x16xf32>,
    %30 = vector.extract_strided_slice %9 {offsets = [0, 16], sizes = [1, 16], strides = [1, 1]} : vector<1x256xf32> to vector<1x16xf32>
    %c1_28 = arith.constant 1 : index
    %c4_29 = arith.constant 4 : index
    %c3_30 = arith.constant 3 : index
    %31 = vector.load %arg4[%c1_28, %c4_29, %c3_30] : memref<2x22x22xf32, #tpu.memory_space<vmem>>, vector<1x1x16xf32>
    %32 = vector.shape_cast %31 : vector<1x1x16xf32> to vector<1x16xf32>
    %33 = vector.shape_cast %30 : vector<1x16xf32> to vector<1x1x16xf32>
    tpu.vector_store %arg4[%c1_28, %c4_29, %c3_30], %33 {strides = array<i32>} : memref<2x22x22xf32, #tpu.memory_space<vmem>>, vector<1x1x16xf32>,
    %34 = vector.extract_strided_slice %3 {offsets = [0, 32], sizes = [1, 16], strides = [1, 1]} : vector<1x256xf32> to vector<1x16xf32>
    %c0_31 = arith.constant 0 : index
    %c5 = arith.constant 5 : index
    %c3_32 = arith.constant 3 : index
    %35 = vector.load %arg4[%c0_31, %c5, %c3_32] : memref<2x22x22xf32, #tpu.memory_space<vmem>>, vector<1x1x16xf32>
    %36 = vector.shape_cast %35 : vector<1x1x16xf32> to vector<1x16xf32>
    %37 = vector.shape_cast %34 : vector<1x16xf32> to vector<1x1x16xf32>
    tpu.vector_store %arg4[%c0_31, %c5, %c3_32], %37 {strides = array<i32>} : memref<2x22x22xf32, #tpu.memory_space<vmem>>, vector<1x1x16xf32>,
    %38 = vector.extract_strided_slice %9 {offsets = [0, 32], sizes = [1, 16], strides = [1, 1]} : vector<1x256xf32> to vector<1x16xf32>
    %c1_33 = arith.constant 1 : index
    %c5_34 = arith.constant 5 : index
    %c3_35 = arith.constant 3 : index
    %39 = vector.load %arg4[%c1_33, %c5_34, %c3_35] : memref<2x22x22xf32, #tpu.memory_space<vmem>>, vector<1x1x16xf32>
    %40 = vector.shape_cast %39 : vector<1x1x16xf32> to vector<1x16xf32>
    %41 = vector.shape_cast %38 : vector<1x16xf32> to vector<1x1x16xf32>
    tpu.vector_store %arg4[%c1_33, %c5_34, %c3_35], %41 {strides = array<i32>} : memref<2x22x22xf32, #tpu.memory_space<vmem>>, vector<1x1x16xf32>,
    %42 = vector.extract_strided_slice %3 {offsets = [0, 48], sizes = [1, 16], strides = [1, 1]} : vector<1x256xf32> to vector<1x16xf32>
    %c0_36 = arith.constant 0 : index
    %c6 = arith.constant 6 : index
    %c3_37 = arith.constant 3 : index
    %43 = vector.load %arg4[%c0_36, %c6, %c3_37] : memref<2x22x22xf32, #tpu.memory_space<vmem>>, vector<1x1x16xf32>
    %44 = vector.shape_cast %43 : vector<1x1x16xf32> to vector<1x16xf32>
    %45 = vector.shape_cast %42 : vector<1x16xf32> to vector<1x1x16xf32>
    tpu.vector_store %arg4[%c0_36, %c6, %c3_37], %45 {strides = array<i32>} : memref<2x22x22xf32, #tpu.memory_space<vmem>>, vector<1x1x16xf32>,
    %46 = vector.extract_strided_slice %9 {offsets = [0, 48], sizes = [1, 16], strides = [1, 1]} : vector<1x256xf32> to vector<1x16xf32>
    %c1_38 = arith.constant 1 : index
    %c6_39 = arith.constant 6 : index
    %c3_40 = arith.constant 3 : index
    %47 = vector.load %arg4[%c1_38, %c6_39, %c3_40] : memref<2x22x22xf32, #tpu.memory_space<vmem>>, vector<1x1x16xf32>
    %48 = vector.shape_cast %47 : vector<1x1x16xf32> to vector<1x16xf32>
    %49 = vector.shape_cast %46 : vector<1x16xf32> to vector<1x1x16xf32>
    tpu.vector_store %arg4[%c1_38, %c6_39, %c3_40], %49 {strides = array<i32>} : memref<2x22x22xf32, #tpu.memory_space<vmem>>, vector<1x1x16xf32>,
    %50 = vector.extract_strided_slice %3 {offsets = [0, 64], sizes = [1, 16], strides = [1, 1]} : vector<1x256xf32> to vector<1x16xf32>
    %c0_41 = arith.constant 0 : index
    %c7 = arith.constant 7 : index
    %c3_42 = arith.constant 3 : index
    %51 = vector.load %arg4[%c0_41, %c7, %c3_42] : memref<2x22x22xf32, #tpu.memory_space<vmem>>, vector<1x1x16xf32>
    %52 = vector.shape_cast %51 : vector<1x1x16xf32> to vector<1x16xf32>
    %53 = vector.shape_cast %50 : vector<1x16xf32> to vector<1x1x16xf32>
    tpu.vector_store %arg4[%c0_41, %c7, %c3_42], %53 {strides = array<i32>} : memref<2x22x22xf32, #tpu.memory_space<vmem>>, vector<1x1x16xf32>,
    %54 = vector.extract_strided_slice %9 {offsets = [0, 64], sizes = [1, 16], strides = [1, 1]} : vector<1x256xf32> to vector<1x16xf32>
    %c1_43 = arith.constant 1 : index
    %c7_44 = arith.constant 7 : index
    %c3_45 = arith.constant 3 : index
    %55 = vector.load %arg4[%c1_43, %c7_44, %c3_45] : memref<2x22x22xf32, #tpu.memory_space<vmem>>, vector<1x1x16xf32>
    %56 = vector.shape_cast %55 : vector<1x1x16xf32> to vector<1x16xf32>
    %57 = vector.shape_cast %54 : vector<1x16xf32> to vector<1x1x16xf32>
    tpu.vector_store %arg4[%c1_43, %c7_44, %c3_45], %57 {strides = array<i32>} : memref<2x22x22xf32, #tpu.memory_space<vmem>>, vector<1x1x16xf32>,
    %58 = vector.extract_strided_slice %3 {offsets = [0, 80], sizes = [1, 16], strides = [1, 1]} : vector<1x256xf32> to vector<1x16xf32>
    %c0_46 = arith.constant 0 : index
    %c8 = arith.constant 8 : index
    %c3_47 = arith.constant 3 : index
    %59 = vector.load %arg4[%c0_46, %c8, %c3_47] : memref<2x22x22xf32, #tpu.memory_space<vmem>>, vector<1x1x16xf32>
    %60 = vector.shape_cast %59 : vector<1x1x16xf32> to vector<1x16xf32>
    %61 = vector.shape_cast %58 : vector<1x16xf32> to vector<1x1x16xf32>
    tpu.vector_store %arg4[%c0_46, %c8, %c3_47], %61 {strides = array<i32>} : memref<2x22x22xf32, #tpu.memory_space<vmem>>, vector<1x1x16xf32>,
    %62 = vector.extract_strided_slice %9 {offsets = [0, 80], sizes = [1, 16], strides = [1, 1]} : vector<1x256xf32> to vector<1x16xf32>
    %c1_48 = arith.constant 1 : index
    %c8_49 = arith.constant 8 : index
    %c3_50 = arith.constant 3 : index
    %63 = vector.load %arg4[%c1_48, %c8_49, %c3_50] : memref<2x22x22xf32, #tpu.memory_space<vmem>>, vector<1x1x16xf32>
    %64 = vector.shape_cast %63 : vector<1x1x16xf32> to vector<1x16xf32>
    %65 = vector.shape_cast %62 : vector<1x16xf32> to vector<1x1x16xf32>
    tpu.vector_store %arg4[%c1_48, %c8_49, %c3_50], %65 {strides = array<i32>} : memref<2x22x22xf32, #tpu.memory_space<vmem>>, vector<1x1x16xf32>,
    %66 = vector.extract_strided_slice %3 {offsets = [0, 96], sizes = [1, 16], strides = [1, 1]} : vector<1x256xf32> to vector<1x16xf32>
    %c0_51 = arith.constant 0 : index
    %c9 = arith.constant 9 : index
    %c3_52 = arith.constant 3 : index
    %67 = vector.load %arg4[%c0_51, %c9, %c3_52] : memref<2x22x22xf32, #tpu.memory_space<vmem>>, vector<1x1x16xf32>
    %68 = vector.shape_cast %67 : vector<1x1x16xf32> to vector<1x16xf32>
    %69 = vector.shape_cast %66 : vector<1x16xf32> to vector<1x1x16xf32>
    tpu.vector_store %arg4[%c0_51, %c9, %c3_52], %69 {strides = array<i32>} : memref<2x22x22xf32, #tpu.memory_space<vmem>>, vector<1x1x16xf32>,
    %70 = vector.extract_strided_slice %9 {offsets = [0, 96], sizes = [1, 16], strides = [1, 1]} : vector<1x256xf32> to vector<1x16xf32>
    %c1_53 = arith.constant 1 : index
    %c9_54 = arith.constant 9 : index
    %c3_55 = arith.constant 3 : index
    %71 = vector.load %arg4[%c1_53, %c9_54, %c3_55] : memref<2x22x22xf32, #tpu.memory_space<vmem>>, vector<1x1x16xf32>
    %72 = vector.shape_cast %71 : vector<1x1x16xf32> to vector<1x16xf32>
    %73 = vector.shape_cast %70 : vector<1x16xf32> to vector<1x1x16xf32>
    tpu.vector_store %arg4[%c1_53, %c9_54, %c3_55], %73 {strides = array<i32>} : memref<2x22x22xf32, #tpu.memory_space<vmem>>, vector<1x1x16xf32>,
    %74 = vector.extract_strided_slice %3 {offsets = [0, 112], sizes = [1, 16], strides = [1, 1]} : vector<1x256xf32> to vector<1x16xf32>
    %c0_56 = arith.constant 0 : index
    %c10 = arith.constant 10 : index
    %c3_57 = arith.constant 3 : index
    %75 = vector.load %arg4[%c0_56, %c10, %c3_57] : memref<2x22x22xf32, #tpu.memory_space<vmem>>, vector<1x1x16xf32>
    %76 = vector.shape_cast %75 : vector<1x1x16xf32> to vector<1x16xf32>
    %77 = vector.shape_cast %74 : vector<1x16xf32> to vector<1x1x16xf32>
    tpu.vector_store %arg4[%c0_56, %c10, %c3_57], %77 {strides = array<i32>} : memref<2x22x22xf32, #tpu.memory_space<vmem>>, vector<1x1x16xf32>,
    %78 = vector.extract_strided_slice %9 {offsets = [0, 112], sizes = [1, 16], strides = [1, 1]} : vector<1x256xf32> to vector<1x16xf32>
    %c1_58 = arith.constant 1 : index
    %c10_59 = arith.constant 10 : index
    %c3_60 = arith.constant 3 : index
    %79 = vector.load %arg4[%c1_58, %c10_59, %c3_60] : memref<2x22x22xf32, #tpu.memory_space<vmem>>, vector<1x1x16xf32>
    %80 = vector.shape_cast %79 : vector<1x1x16xf32> to vector<1x16xf32>
    %81 = vector.shape_cast %78 : vector<1x16xf32> to vector<1x1x16xf32>
    tpu.vector_store %arg4[%c1_58, %c10_59, %c3_60], %81 {strides = array<i32>} : memref<2x22x22xf32, #tpu.memory_space<vmem>>, vector<1x1x16xf32>,
    %82 = vector.extract_strided_slice %3 {offsets = [0, 128], sizes = [1, 16], strides = [1, 1]} : vector<1x256xf32> to vector<1x16xf32>
    %c0_61 = arith.constant 0 : index
    %c11 = arith.constant 11 : index
    %c3_62 = arith.constant 3 : index
    %83 = vector.load %arg4[%c0_61, %c11, %c3_62] : memref<2x22x22xf32, #tpu.memory_space<vmem>>, vector<1x1x16xf32>
    %84 = vector.shape_cast %83 : vector<1x1x16xf32> to vector<1x16xf32>
    %85 = vector.shape_cast %82 : vector<1x16xf32> to vector<1x1x16xf32>
    tpu.vector_store %arg4[%c0_61, %c11, %c3_62], %85 {strides = array<i32>} : memref<2x22x22xf32, #tpu.memory_space<vmem>>, vector<1x1x16xf32>,
    %86 = vector.extract_strided_slice %9 {offsets = [0, 128], sizes = [1, 16], strides = [1, 1]} : vector<1x256xf32> to vector<1x16xf32>
    %c1_63 = arith.constant 1 : index
    %c11_64 = arith.constant 11 : index
    %c3_65 = arith.constant 3 : index
    %87 = vector.load %arg4[%c1_63, %c11_64, %c3_65] : memref<2x22x22xf32, #tpu.memory_space<vmem>>, vector<1x1x16xf32>
    %88 = vector.shape_cast %87 : vector<1x1x16xf32> to vector<1x16xf32>
    %89 = vector.shape_cast %86 : vector<1x16xf32> to vector<1x1x16xf32>
    tpu.vector_store %arg4[%c1_63, %c11_64, %c3_65], %89 {strides = array<i32>} : memref<2x22x22xf32, #tpu.memory_space<vmem>>, vector<1x1x16xf32>,
    %90 = vector.extract_strided_slice %3 {offsets = [0, 144], sizes = [1, 16], strides = [1, 1]} : vector<1x256xf32> to vector<1x16xf32>
    %c0_66 = arith.constant 0 : index
    %c12 = arith.constant 12 : index
    %c3_67 = arith.constant 3 : index
    %91 = vector.load %arg4[%c0_66, %c12, %c3_67] : memref<2x22x22xf32, #tpu.memory_space<vmem>>, vector<1x1x16xf32>
    %92 = vector.shape_cast %91 : vector<1x1x16xf32> to vector<1x16xf32>
    %93 = vector.shape_cast %90 : vector<1x16xf32> to vector<1x1x16xf32>
    tpu.vector_store %arg4[%c0_66, %c12, %c3_67], %93 {strides = array<i32>} : memref<2x22x22xf32, #tpu.memory_space<vmem>>, vector<1x1x16xf32>,
    %94 = vector.extract_strided_slice %9 {offsets = [0, 144], sizes = [1, 16], strides = [1, 1]} : vector<1x256xf32> to vector<1x16xf32>
    %c1_68 = arith.constant 1 : index
    %c12_69 = arith.constant 12 : index
    %c3_70 = arith.constant 3 : index
    %95 = vector.load %arg4[%c1_68, %c12_69, %c3_70] : memref<2x22x22xf32, #tpu.memory_space<vmem>>, vector<1x1x16xf32>
    %96 = vector.shape_cast %95 : vector<1x1x16xf32> to vector<1x16xf32>
    %97 = vector.shape_cast %94 : vector<1x16xf32> to vector<1x1x16xf32>
    tpu.vector_store %arg4[%c1_68, %c12_69, %c3_70], %97 {strides = array<i32>} : memref<2x22x22xf32, #tpu.memory_space<vmem>>, vector<1x1x16xf32>,
    %98 = vector.extract_strided_slice %3 {offsets = [0, 160], sizes = [1, 16], strides = [1, 1]} : vector<1x256xf32> to vector<1x16xf32>
    %c0_71 = arith.constant 0 : index
    %c13 = arith.constant 13 : index
    %c3_72 = arith.constant 3 : index
    %99 = vector.load %arg4[%c0_71, %c13, %c3_72] : memref<2x22x22xf32, #tpu.memory_space<vmem>>, vector<1x1x16xf32>
    %100 = vector.shape_cast %99 : vector<1x1x16xf32> to vector<1x16xf32>
    %101 = vector.shape_cast %98 : vector<1x16xf32> to vector<1x1x16xf32>
    tpu.vector_store %arg4[%c0_71, %c13, %c3_72], %101 {strides = array<i32>} : memref<2x22x22xf32, #tpu.memory_space<vmem>>, vector<1x1x16xf32>,
    %102 = vector.extract_strided_slice %9 {offsets = [0, 160], sizes = [1, 16], strides = [1, 1]} : vector<1x256xf32> to vector<1x16xf32>
    %c1_73 = arith.constant 1 : index
    %c13_74 = arith.constant 13 : index
    %c3_75 = arith.constant 3 : index
    %103 = vector.load %arg4[%c1_73, %c13_74, %c3_75] : memref<2x22x22xf32, #tpu.memory_space<vmem>>, vector<1x1x16xf32>
    %104 = vector.shape_cast %103 : vector<1x1x16xf32> to vector<1x16xf32>
    %105 = vector.shape_cast %102 : vector<1x16xf32> to vector<1x1x16xf32>
    tpu.vector_store %arg4[%c1_73, %c13_74, %c3_75], %105 {strides = array<i32>} : memref<2x22x22xf32, #tpu.memory_space<vmem>>, vector<1x1x16xf32>,
    %106 = vector.extract_strided_slice %3 {offsets = [0, 176], sizes = [1, 16], strides = [1, 1]} : vector<1x256xf32> to vector<1x16xf32>
    %c0_76 = arith.constant 0 : index
    %c14 = arith.constant 14 : index
    %c3_77 = arith.constant 3 : index
    %107 = vector.load %arg4[%c0_76, %c14, %c3_77] : memref<2x22x22xf32, #tpu.memory_space<vmem>>, vector<1x1x16xf32>
    %108 = vector.shape_cast %107 : vector<1x1x16xf32> to vector<1x16xf32>
    %109 = vector.shape_cast %106 : vector<1x16xf32> to vector<1x1x16xf32>
    tpu.vector_store %arg4[%c0_76, %c14, %c3_77], %109 {strides = array<i32>} : memref<2x22x22xf32, #tpu.memory_space<vmem>>, vector<1x1x16xf32>,
    %110 = vector.extract_strided_slice %9 {offsets = [0, 176], sizes = [1, 16], strides = [1, 1]} : vector<1x256xf32> to vector<1x16xf32>
    %c1_78 = arith.constant 1 : index
    %c14_79 = arith.constant 14 : index
    %c3_80 = arith.constant 3 : index
    %111 = vector.load %arg4[%c1_78, %c14_79, %c3_80] : memref<2x22x22xf32, #tpu.memory_space<vmem>>, vector<1x1x16xf32>
    %112 = vector.shape_cast %111 : vector<1x1x16xf32> to vector<1x16xf32>
    %113 = vector.shape_cast %110 : vector<1x16xf32> to vector<1x1x16xf32>
    tpu.vector_store %arg4[%c1_78, %c14_79, %c3_80], %113 {strides = array<i32>} : memref<2x22x22xf32, #tpu.memory_space<vmem>>, vector<1x1x16xf32>,
    %114 = vector.extract_strided_slice %3 {offsets = [0, 192], sizes = [1, 16], strides = [1, 1]} : vector<1x256xf32> to vector<1x16xf32>
    %c0_81 = arith.constant 0 : index
    %c15 = arith.constant 15 : index
    %c3_82 = arith.constant 3 : index
    %115 = vector.load %arg4[%c0_81, %c15, %c3_82] : memref<2x22x22xf32, #tpu.memory_space<vmem>>, vector<1x1x16xf32>
    %116 = vector.shape_cast %115 : vector<1x1x16xf32> to vector<1x16xf32>
    %117 = vector.shape_cast %114 : vector<1x16xf32> to vector<1x1x16xf32>
    tpu.vector_store %arg4[%c0_81, %c15, %c3_82], %117 {strides = array<i32>} : memref<2x22x22xf32, #tpu.memory_space<vmem>>, vector<1x1x16xf32>,
    %118 = vector.extract_strided_slice %9 {offsets = [0, 192], sizes = [1, 16], strides = [1, 1]} : vector<1x256xf32> to vector<1x16xf32>
    %c1_83 = arith.constant 1 : index
    %c15_84 = arith.constant 15 : index
    %c3_85 = arith.constant 3 : index
    %119 = vector.load %arg4[%c1_83, %c15_84, %c3_85] : memref<2x22x22xf32, #tpu.memory_space<vmem>>, vector<1x1x16xf32>
    %120 = vector.shape_cast %119 : vector<1x1x16xf32> to vector<1x16xf32>
    %121 = vector.shape_cast %118 : vector<1x16xf32> to vector<1x1x16xf32>
    tpu.vector_store %arg4[%c1_83, %c15_84, %c3_85], %121 {strides = array<i32>} : memref<2x22x22xf32, #tpu.memory_space<vmem>>, vector<1x1x16xf32>,
    %122 = vector.extract_strided_slice %3 {offsets = [0, 208], sizes = [1, 16], strides = [1, 1]} : vector<1x256xf32> to vector<1x16xf32>
    %c0_86 = arith.constant 0 : index
    %c16 = arith.constant 16 : index
    %c3_87 = arith.constant 3 : index
    %123 = vector.load %arg4[%c0_86, %c16, %c3_87] : memref<2x22x22xf32, #tpu.memory_space<vmem>>, vector<1x1x16xf32>
    %124 = vector.shape_cast %123 : vector<1x1x16xf32> to vector<1x16xf32>
    %125 = vector.shape_cast %122 : vector<1x16xf32> to vector<1x1x16xf32>
    tpu.vector_store %arg4[%c0_86, %c16, %c3_87], %125 {strides = array<i32>} : memref<2x22x22xf32, #tpu.memory_space<vmem>>, vector<1x1x16xf32>,
    %126 = vector.extract_strided_slice %9 {offsets = [0, 208], sizes = [1, 16], strides = [1, 1]} : vector<1x256xf32> to vector<1x16xf32>
    %c1_88 = arith.constant 1 : index
    %c16_89 = arith.constant 16 : index
    %c3_90 = arith.constant 3 : index
    %127 = vector.load %arg4[%c1_88, %c16_89, %c3_90] : memref<2x22x22xf32, #tpu.memory_space<vmem>>, vector<1x1x16xf32>
    %128 = vector.shape_cast %127 : vector<1x1x16xf32> to vector<1x16xf32>
    %129 = vector.shape_cast %126 : vector<1x16xf32> to vector<1x1x16xf32>
    tpu.vector_store %arg4[%c1_88, %c16_89, %c3_90], %129 {strides = array<i32>} : memref<2x22x22xf32, #tpu.memory_space<vmem>>, vector<1x1x16xf32>,
    %130 = vector.extract_strided_slice %3 {offsets = [0, 224], sizes = [1, 16], strides = [1, 1]} : vector<1x256xf32> to vector<1x16xf32>
    %c0_91 = arith.constant 0 : index
    %c17 = arith.constant 17 : index
    %c3_92 = arith.constant 3 : index
    %131 = vector.load %arg4[%c0_91, %c17, %c3_92] : memref<2x22x22xf32, #tpu.memory_space<vmem>>, vector<1x1x16xf32>
    %132 = vector.shape_cast %131 : vector<1x1x16xf32> to vector<1x16xf32>
    %133 = vector.shape_cast %130 : vector<1x16xf32> to vector<1x1x16xf32>
    tpu.vector_store %arg4[%c0_91, %c17, %c3_92], %133 {strides = array<i32>} : memref<2x22x22xf32, #tpu.memory_space<vmem>>, vector<1x1x16xf32>,
    %134 = vector.extract_strided_slice %9 {offsets = [0, 224], sizes = [1, 16], strides = [1, 1]} : vector<1x256xf32> to vector<1x16xf32>
    %c1_93 = arith.constant 1 : index
    %c17_94 = arith.constant 17 : index
    %c3_95 = arith.constant 3 : index
    %135 = vector.load %arg4[%c1_93, %c17_94, %c3_95] : memref<2x22x22xf32, #tpu.memory_space<vmem>>, vector<1x1x16xf32>
    %136 = vector.shape_cast %135 : vector<1x1x16xf32> to vector<1x16xf32>
    %137 = vector.shape_cast %134 : vector<1x16xf32> to vector<1x1x16xf32>
    tpu.vector_store %arg4[%c1_93, %c17_94, %c3_95], %137 {strides = array<i32>} : memref<2x22x22xf32, #tpu.memory_space<vmem>>, vector<1x1x16xf32>,
    %138 = vector.extract_strided_slice %3 {offsets = [0, 240], sizes = [1, 16], strides = [1, 1]} : vector<1x256xf32> to vector<1x16xf32>
    %c0_96 = arith.constant 0 : index
    %c18 = arith.constant 18 : index
    %c3_97 = arith.constant 3 : index
    %139 = vector.load %arg4[%c0_96, %c18, %c3_97] : memref<2x22x22xf32, #tpu.memory_space<vmem>>, vector<1x1x16xf32>
    %140 = vector.shape_cast %139 : vector<1x1x16xf32> to vector<1x16xf32>
    %141 = vector.shape_cast %138 : vector<1x16xf32> to vector<1x1x16xf32>
    tpu.vector_store %arg4[%c0_96, %c18, %c3_97], %141 {strides = array<i32>} : memref<2x22x22xf32, #tpu.memory_space<vmem>>, vector<1x1x16xf32>,
    %142 = vector.extract_strided_slice %9 {offsets = [0, 240], sizes = [1, 16], strides = [1, 1]} : vector<1x256xf32> to vector<1x16xf32>
    %c1_98 = arith.constant 1 : index
    %c18_99 = arith.constant 18 : index
    %c3_100 = arith.constant 3 : index
    %143 = vector.load %arg4[%c1_98, %c18_99, %c3_100] : memref<2x22x22xf32, #tpu.memory_space<vmem>>, vector<1x1x16xf32>
    %144 = vector.shape_cast %143 : vector<1x1x16xf32> to vector<1x16xf32>
    %145 = vector.shape_cast %142 : vector<1x16xf32> to vector<1x1x16xf32>
    tpu.vector_store %arg4[%c1_98, %c18_99, %c3_100], %145 {strides = array<i32>} : memref<2x22x22xf32, #tpu.memory_space<vmem>>, vector<1x1x16xf32>,
    %cst_101 = arith.constant 0.000000e+00 : f32
    %146 = vector.broadcast %cst_101 : f32 to vector<16x16xf32>
    %cst_102 = arith.constant 0.000000e+00 : f32
    %147 = vector.broadcast %cst_102 : f32 to vector<16x16xf32>
    %cst_103 = arith.constant 0.000000e+00 : f32
    %148 = vector.broadcast %cst_103 : f32 to vector<16x16xf32>
    %cst_104 = arith.constant 0.000000e+00 : f32
    %149 = vector.broadcast %cst_104 : f32 to vector<16x16xf32>
    %c0_105 = arith.constant 0 : index
    %c0_106 = arith.constant 0 : index
    %c0_107 = arith.constant 0 : index
    %150 = vector.load %arg4[%c0_105, %c0_106, %c0_107] : memref<2x22x22xf32, #tpu.memory_space<vmem>>, vector<1x16x22xf32>
    %151 = vector.shape_cast %150 : vector<1x16x22xf32> to vector<16x22xf32>
    %c0_108 = arith.constant 0 : index
    %152 = memref.load %arg2[%c0_108] : memref<98xf32, #tpu.memory_space<smem>>
    %153 = vector.extract_strided_slice %151 {offsets = [0, 0], sizes = [16, 16], strides = [1, 1]} : vector<16x22xf32> to vector<16x16xf32>
    %154 = vector.broadcast %152 : f32 to vector<16x16xf32>
    %155 = arith.mulf %154, %153 : vector<16x16xf32>
    %156 = arith.addf %146, %155 : vector<16x16xf32>
    %c1_109 = arith.constant 1 : index
    %157 = memref.load %arg2[%c1_109] : memref<98xf32, #tpu.memory_space<smem>>
    %158 = vector.extract_strided_slice %151 {offsets = [0, 1], sizes = [16, 16], strides = [1, 1]} : vector<16x22xf32> to vector<16x16xf32>
    %159 = vector.broadcast %157 : f32 to vector<16x16xf32>
    %160 = arith.mulf %159, %158 : vector<16x16xf32>
    %161 = arith.addf %147, %160 : vector<16x16xf32>
    %c2 = arith.constant 2 : index
    %162 = memref.load %arg2[%c2] : memref<98xf32, #tpu.memory_space<smem>>
    %163 = vector.extract_strided_slice %151 {offsets = [0, 2], sizes = [16, 16], strides = [1, 1]} : vector<16x22xf32> to vector<16x16xf32>
    %164 = vector.broadcast %162 : f32 to vector<16x16xf32>
    %165 = arith.mulf %164, %163 : vector<16x16xf32>
    %166 = arith.addf %148, %165 : vector<16x16xf32>
    %c3_110 = arith.constant 3 : index
    %167 = memref.load %arg2[%c3_110] : memref<98xf32, #tpu.memory_space<smem>>
    %168 = vector.extract_strided_slice %151 {offsets = [0, 3], sizes = [16, 16], strides = [1, 1]} : vector<16x22xf32> to vector<16x16xf32>
    %169 = vector.broadcast %167 : f32 to vector<16x16xf32>
    %170 = arith.mulf %169, %168 : vector<16x16xf32>
    %171 = arith.addf %149, %170 : vector<16x16xf32>
    %c4_111 = arith.constant 4 : index
    %172 = memref.load %arg2[%c4_111] : memref<98xf32, #tpu.memory_space<smem>>
    %173 = vector.extract_strided_slice %151 {offsets = [0, 4], sizes = [16, 16], strides = [1, 1]} : vector<16x22xf32> to vector<16x16xf32>
    %174 = vector.broadcast %172 : f32 to vector<16x16xf32>
    %175 = arith.mulf %174, %173 : vector<16x16xf32>
    %176 = arith.addf %156, %175 : vector<16x16xf32>
    %c5_112 = arith.constant 5 : index
    %177 = memref.load %arg2[%c5_112] : memref<98xf32, #tpu.memory_space<smem>>
    %178 = vector.extract_strided_slice %151 {offsets = [0, 5], sizes = [16, 16], strides = [1, 1]} : vector<16x22xf32> to vector<16x16xf32>
    %179 = vector.broadcast %177 : f32 to vector<16x16xf32>
    %180 = arith.mulf %179, %178 : vector<16x16xf32>
    %181 = arith.addf %161, %180 : vector<16x16xf32>
    %c6_113 = arith.constant 6 : index
    %182 = memref.load %arg2[%c6_113] : memref<98xf32, #tpu.memory_space<smem>>
    %183 = vector.extract_strided_slice %151 {offsets = [0, 6], sizes = [16, 16], strides = [1, 1]} : vector<16x22xf32> to vector<16x16xf32>
    %184 = vector.broadcast %182 : f32 to vector<16x16xf32>
    %185 = arith.mulf %184, %183 : vector<16x16xf32>
    %186 = arith.addf %166, %185 : vector<16x16xf32>
    %c0_114 = arith.constant 0 : index
    %c1_115 = arith.constant 1 : index
    %c0_116 = arith.constant 0 : index
    %187 = vector.load %arg4[%c0_114, %c1_115, %c0_116] : memref<2x22x22xf32, #tpu.memory_space<vmem>>, vector<1x16x22xf32>
    %188 = vector.shape_cast %187 : vector<1x16x22xf32> to vector<16x22xf32>
    %c7_117 = arith.constant 7 : index
    %189 = memref.load %arg2[%c7_117] : memref<98xf32, #tpu.memory_space<smem>>
    %190 = vector.extract_strided_slice %188 {offsets = [0, 0], sizes = [16, 16], strides = [1, 1]} : vector<16x22xf32> to vector<16x16xf32>
    %191 = vector.broadcast %189 : f32 to vector<16x16xf32>
    %192 = arith.mulf %191, %190 : vector<16x16xf32>
    %193 = arith.addf %171, %192 : vector<16x16xf32>
    %c8_118 = arith.constant 8 : index
    %194 = memref.load %arg2[%c8_118] : memref<98xf32, #tpu.memory_space<smem>>
    %195 = vector.extract_strided_slice %188 {offsets = [0, 1], sizes = [16, 16], strides = [1, 1]} : vector<16x22xf32> to vector<16x16xf32>
    %196 = vector.broadcast %194 : f32 to vector<16x16xf32>
    %197 = arith.mulf %196, %195 : vector<16x16xf32>
    %198 = arith.addf %176, %197 : vector<16x16xf32>
    %c9_119 = arith.constant 9 : index
    %199 = memref.load %arg2[%c9_119] : memref<98xf32, #tpu.memory_space<smem>>
    %200 = vector.extract_strided_slice %188 {offsets = [0, 2], sizes = [16, 16], strides = [1, 1]} : vector<16x22xf32> to vector<16x16xf32>
    %201 = vector.broadcast %199 : f32 to vector<16x16xf32>
    %202 = arith.mulf %201, %200 : vector<16x16xf32>
    %203 = arith.addf %181, %202 : vector<16x16xf32>
    %c10_120 = arith.constant 10 : index
    %204 = memref.load %arg2[%c10_120] : memref<98xf32, #tpu.memory_space<smem>>
    %205 = vector.extract_strided_slice %188 {offsets = [0, 3], sizes = [16, 16], strides = [1, 1]} : vector<16x22xf32> to vector<16x16xf32>
    %206 = vector.broadcast %204 : f32 to vector<16x16xf32>
    %207 = arith.mulf %206, %205 : vector<16x16xf32>
    %208 = arith.addf %186, %207 : vector<16x16xf32>
    %c11_121 = arith.constant 11 : index
    %209 = memref.load %arg2[%c11_121] : memref<98xf32, #tpu.memory_space<smem>>
    %210 = vector.extract_strided_slice %188 {offsets = [0, 4], sizes = [16, 16], strides = [1, 1]} : vector<16x22xf32> to vector<16x16xf32>
    %211 = vector.broadcast %209 : f32 to vector<16x16xf32>
    %212 = arith.mulf %211, %210 : vector<16x16xf32>
    %213 = arith.addf %193, %212 : vector<16x16xf32>
    %c12_122 = arith.constant 12 : index
    %214 = memref.load %arg2[%c12_122] : memref<98xf32, #tpu.memory_space<smem>>
    %215 = vector.extract_strided_slice %188 {offsets = [0, 5], sizes = [16, 16], strides = [1, 1]} : vector<16x22xf32> to vector<16x16xf32>
    %216 = vector.broadcast %214 : f32 to vector<16x16xf32>
    %217 = arith.mulf %216, %215 : vector<16x16xf32>
    %218 = arith.addf %198, %217 : vector<16x16xf32>
    %c13_123 = arith.constant 13 : index
    %219 = memref.load %arg2[%c13_123] : memref<98xf32, #tpu.memory_space<smem>>
    %220 = vector.extract_strided_slice %188 {offsets = [0, 6], sizes = [16, 16], strides = [1, 1]} : vector<16x22xf32> to vector<16x16xf32>
    %221 = vector.broadcast %219 : f32 to vector<16x16xf32>
    %222 = arith.mulf %221, %220 : vector<16x16xf32>
    %223 = arith.addf %203, %222 : vector<16x16xf32>
    %c0_124 = arith.constant 0 : index
    %c2_125 = arith.constant 2 : index
    %c0_126 = arith.constant 0 : index
    %224 = vector.load %arg4[%c0_124, %c2_125, %c0_126] : memref<2x22x22xf32, #tpu.memory_space<vmem>>, vector<1x16x22xf32>
    %225 = vector.shape_cast %224 : vector<1x16x22xf32> to vector<16x22xf32>
    %c14_127 = arith.constant 14 : index
    %226 = memref.load %arg2[%c14_127] : memref<98xf32, #tpu.memory_space<smem>>
    %227 = vector.extract_strided_slice %225 {offsets = [0, 0], sizes = [16, 16], strides = [1, 1]} : vector<16x22xf32> to vector<16x16xf32>
    %228 = vector.broadcast %226 : f32 to vector<16x16xf32>
    %229 = arith.mulf %228, %227 : vector<16x16xf32>
    %230 = arith.addf %208, %229 : vector<16x16xf32>
    %c15_128 = arith.constant 15 : index
    %231 = memref.load %arg2[%c15_128] : memref<98xf32, #tpu.memory_space<smem>>
    %232 = vector.extract_strided_slice %225 {offsets = [0, 1], sizes = [16, 16], strides = [1, 1]} : vector<16x22xf32> to vector<16x16xf32>
    %233 = vector.broadcast %231 : f32 to vector<16x16xf32>
    %234 = arith.mulf %233, %232 : vector<16x16xf32>
    %235 = arith.addf %213, %234 : vector<16x16xf32>
    %c16_129 = arith.constant 16 : index
    %236 = memref.load %arg2[%c16_129] : memref<98xf32, #tpu.memory_space<smem>>
    %237 = vector.extract_strided_slice %225 {offsets = [0, 2], sizes = [16, 16], strides = [1, 1]} : vector<16x22xf32> to vector<16x16xf32>
    %238 = vector.broadcast %236 : f32 to vector<16x16xf32>
    %239 = arith.mulf %238, %237 : vector<16x16xf32>
    %240 = arith.addf %218, %239 : vector<16x16xf32>
    %c17_130 = arith.constant 17 : index
    %241 = memref.load %arg2[%c17_130] : memref<98xf32, #tpu.memory_space<smem>>
    %242 = vector.extract_strided_slice %225 {offsets = [0, 3], sizes = [16, 16], strides = [1, 1]} : vector<16x22xf32> to vector<16x16xf32>
    %243 = vector.broadcast %241 : f32 to vector<16x16xf32>
    %244 = arith.mulf %243, %242 : vector<16x16xf32>
    %245 = arith.addf %223, %244 : vector<16x16xf32>
    %c18_131 = arith.constant 18 : index
    %246 = memref.load %arg2[%c18_131] : memref<98xf32, #tpu.memory_space<smem>>
    %247 = vector.extract_strided_slice %225 {offsets = [0, 4], sizes = [16, 16], strides = [1, 1]} : vector<16x22xf32> to vector<16x16xf32>
    %248 = vector.broadcast %246 : f32 to vector<16x16xf32>
    %249 = arith.mulf %248, %247 : vector<16x16xf32>
    %250 = arith.addf %230, %249 : vector<16x16xf32>
    %c19_132 = arith.constant 19 : index
    %251 = memref.load %arg2[%c19_132] : memref<98xf32, #tpu.memory_space<smem>>
    %252 = vector.extract_strided_slice %225 {offsets = [0, 5], sizes = [16, 16], strides = [1, 1]} : vector<16x22xf32> to vector<16x16xf32>
    %253 = vector.broadcast %251 : f32 to vector<16x16xf32>
    %254 = arith.mulf %253, %252 : vector<16x16xf32>
    %255 = arith.addf %235, %254 : vector<16x16xf32>
    %c20 = arith.constant 20 : index
    %256 = memref.load %arg2[%c20] : memref<98xf32, #tpu.memory_space<smem>>
    %257 = vector.extract_strided_slice %225 {offsets = [0, 6], sizes = [16, 16], strides = [1, 1]} : vector<16x22xf32> to vector<16x16xf32>
    %258 = vector.broadcast %256 : f32 to vector<16x16xf32>
    %259 = arith.mulf %258, %257 : vector<16x16xf32>
    %260 = arith.addf %240, %259 : vector<16x16xf32>
    %c0_133 = arith.constant 0 : index
    %c3_134 = arith.constant 3 : index
    %c0_135 = arith.constant 0 : index
    %261 = vector.load %arg4[%c0_133, %c3_134, %c0_135] : memref<2x22x22xf32, #tpu.memory_space<vmem>>, vector<1x16x22xf32>
    %262 = vector.shape_cast %261 : vector<1x16x22xf32> to vector<16x22xf32>
    %c21 = arith.constant 21 : index
    %263 = memref.load %arg2[%c21] : memref<98xf32, #tpu.memory_space<smem>>
    %264 = vector.extract_strided_slice %262 {offsets = [0, 0], sizes = [16, 16], strides = [1, 1]} : vector<16x22xf32> to vector<16x16xf32>
    %265 = vector.broadcast %263 : f32 to vector<16x16xf32>
    %266 = arith.mulf %265, %264 : vector<16x16xf32>
    %267 = arith.addf %245, %266 : vector<16x16xf32>
    %c22 = arith.constant 22 : index
    %268 = memref.load %arg2[%c22] : memref<98xf32, #tpu.memory_space<smem>>
    %269 = vector.extract_strided_slice %262 {offsets = [0, 1], sizes = [16, 16], strides = [1, 1]} : vector<16x22xf32> to vector<16x16xf32>
    %270 = vector.broadcast %268 : f32 to vector<16x16xf32>
    %271 = arith.mulf %270, %269 : vector<16x16xf32>
    %272 = arith.addf %250, %271 : vector<16x16xf32>
    %c23 = arith.constant 23 : index
    %273 = memref.load %arg2[%c23] : memref<98xf32, #tpu.memory_space<smem>>
    %274 = vector.extract_strided_slice %262 {offsets = [0, 2], sizes = [16, 16], strides = [1, 1]} : vector<16x22xf32> to vector<16x16xf32>
    %275 = vector.broadcast %273 : f32 to vector<16x16xf32>
    %276 = arith.mulf %275, %274 : vector<16x16xf32>
    %277 = arith.addf %255, %276 : vector<16x16xf32>
    %c24 = arith.constant 24 : index
    %278 = memref.load %arg2[%c24] : memref<98xf32, #tpu.memory_space<smem>>
    %279 = vector.extract_strided_slice %262 {offsets = [0, 3], sizes = [16, 16], strides = [1, 1]} : vector<16x22xf32> to vector<16x16xf32>
    %280 = vector.broadcast %278 : f32 to vector<16x16xf32>
    %281 = arith.mulf %280, %279 : vector<16x16xf32>
    %282 = arith.addf %260, %281 : vector<16x16xf32>
    %c25 = arith.constant 25 : index
    %283 = memref.load %arg2[%c25] : memref<98xf32, #tpu.memory_space<smem>>
    %284 = vector.extract_strided_slice %262 {offsets = [0, 4], sizes = [16, 16], strides = [1, 1]} : vector<16x22xf32> to vector<16x16xf32>
    %285 = vector.broadcast %283 : f32 to vector<16x16xf32>
    %286 = arith.mulf %285, %284 : vector<16x16xf32>
    %287 = arith.addf %267, %286 : vector<16x16xf32>
    %c26 = arith.constant 26 : index
    %288 = memref.load %arg2[%c26] : memref<98xf32, #tpu.memory_space<smem>>
    %289 = vector.extract_strided_slice %262 {offsets = [0, 5], sizes = [16, 16], strides = [1, 1]} : vector<16x22xf32> to vector<16x16xf32>
    %290 = vector.broadcast %288 : f32 to vector<16x16xf32>
    %291 = arith.mulf %290, %289 : vector<16x16xf32>
    %292 = arith.addf %272, %291 : vector<16x16xf32>
    %c27 = arith.constant 27 : index
    %293 = memref.load %arg2[%c27] : memref<98xf32, #tpu.memory_space<smem>>
    %294 = vector.extract_strided_slice %262 {offsets = [0, 6], sizes = [16, 16], strides = [1, 1]} : vector<16x22xf32> to vector<16x16xf32>
    %295 = vector.broadcast %293 : f32 to vector<16x16xf32>
    %296 = arith.mulf %295, %294 : vector<16x16xf32>
    %297 = arith.addf %277, %296 : vector<16x16xf32>
    %c0_136 = arith.constant 0 : index
    %c4_137 = arith.constant 4 : index
    %c0_138 = arith.constant 0 : index
    %298 = vector.load %arg4[%c0_136, %c4_137, %c0_138] : memref<2x22x22xf32, #tpu.memory_space<vmem>>, vector<1x16x22xf32>
    %299 = vector.shape_cast %298 : vector<1x16x22xf32> to vector<16x22xf32>
    %c28 = arith.constant 28 : index
    %300 = memref.load %arg2[%c28] : memref<98xf32, #tpu.memory_space<smem>>
    %301 = vector.extract_strided_slice %299 {offsets = [0, 0], sizes = [16, 16], strides = [1, 1]} : vector<16x22xf32> to vector<16x16xf32>
    %302 = vector.broadcast %300 : f32 to vector<16x16xf32>
    %303 = arith.mulf %302, %301 : vector<16x16xf32>
    %304 = arith.addf %282, %303 : vector<16x16xf32>
    %c29 = arith.constant 29 : index
    %305 = memref.load %arg2[%c29] : memref<98xf32, #tpu.memory_space<smem>>
    %306 = vector.extract_strided_slice %299 {offsets = [0, 1], sizes = [16, 16], strides = [1, 1]} : vector<16x22xf32> to vector<16x16xf32>
    %307 = vector.broadcast %305 : f32 to vector<16x16xf32>
    %308 = arith.mulf %307, %306 : vector<16x16xf32>
    %309 = arith.addf %287, %308 : vector<16x16xf32>
    %c30 = arith.constant 30 : index
    %310 = memref.load %arg2[%c30] : memref<98xf32, #tpu.memory_space<smem>>
    %311 = vector.extract_strided_slice %299 {offsets = [0, 2], sizes = [16, 16], strides = [1, 1]} : vector<16x22xf32> to vector<16x16xf32>
    %312 = vector.broadcast %310 : f32 to vector<16x16xf32>
    %313 = arith.mulf %312, %311 : vector<16x16xf32>
    %314 = arith.addf %292, %313 : vector<16x16xf32>
    %c31 = arith.constant 31 : index
    %315 = memref.load %arg2[%c31] : memref<98xf32, #tpu.memory_space<smem>>
    %316 = vector.extract_strided_slice %299 {offsets = [0, 3], sizes = [16, 16], strides = [1, 1]} : vector<16x22xf32> to vector<16x16xf32>
    %317 = vector.broadcast %315 : f32 to vector<16x16xf32>
    %318 = arith.mulf %317, %316 : vector<16x16xf32>
    %319 = arith.addf %297, %318 : vector<16x16xf32>
    %c32 = arith.constant 32 : index
    %320 = memref.load %arg2[%c32] : memref<98xf32, #tpu.memory_space<smem>>
    %321 = vector.extract_strided_slice %299 {offsets = [0, 4], sizes = [16, 16], strides = [1, 1]} : vector<16x22xf32> to vector<16x16xf32>
    %322 = vector.broadcast %320 : f32 to vector<16x16xf32>
    %323 = arith.mulf %322, %321 : vector<16x16xf32>
    %324 = arith.addf %304, %323 : vector<16x16xf32>
    %c33 = arith.constant 33 : index
    %325 = memref.load %arg2[%c33] : memref<98xf32, #tpu.memory_space<smem>>
    %326 = vector.extract_strided_slice %299 {offsets = [0, 5], sizes = [16, 16], strides = [1, 1]} : vector<16x22xf32> to vector<16x16xf32>
    %327 = vector.broadcast %325 : f32 to vector<16x16xf32>
    %328 = arith.mulf %327, %326 : vector<16x16xf32>
    %329 = arith.addf %309, %328 : vector<16x16xf32>
    %c34 = arith.constant 34 : index
    %330 = memref.load %arg2[%c34] : memref<98xf32, #tpu.memory_space<smem>>
    %331 = vector.extract_strided_slice %299 {offsets = [0, 6], sizes = [16, 16], strides = [1, 1]} : vector<16x22xf32> to vector<16x16xf32>
    %332 = vector.broadcast %330 : f32 to vector<16x16xf32>
    %333 = arith.mulf %332, %331 : vector<16x16xf32>
    %334 = arith.addf %314, %333 : vector<16x16xf32>
    %c0_139 = arith.constant 0 : index
    %c5_140 = arith.constant 5 : index
    %c0_141 = arith.constant 0 : index
    %335 = vector.load %arg4[%c0_139, %c5_140, %c0_141] : memref<2x22x22xf32, #tpu.memory_space<vmem>>, vector<1x16x22xf32>
    %336 = vector.shape_cast %335 : vector<1x16x22xf32> to vector<16x22xf32>
    %c35 = arith.constant 35 : index
    %337 = memref.load %arg2[%c35] : memref<98xf32, #tpu.memory_space<smem>>
    %338 = vector.extract_strided_slice %336 {offsets = [0, 0], sizes = [16, 16], strides = [1, 1]} : vector<16x22xf32> to vector<16x16xf32>
    %339 = vector.broadcast %337 : f32 to vector<16x16xf32>
    %340 = arith.mulf %339, %338 : vector<16x16xf32>
    %341 = arith.addf %319, %340 : vector<16x16xf32>
    %c36 = arith.constant 36 : index
    %342 = memref.load %arg2[%c36] : memref<98xf32, #tpu.memory_space<smem>>
    %343 = vector.extract_strided_slice %336 {offsets = [0, 1], sizes = [16, 16], strides = [1, 1]} : vector<16x22xf32> to vector<16x16xf32>
    %344 = vector.broadcast %342 : f32 to vector<16x16xf32>
    %345 = arith.mulf %344, %343 : vector<16x16xf32>
    %346 = arith.addf %324, %345 : vector<16x16xf32>
    %c37 = arith.constant 37 : index
    %347 = memref.load %arg2[%c37] : memref<98xf32, #tpu.memory_space<smem>>
    %348 = vector.extract_strided_slice %336 {offsets = [0, 2], sizes = [16, 16], strides = [1, 1]} : vector<16x22xf32> to vector<16x16xf32>
    %349 = vector.broadcast %347 : f32 to vector<16x16xf32>
    %350 = arith.mulf %349, %348 : vector<16x16xf32>
    %351 = arith.addf %329, %350 : vector<16x16xf32>
    %c38 = arith.constant 38 : index
    %352 = memref.load %arg2[%c38] : memref<98xf32, #tpu.memory_space<smem>>
    %353 = vector.extract_strided_slice %336 {offsets = [0, 3], sizes = [16, 16], strides = [1, 1]} : vector<16x22xf32> to vector<16x16xf32>
    %354 = vector.broadcast %352 : f32 to vector<16x16xf32>
    %355 = arith.mulf %354, %353 : vector<16x16xf32>
    %356 = arith.addf %334, %355 : vector<16x16xf32>
    %c39 = arith.constant 39 : index
    %357 = memref.load %arg2[%c39] : memref<98xf32, #tpu.memory_space<smem>>
    %358 = vector.extract_strided_slice %336 {offsets = [0, 4], sizes = [16, 16], strides = [1, 1]} : vector<16x22xf32> to vector<16x16xf32>
    %359 = vector.broadcast %357 : f32 to vector<16x16xf32>
    %360 = arith.mulf %359, %358 : vector<16x16xf32>
    %361 = arith.addf %341, %360 : vector<16x16xf32>
    %c40 = arith.constant 40 : index
    %362 = memref.load %arg2[%c40] : memref<98xf32, #tpu.memory_space<smem>>
    %363 = vector.extract_strided_slice %336 {offsets = [0, 5], sizes = [16, 16], strides = [1, 1]} : vector<16x22xf32> to vector<16x16xf32>
    %364 = vector.broadcast %362 : f32 to vector<16x16xf32>
    %365 = arith.mulf %364, %363 : vector<16x16xf32>
    %366 = arith.addf %346, %365 : vector<16x16xf32>
    %c41 = arith.constant 41 : index
    %367 = memref.load %arg2[%c41] : memref<98xf32, #tpu.memory_space<smem>>
    %368 = vector.extract_strided_slice %336 {offsets = [0, 6], sizes = [16, 16], strides = [1, 1]} : vector<16x22xf32> to vector<16x16xf32>
    %369 = vector.broadcast %367 : f32 to vector<16x16xf32>
    %370 = arith.mulf %369, %368 : vector<16x16xf32>
    %371 = arith.addf %351, %370 : vector<16x16xf32>
    %c0_142 = arith.constant 0 : index
    %c6_143 = arith.constant 6 : index
    %c0_144 = arith.constant 0 : index
    %372 = vector.load %arg4[%c0_142, %c6_143, %c0_144] : memref<2x22x22xf32, #tpu.memory_space<vmem>>, vector<1x16x22xf32>
    %373 = vector.shape_cast %372 : vector<1x16x22xf32> to vector<16x22xf32>
    %c42 = arith.constant 42 : index
    %374 = memref.load %arg2[%c42] : memref<98xf32, #tpu.memory_space<smem>>
    %375 = vector.extract_strided_slice %373 {offsets = [0, 0], sizes = [16, 16], strides = [1, 1]} : vector<16x22xf32> to vector<16x16xf32>
    %376 = vector.broadcast %374 : f32 to vector<16x16xf32>
    %377 = arith.mulf %376, %375 : vector<16x16xf32>
    %378 = arith.addf %356, %377 : vector<16x16xf32>
    %c43 = arith.constant 43 : index
    %379 = memref.load %arg2[%c43] : memref<98xf32, #tpu.memory_space<smem>>
    %380 = vector.extract_strided_slice %373 {offsets = [0, 1], sizes = [16, 16], strides = [1, 1]} : vector<16x22xf32> to vector<16x16xf32>
    %381 = vector.broadcast %379 : f32 to vector<16x16xf32>
    %382 = arith.mulf %381, %380 : vector<16x16xf32>
    %383 = arith.addf %361, %382 : vector<16x16xf32>
    %c44 = arith.constant 44 : index
    %384 = memref.load %arg2[%c44] : memref<98xf32, #tpu.memory_space<smem>>
    %385 = vector.extract_strided_slice %373 {offsets = [0, 2], sizes = [16, 16], strides = [1, 1]} : vector<16x22xf32> to vector<16x16xf32>
    %386 = vector.broadcast %384 : f32 to vector<16x16xf32>
    %387 = arith.mulf %386, %385 : vector<16x16xf32>
    %388 = arith.addf %366, %387 : vector<16x16xf32>
    %c45 = arith.constant 45 : index
    %389 = memref.load %arg2[%c45] : memref<98xf32, #tpu.memory_space<smem>>
    %390 = vector.extract_strided_slice %373 {offsets = [0, 3], sizes = [16, 16], strides = [1, 1]} : vector<16x22xf32> to vector<16x16xf32>
    %391 = vector.broadcast %389 : f32 to vector<16x16xf32>
    %392 = arith.mulf %391, %390 : vector<16x16xf32>
    %393 = arith.addf %371, %392 : vector<16x16xf32>
    %c46 = arith.constant 46 : index
    %394 = memref.load %arg2[%c46] : memref<98xf32, #tpu.memory_space<smem>>
    %395 = vector.extract_strided_slice %373 {offsets = [0, 4], sizes = [16, 16], strides = [1, 1]} : vector<16x22xf32> to vector<16x16xf32>
    %396 = vector.broadcast %394 : f32 to vector<16x16xf32>
    %397 = arith.mulf %396, %395 : vector<16x16xf32>
    %398 = arith.addf %378, %397 : vector<16x16xf32>
    %c47 = arith.constant 47 : index
    %399 = memref.load %arg2[%c47] : memref<98xf32, #tpu.memory_space<smem>>
    %400 = vector.extract_strided_slice %373 {offsets = [0, 5], sizes = [16, 16], strides = [1, 1]} : vector<16x22xf32> to vector<16x16xf32>
    %401 = vector.broadcast %399 : f32 to vector<16x16xf32>
    %402 = arith.mulf %401, %400 : vector<16x16xf32>
    %403 = arith.addf %383, %402 : vector<16x16xf32>
    %c48 = arith.constant 48 : index
    %404 = memref.load %arg2[%c48] : memref<98xf32, #tpu.memory_space<smem>>
    %405 = vector.extract_strided_slice %373 {offsets = [0, 6], sizes = [16, 16], strides = [1, 1]} : vector<16x22xf32> to vector<16x16xf32>
    %406 = vector.broadcast %404 : f32 to vector<16x16xf32>
    %407 = arith.mulf %406, %405 : vector<16x16xf32>
    %408 = arith.addf %388, %407 : vector<16x16xf32>
    %c1_145 = arith.constant 1 : index
    %c0_146 = arith.constant 0 : index
    %c0_147 = arith.constant 0 : index
    %409 = vector.load %arg4[%c1_145, %c0_146, %c0_147] : memref<2x22x22xf32, #tpu.memory_space<vmem>>, vector<1x16x22xf32>
    %410 = vector.shape_cast %409 : vector<1x16x22xf32> to vector<16x22xf32>
    %c49 = arith.constant 49 : index
    %411 = memref.load %arg2[%c49] : memref<98xf32, #tpu.memory_space<smem>>
    %412 = vector.extract_strided_slice %410 {offsets = [0, 0], sizes = [16, 16], strides = [1, 1]} : vector<16x22xf32> to vector<16x16xf32>
    %413 = vector.broadcast %411 : f32 to vector<16x16xf32>
    %414 = arith.mulf %413, %412 : vector<16x16xf32>
    %415 = arith.addf %393, %414 : vector<16x16xf32>
    %c50 = arith.constant 50 : index
    %416 = memref.load %arg2[%c50] : memref<98xf32, #tpu.memory_space<smem>>
    %417 = vector.extract_strided_slice %410 {offsets = [0, 1], sizes = [16, 16], strides = [1, 1]} : vector<16x22xf32> to vector<16x16xf32>
    %418 = vector.broadcast %416 : f32 to vector<16x16xf32>
    %419 = arith.mulf %418, %417 : vector<16x16xf32>
    %420 = arith.addf %398, %419 : vector<16x16xf32>
    %c51 = arith.constant 51 : index
    %421 = memref.load %arg2[%c51] : memref<98xf32, #tpu.memory_space<smem>>
    %422 = vector.extract_strided_slice %410 {offsets = [0, 2], sizes = [16, 16], strides = [1, 1]} : vector<16x22xf32> to vector<16x16xf32>
    %423 = vector.broadcast %421 : f32 to vector<16x16xf32>
    %424 = arith.mulf %423, %422 : vector<16x16xf32>
    %425 = arith.addf %403, %424 : vector<16x16xf32>
    %c52 = arith.constant 52 : index
    %426 = memref.load %arg2[%c52] : memref<98xf32, #tpu.memory_space<smem>>
    %427 = vector.extract_strided_slice %410 {offsets = [0, 3], sizes = [16, 16], strides = [1, 1]} : vector<16x22xf32> to vector<16x16xf32>
    %428 = vector.broadcast %426 : f32 to vector<16x16xf32>
    %429 = arith.mulf %428, %427 : vector<16x16xf32>
    %430 = arith.addf %408, %429 : vector<16x16xf32>
    %c53 = arith.constant 53 : index
    %431 = memref.load %arg2[%c53] : memref<98xf32, #tpu.memory_space<smem>>
    %432 = vector.extract_strided_slice %410 {offsets = [0, 4], sizes = [16, 16], strides = [1, 1]} : vector<16x22xf32> to vector<16x16xf32>
    %433 = vector.broadcast %431 : f32 to vector<16x16xf32>
    %434 = arith.mulf %433, %432 : vector<16x16xf32>
    %435 = arith.addf %415, %434 : vector<16x16xf32>
    %c54 = arith.constant 54 : index
    %436 = memref.load %arg2[%c54] : memref<98xf32, #tpu.memory_space<smem>>
    %437 = vector.extract_strided_slice %410 {offsets = [0, 5], sizes = [16, 16], strides = [1, 1]} : vector<16x22xf32> to vector<16x16xf32>
    %438 = vector.broadcast %436 : f32 to vector<16x16xf32>
    %439 = arith.mulf %438, %437 : vector<16x16xf32>
    %440 = arith.addf %420, %439 : vector<16x16xf32>
    %c55 = arith.constant 55 : index
    %441 = memref.load %arg2[%c55] : memref<98xf32, #tpu.memory_space<smem>>
    %442 = vector.extract_strided_slice %410 {offsets = [0, 6], sizes = [16, 16], strides = [1, 1]} : vector<16x22xf32> to vector<16x16xf32>
    %443 = vector.broadcast %441 : f32 to vector<16x16xf32>
    %444 = arith.mulf %443, %442 : vector<16x16xf32>
    %445 = arith.addf %425, %444 : vector<16x16xf32>
    %c1_148 = arith.constant 1 : index
    %c1_149 = arith.constant 1 : index
    %c0_150 = arith.constant 0 : index
    %446 = vector.load %arg4[%c1_148, %c1_149, %c0_150] : memref<2x22x22xf32, #tpu.memory_space<vmem>>, vector<1x16x22xf32>
    %447 = vector.shape_cast %446 : vector<1x16x22xf32> to vector<16x22xf32>
    %c56 = arith.constant 56 : index
    %448 = memref.load %arg2[%c56] : memref<98xf32, #tpu.memory_space<smem>>
    %449 = vector.extract_strided_slice %447 {offsets = [0, 0], sizes = [16, 16], strides = [1, 1]} : vector<16x22xf32> to vector<16x16xf32>
    %450 = vector.broadcast %448 : f32 to vector<16x16xf32>
    %451 = arith.mulf %450, %449 : vector<16x16xf32>
    %452 = arith.addf %430, %451 : vector<16x16xf32>
    %c57 = arith.constant 57 : index
    %453 = memref.load %arg2[%c57] : memref<98xf32, #tpu.memory_space<smem>>
    %454 = vector.extract_strided_slice %447 {offsets = [0, 1], sizes = [16, 16], strides = [1, 1]} : vector<16x22xf32> to vector<16x16xf32>
    %455 = vector.broadcast %453 : f32 to vector<16x16xf32>
    %456 = arith.mulf %455, %454 : vector<16x16xf32>
    %457 = arith.addf %435, %456 : vector<16x16xf32>
    %c58 = arith.constant 58 : index
    %458 = memref.load %arg2[%c58] : memref<98xf32, #tpu.memory_space<smem>>
    %459 = vector.extract_strided_slice %447 {offsets = [0, 2], sizes = [16, 16], strides = [1, 1]} : vector<16x22xf32> to vector<16x16xf32>
    %460 = vector.broadcast %458 : f32 to vector<16x16xf32>
    %461 = arith.mulf %460, %459 : vector<16x16xf32>
    %462 = arith.addf %440, %461 : vector<16x16xf32>
    %c59 = arith.constant 59 : index
    %463 = memref.load %arg2[%c59] : memref<98xf32, #tpu.memory_space<smem>>
    %464 = vector.extract_strided_slice %447 {offsets = [0, 3], sizes = [16, 16], strides = [1, 1]} : vector<16x22xf32> to vector<16x16xf32>
    %465 = vector.broadcast %463 : f32 to vector<16x16xf32>
    %466 = arith.mulf %465, %464 : vector<16x16xf32>
    %467 = arith.addf %445, %466 : vector<16x16xf32>
    %c60 = arith.constant 60 : index
    %468 = memref.load %arg2[%c60] : memref<98xf32, #tpu.memory_space<smem>>
    %469 = vector.extract_strided_slice %447 {offsets = [0, 4], sizes = [16, 16], strides = [1, 1]} : vector<16x22xf32> to vector<16x16xf32>
    %470 = vector.broadcast %468 : f32 to vector<16x16xf32>
    %471 = arith.mulf %470, %469 : vector<16x16xf32>
    %472 = arith.addf %452, %471 : vector<16x16xf32>
    %c61 = arith.constant 61 : index
    %473 = memref.load %arg2[%c61] : memref<98xf32, #tpu.memory_space<smem>>
    %474 = vector.extract_strided_slice %447 {offsets = [0, 5], sizes = [16, 16], strides = [1, 1]} : vector<16x22xf32> to vector<16x16xf32>
    %475 = vector.broadcast %473 : f32 to vector<16x16xf32>
    %476 = arith.mulf %475, %474 : vector<16x16xf32>
    %477 = arith.addf %457, %476 : vector<16x16xf32>
    %c62 = arith.constant 62 : index
    %478 = memref.load %arg2[%c62] : memref<98xf32, #tpu.memory_space<smem>>
    %479 = vector.extract_strided_slice %447 {offsets = [0, 6], sizes = [16, 16], strides = [1, 1]} : vector<16x22xf32> to vector<16x16xf32>
    %480 = vector.broadcast %478 : f32 to vector<16x16xf32>
    %481 = arith.mulf %480, %479 : vector<16x16xf32>
    %482 = arith.addf %462, %481 : vector<16x16xf32>
    %c1_151 = arith.constant 1 : index
    %c2_152 = arith.constant 2 : index
    %c0_153 = arith.constant 0 : index
    %483 = vector.load %arg4[%c1_151, %c2_152, %c0_153] : memref<2x22x22xf32, #tpu.memory_space<vmem>>, vector<1x16x22xf32>
    %484 = vector.shape_cast %483 : vector<1x16x22xf32> to vector<16x22xf32>
    %c63 = arith.constant 63 : index
    %485 = memref.load %arg2[%c63] : memref<98xf32, #tpu.memory_space<smem>>
    %486 = vector.extract_strided_slice %484 {offsets = [0, 0], sizes = [16, 16], strides = [1, 1]} : vector<16x22xf32> to vector<16x16xf32>
    %487 = vector.broadcast %485 : f32 to vector<16x16xf32>
    %488 = arith.mulf %487, %486 : vector<16x16xf32>
    %489 = arith.addf %467, %488 : vector<16x16xf32>
    %c64 = arith.constant 64 : index
    %490 = memref.load %arg2[%c64] : memref<98xf32, #tpu.memory_space<smem>>
    %491 = vector.extract_strided_slice %484 {offsets = [0, 1], sizes = [16, 16], strides = [1, 1]} : vector<16x22xf32> to vector<16x16xf32>
    %492 = vector.broadcast %490 : f32 to vector<16x16xf32>
    %493 = arith.mulf %492, %491 : vector<16x16xf32>
    %494 = arith.addf %472, %493 : vector<16x16xf32>
    %c65 = arith.constant 65 : index
    %495 = memref.load %arg2[%c65] : memref<98xf32, #tpu.memory_space<smem>>
    %496 = vector.extract_strided_slice %484 {offsets = [0, 2], sizes = [16, 16], strides = [1, 1]} : vector<16x22xf32> to vector<16x16xf32>
    %497 = vector.broadcast %495 : f32 to vector<16x16xf32>
    %498 = arith.mulf %497, %496 : vector<16x16xf32>
    %499 = arith.addf %477, %498 : vector<16x16xf32>
    %c66 = arith.constant 66 : index
    %500 = memref.load %arg2[%c66] : memref<98xf32, #tpu.memory_space<smem>>
    %501 = vector.extract_strided_slice %484 {offsets = [0, 3], sizes = [16, 16], strides = [1, 1]} : vector<16x22xf32> to vector<16x16xf32>
    %502 = vector.broadcast %500 : f32 to vector<16x16xf32>
    %503 = arith.mulf %502, %501 : vector<16x16xf32>
    %504 = arith.addf %482, %503 : vector<16x16xf32>
    %c67 = arith.constant 67 : index
    %505 = memref.load %arg2[%c67] : memref<98xf32, #tpu.memory_space<smem>>
    %506 = vector.extract_strided_slice %484 {offsets = [0, 4], sizes = [16, 16], strides = [1, 1]} : vector<16x22xf32> to vector<16x16xf32>
    %507 = vector.broadcast %505 : f32 to vector<16x16xf32>
    %508 = arith.mulf %507, %506 : vector<16x16xf32>
    %509 = arith.addf %489, %508 : vector<16x16xf32>
    %c68 = arith.constant 68 : index
    %510 = memref.load %arg2[%c68] : memref<98xf32, #tpu.memory_space<smem>>
    %511 = vector.extract_strided_slice %484 {offsets = [0, 5], sizes = [16, 16], strides = [1, 1]} : vector<16x22xf32> to vector<16x16xf32>
    %512 = vector.broadcast %510 : f32 to vector<16x16xf32>
    %513 = arith.mulf %512, %511 : vector<16x16xf32>
    %514 = arith.addf %494, %513 : vector<16x16xf32>
    %c69 = arith.constant 69 : index
    %515 = memref.load %arg2[%c69] : memref<98xf32, #tpu.memory_space<smem>>
    %516 = vector.extract_strided_slice %484 {offsets = [0, 6], sizes = [16, 16], strides = [1, 1]} : vector<16x22xf32> to vector<16x16xf32>
    %517 = vector.broadcast %515 : f32 to vector<16x16xf32>
    %518 = arith.mulf %517, %516 : vector<16x16xf32>
    %519 = arith.addf %499, %518 : vector<16x16xf32>
    %c1_154 = arith.constant 1 : index
    %c3_155 = arith.constant 3 : index
    %c0_156 = arith.constant 0 : index
    %520 = vector.load %arg4[%c1_154, %c3_155, %c0_156] : memref<2x22x22xf32, #tpu.memory_space<vmem>>, vector<1x16x22xf32>
    %521 = vector.shape_cast %520 : vector<1x16x22xf32> to vector<16x22xf32>
    %c70 = arith.constant 70 : index
    %522 = memref.load %arg2[%c70] : memref<98xf32, #tpu.memory_space<smem>>
    %523 = vector.extract_strided_slice %521 {offsets = [0, 0], sizes = [16, 16], strides = [1, 1]} : vector<16x22xf32> to vector<16x16xf32>
    %524 = vector.broadcast %522 : f32 to vector<16x16xf32>
    %525 = arith.mulf %524, %523 : vector<16x16xf32>
    %526 = arith.addf %504, %525 : vector<16x16xf32>
    %c71 = arith.constant 71 : index
    %527 = memref.load %arg2[%c71] : memref<98xf32, #tpu.memory_space<smem>>
    %528 = vector.extract_strided_slice %521 {offsets = [0, 1], sizes = [16, 16], strides = [1, 1]} : vector<16x22xf32> to vector<16x16xf32>
    %529 = vector.broadcast %527 : f32 to vector<16x16xf32>
    %530 = arith.mulf %529, %528 : vector<16x16xf32>
    %531 = arith.addf %509, %530 : vector<16x16xf32>
    %c72 = arith.constant 72 : index
    %532 = memref.load %arg2[%c72] : memref<98xf32, #tpu.memory_space<smem>>
    %533 = vector.extract_strided_slice %521 {offsets = [0, 2], sizes = [16, 16], strides = [1, 1]} : vector<16x22xf32> to vector<16x16xf32>
    %534 = vector.broadcast %532 : f32 to vector<16x16xf32>
    %535 = arith.mulf %534, %533 : vector<16x16xf32>
    %536 = arith.addf %514, %535 : vector<16x16xf32>
    %c73 = arith.constant 73 : index
    %537 = memref.load %arg2[%c73] : memref<98xf32, #tpu.memory_space<smem>>
    %538 = vector.extract_strided_slice %521 {offsets = [0, 3], sizes = [16, 16], strides = [1, 1]} : vector<16x22xf32> to vector<16x16xf32>
    %539 = vector.broadcast %537 : f32 to vector<16x16xf32>
    %540 = arith.mulf %539, %538 : vector<16x16xf32>
    %541 = arith.addf %519, %540 : vector<16x16xf32>
    %c74 = arith.constant 74 : index
    %542 = memref.load %arg2[%c74] : memref<98xf32, #tpu.memory_space<smem>>
    %543 = vector.extract_strided_slice %521 {offsets = [0, 4], sizes = [16, 16], strides = [1, 1]} : vector<16x22xf32> to vector<16x16xf32>
    %544 = vector.broadcast %542 : f32 to vector<16x16xf32>
    %545 = arith.mulf %544, %543 : vector<16x16xf32>
    %546 = arith.addf %526, %545 : vector<16x16xf32>
    %c75 = arith.constant 75 : index
    %547 = memref.load %arg2[%c75] : memref<98xf32, #tpu.memory_space<smem>>
    %548 = vector.extract_strided_slice %521 {offsets = [0, 5], sizes = [16, 16], strides = [1, 1]} : vector<16x22xf32> to vector<16x16xf32>
    %549 = vector.broadcast %547 : f32 to vector<16x16xf32>
    %550 = arith.mulf %549, %548 : vector<16x16xf32>
    %551 = arith.addf %531, %550 : vector<16x16xf32>
    %c76 = arith.constant 76 : index
    %552 = memref.load %arg2[%c76] : memref<98xf32, #tpu.memory_space<smem>>
    %553 = vector.extract_strided_slice %521 {offsets = [0, 6], sizes = [16, 16], strides = [1, 1]} : vector<16x22xf32> to vector<16x16xf32>
    %554 = vector.broadcast %552 : f32 to vector<16x16xf32>
    %555 = arith.mulf %554, %553 : vector<16x16xf32>
    %556 = arith.addf %536, %555 : vector<16x16xf32>
    %c1_157 = arith.constant 1 : index
    %c4_158 = arith.constant 4 : index
    %c0_159 = arith.constant 0 : index
    %557 = vector.load %arg4[%c1_157, %c4_158, %c0_159] : memref<2x22x22xf32, #tpu.memory_space<vmem>>, vector<1x16x22xf32>
    %558 = vector.shape_cast %557 : vector<1x16x22xf32> to vector<16x22xf32>
    %c77 = arith.constant 77 : index
    %559 = memref.load %arg2[%c77] : memref<98xf32, #tpu.memory_space<smem>>
    %560 = vector.extract_strided_slice %558 {offsets = [0, 0], sizes = [16, 16], strides = [1, 1]} : vector<16x22xf32> to vector<16x16xf32>
    %561 = vector.broadcast %559 : f32 to vector<16x16xf32>
    %562 = arith.mulf %561, %560 : vector<16x16xf32>
    %563 = arith.addf %541, %562 : vector<16x16xf32>
    %c78 = arith.constant 78 : index
    %564 = memref.load %arg2[%c78] : memref<98xf32, #tpu.memory_space<smem>>
    %565 = vector.extract_strided_slice %558 {offsets = [0, 1], sizes = [16, 16], strides = [1, 1]} : vector<16x22xf32> to vector<16x16xf32>
    %566 = vector.broadcast %564 : f32 to vector<16x16xf32>
    %567 = arith.mulf %566, %565 : vector<16x16xf32>
    %568 = arith.addf %546, %567 : vector<16x16xf32>
    %c79 = arith.constant 79 : index
    %569 = memref.load %arg2[%c79] : memref<98xf32, #tpu.memory_space<smem>>
    %570 = vector.extract_strided_slice %558 {offsets = [0, 2], sizes = [16, 16], strides = [1, 1]} : vector<16x22xf32> to vector<16x16xf32>
    %571 = vector.broadcast %569 : f32 to vector<16x16xf32>
    %572 = arith.mulf %571, %570 : vector<16x16xf32>
    %573 = arith.addf %551, %572 : vector<16x16xf32>
    %c80 = arith.constant 80 : index
    %574 = memref.load %arg2[%c80] : memref<98xf32, #tpu.memory_space<smem>>
    %575 = vector.extract_strided_slice %558 {offsets = [0, 3], sizes = [16, 16], strides = [1, 1]} : vector<16x22xf32> to vector<16x16xf32>
    %576 = vector.broadcast %574 : f32 to vector<16x16xf32>
    %577 = arith.mulf %576, %575 : vector<16x16xf32>
    %578 = arith.addf %556, %577 : vector<16x16xf32>
    %c81 = arith.constant 81 : index
    %579 = memref.load %arg2[%c81] : memref<98xf32, #tpu.memory_space<smem>>
    %580 = vector.extract_strided_slice %558 {offsets = [0, 4], sizes = [16, 16], strides = [1, 1]} : vector<16x22xf32> to vector<16x16xf32>
    %581 = vector.broadcast %579 : f32 to vector<16x16xf32>
    %582 = arith.mulf %581, %580 : vector<16x16xf32>
    %583 = arith.addf %563, %582 : vector<16x16xf32>
    %c82 = arith.constant 82 : index
    %584 = memref.load %arg2[%c82] : memref<98xf32, #tpu.memory_space<smem>>
    %585 = vector.extract_strided_slice %558 {offsets = [0, 5], sizes = [16, 16], strides = [1, 1]} : vector<16x22xf32> to vector<16x16xf32>
    %586 = vector.broadcast %584 : f32 to vector<16x16xf32>
    %587 = arith.mulf %586, %585 : vector<16x16xf32>
    %588 = arith.addf %568, %587 : vector<16x16xf32>
    %c83 = arith.constant 83 : index
    %589 = memref.load %arg2[%c83] : memref<98xf32, #tpu.memory_space<smem>>
    %590 = vector.extract_strided_slice %558 {offsets = [0, 6], sizes = [16, 16], strides = [1, 1]} : vector<16x22xf32> to vector<16x16xf32>
    %591 = vector.broadcast %589 : f32 to vector<16x16xf32>
    %592 = arith.mulf %591, %590 : vector<16x16xf32>
    %593 = arith.addf %573, %592 : vector<16x16xf32>
    %c1_160 = arith.constant 1 : index
    %c5_161 = arith.constant 5 : index
    %c0_162 = arith.constant 0 : index
    %594 = vector.load %arg4[%c1_160, %c5_161, %c0_162] : memref<2x22x22xf32, #tpu.memory_space<vmem>>, vector<1x16x22xf32>
    %595 = vector.shape_cast %594 : vector<1x16x22xf32> to vector<16x22xf32>
    %c84 = arith.constant 84 : index
    %596 = memref.load %arg2[%c84] : memref<98xf32, #tpu.memory_space<smem>>
    %597 = vector.extract_strided_slice %595 {offsets = [0, 0], sizes = [16, 16], strides = [1, 1]} : vector<16x22xf32> to vector<16x16xf32>
    %598 = vector.broadcast %596 : f32 to vector<16x16xf32>
    %599 = arith.mulf %598, %597 : vector<16x16xf32>
    %600 = arith.addf %578, %599 : vector<16x16xf32>
    %c85 = arith.constant 85 : index
    %601 = memref.load %arg2[%c85] : memref<98xf32, #tpu.memory_space<smem>>
    %602 = vector.extract_strided_slice %595 {offsets = [0, 1], sizes = [16, 16], strides = [1, 1]} : vector<16x22xf32> to vector<16x16xf32>
    %603 = vector.broadcast %601 : f32 to vector<16x16xf32>
    %604 = arith.mulf %603, %602 : vector<16x16xf32>
    %605 = arith.addf %583, %604 : vector<16x16xf32>
    %c86 = arith.constant 86 : index
    %606 = memref.load %arg2[%c86] : memref<98xf32, #tpu.memory_space<smem>>
    %607 = vector.extract_strided_slice %595 {offsets = [0, 2], sizes = [16, 16], strides = [1, 1]} : vector<16x22xf32> to vector<16x16xf32>
    %608 = vector.broadcast %606 : f32 to vector<16x16xf32>
    %609 = arith.mulf %608, %607 : vector<16x16xf32>
    %610 = arith.addf %588, %609 : vector<16x16xf32>
    %c87 = arith.constant 87 : index
    %611 = memref.load %arg2[%c87] : memref<98xf32, #tpu.memory_space<smem>>
    %612 = vector.extract_strided_slice %595 {offsets = [0, 3], sizes = [16, 16], strides = [1, 1]} : vector<16x22xf32> to vector<16x16xf32>
    %613 = vector.broadcast %611 : f32 to vector<16x16xf32>
    %614 = arith.mulf %613, %612 : vector<16x16xf32>
    %615 = arith.addf %593, %614 : vector<16x16xf32>
    %c88 = arith.constant 88 : index
    %616 = memref.load %arg2[%c88] : memref<98xf32, #tpu.memory_space<smem>>
    %617 = vector.extract_strided_slice %595 {offsets = [0, 4], sizes = [16, 16], strides = [1, 1]} : vector<16x22xf32> to vector<16x16xf32>
    %618 = vector.broadcast %616 : f32 to vector<16x16xf32>
    %619 = arith.mulf %618, %617 : vector<16x16xf32>
    %620 = arith.addf %600, %619 : vector<16x16xf32>
    %c89 = arith.constant 89 : index
    %621 = memref.load %arg2[%c89] : memref<98xf32, #tpu.memory_space<smem>>
    %622 = vector.extract_strided_slice %595 {offsets = [0, 5], sizes = [16, 16], strides = [1, 1]} : vector<16x22xf32> to vector<16x16xf32>
    %623 = vector.broadcast %621 : f32 to vector<16x16xf32>
    %624 = arith.mulf %623, %622 : vector<16x16xf32>
    %625 = arith.addf %605, %624 : vector<16x16xf32>
    %c90 = arith.constant 90 : index
    %626 = memref.load %arg2[%c90] : memref<98xf32, #tpu.memory_space<smem>>
    %627 = vector.extract_strided_slice %595 {offsets = [0, 6], sizes = [16, 16], strides = [1, 1]} : vector<16x22xf32> to vector<16x16xf32>
    %628 = vector.broadcast %626 : f32 to vector<16x16xf32>
    %629 = arith.mulf %628, %627 : vector<16x16xf32>
    %630 = arith.addf %610, %629 : vector<16x16xf32>
    %c1_163 = arith.constant 1 : index
    %c6_164 = arith.constant 6 : index
    %c0_165 = arith.constant 0 : index
    %631 = vector.load %arg4[%c1_163, %c6_164, %c0_165] : memref<2x22x22xf32, #tpu.memory_space<vmem>>, vector<1x16x22xf32>
    %632 = vector.shape_cast %631 : vector<1x16x22xf32> to vector<16x22xf32>
    %c91 = arith.constant 91 : index
    %633 = memref.load %arg2[%c91] : memref<98xf32, #tpu.memory_space<smem>>
    %634 = vector.extract_strided_slice %632 {offsets = [0, 0], sizes = [16, 16], strides = [1, 1]} : vector<16x22xf32> to vector<16x16xf32>
    %635 = vector.broadcast %633 : f32 to vector<16x16xf32>
    %636 = arith.mulf %635, %634 : vector<16x16xf32>
    %637 = arith.addf %615, %636 : vector<16x16xf32>
    %c92 = arith.constant 92 : index
    %638 = memref.load %arg2[%c92] : memref<98xf32, #tpu.memory_space<smem>>
    %639 = vector.extract_strided_slice %632 {offsets = [0, 1], sizes = [16, 16], strides = [1, 1]} : vector<16x22xf32> to vector<16x16xf32>
    %640 = vector.broadcast %638 : f32 to vector<16x16xf32>
    %641 = arith.mulf %640, %639 : vector<16x16xf32>
    %642 = arith.addf %620, %641 : vector<16x16xf32>
    %c93 = arith.constant 93 : index
    %643 = memref.load %arg2[%c93] : memref<98xf32, #tpu.memory_space<smem>>
    %644 = vector.extract_strided_slice %632 {offsets = [0, 2], sizes = [16, 16], strides = [1, 1]} : vector<16x22xf32> to vector<16x16xf32>
    %645 = vector.broadcast %643 : f32 to vector<16x16xf32>
    %646 = arith.mulf %645, %644 : vector<16x16xf32>
    %647 = arith.addf %625, %646 : vector<16x16xf32>
    %c94 = arith.constant 94 : index
    %648 = memref.load %arg2[%c94] : memref<98xf32, #tpu.memory_space<smem>>
    %649 = vector.extract_strided_slice %632 {offsets = [0, 3], sizes = [16, 16], strides = [1, 1]} : vector<16x22xf32> to vector<16x16xf32>
    %650 = vector.broadcast %648 : f32 to vector<16x16xf32>
    %651 = arith.mulf %650, %649 : vector<16x16xf32>
    %652 = arith.addf %630, %651 : vector<16x16xf32>
    %c95 = arith.constant 95 : index
    %653 = memref.load %arg2[%c95] : memref<98xf32, #tpu.memory_space<smem>>
    %654 = vector.extract_strided_slice %632 {offsets = [0, 4], sizes = [16, 16], strides = [1, 1]} : vector<16x22xf32> to vector<16x16xf32>
    %655 = vector.broadcast %653 : f32 to vector<16x16xf32>
    %656 = arith.mulf %655, %654 : vector<16x16xf32>
    %657 = arith.addf %637, %656 : vector<16x16xf32>
    %c96 = arith.constant 96 : index
    %658 = memref.load %arg2[%c96] : memref<98xf32, #tpu.memory_space<smem>>
    %659 = vector.extract_strided_slice %632 {offsets = [0, 5], sizes = [16, 16], strides = [1, 1]} : vector<16x22xf32> to vector<16x16xf32>
    %660 = vector.broadcast %658 : f32 to vector<16x16xf32>
    %661 = arith.mulf %660, %659 : vector<16x16xf32>
    %662 = arith.addf %642, %661 : vector<16x16xf32>
    %c97 = arith.constant 97 : index
    %663 = memref.load %arg2[%c97] : memref<98xf32, #tpu.memory_space<smem>>
    %664 = vector.extract_strided_slice %632 {offsets = [0, 6], sizes = [16, 16], strides = [1, 1]} : vector<16x22xf32> to vector<16x16xf32>
    %665 = vector.broadcast %663 : f32 to vector<16x16xf32>
    %666 = arith.mulf %665, %664 : vector<16x16xf32>
    %667 = arith.addf %647, %666 : vector<16x16xf32>
    %668 = arith.addf %662, %667 : vector<16x16xf32>
    %669 = arith.addf %652, %657 : vector<16x16xf32>
    %670 = arith.addf %668, %669 : vector<16x16xf32>
    %671 = arith.negf %670 : vector<16x16xf32>
    %672 = math.exp %671 : vector<16x16xf32>
    %cst_166 = arith.constant 1.000000e+00 : f32
    %673 = vector.broadcast %cst_166 : f32 to vector<16x16xf32>
    %674 = arith.addf %673, %672 : vector<16x16xf32>
    %675 = arith.divf %673, %674 : vector<16x16xf32>
    %676 = vector.extract_strided_slice %675 {offsets = [0, 0], sizes = [1, 16], strides = [1, 1]} : vector<16x16xf32> to vector<1x16xf32>
    %c0_167 = arith.constant 0 : index
    %c0_168 = arith.constant 0 : index
    %677 = vector.load %arg5[%c0_167, %c0_168] : memref<1x256xf32, #tpu.memory_space<vmem>>, vector<1x16xf32>
    tpu.vector_store %arg5[%c0_167, %c0_168], %676 {strides = array<i32>} : memref<1x256xf32, #tpu.memory_space<vmem>>, vector<1x16xf32>,
    %678 = vector.extract_strided_slice %675 {offsets = [1, 0], sizes = [1, 16], strides = [1, 1]} : vector<16x16xf32> to vector<1x16xf32>
    %c0_169 = arith.constant 0 : index
    %c16_170 = arith.constant 16 : index
    %679 = vector.load %arg5[%c0_169, %c16_170] : memref<1x256xf32, #tpu.memory_space<vmem>>, vector<1x16xf32>
    tpu.vector_store %arg5[%c0_169, %c16_170], %678 {strides = array<i32>} : memref<1x256xf32, #tpu.memory_space<vmem>>, vector<1x16xf32>,
    %680 = vector.extract_strided_slice %675 {offsets = [2, 0], sizes = [1, 16], strides = [1, 1]} : vector<16x16xf32> to vector<1x16xf32>
    %c0_171 = arith.constant 0 : index
    %c32_172 = arith.constant 32 : index
    %681 = vector.load %arg5[%c0_171, %c32_172] : memref<1x256xf32, #tpu.memory_space<vmem>>, vector<1x16xf32>
    tpu.vector_store %arg5[%c0_171, %c32_172], %680 {strides = array<i32>} : memref<1x256xf32, #tpu.memory_space<vmem>>, vector<1x16xf32>,
    %682 = vector.extract_strided_slice %675 {offsets = [3, 0], sizes = [1, 16], strides = [1, 1]} : vector<16x16xf32> to vector<1x16xf32>
    %c0_173 = arith.constant 0 : index
    %c48_174 = arith.constant 48 : index
    %683 = vector.load %arg5[%c0_173, %c48_174] : memref<1x256xf32, #tpu.memory_space<vmem>>, vector<1x16xf32>
    tpu.vector_store %arg5[%c0_173, %c48_174], %682 {strides = array<i32>} : memref<1x256xf32, #tpu.memory_space<vmem>>, vector<1x16xf32>,
    %684 = vector.extract_strided_slice %675 {offsets = [4, 0], sizes = [1, 16], strides = [1, 1]} : vector<16x16xf32> to vector<1x16xf32>
    %c0_175 = arith.constant 0 : index
    %c64_176 = arith.constant 64 : index
    %685 = vector.load %arg5[%c0_175, %c64_176] : memref<1x256xf32, #tpu.memory_space<vmem>>, vector<1x16xf32>
    tpu.vector_store %arg5[%c0_175, %c64_176], %684 {strides = array<i32>} : memref<1x256xf32, #tpu.memory_space<vmem>>, vector<1x16xf32>,
    %686 = vector.extract_strided_slice %675 {offsets = [5, 0], sizes = [1, 16], strides = [1, 1]} : vector<16x16xf32> to vector<1x16xf32>
    %c0_177 = arith.constant 0 : index
    %c80_178 = arith.constant 80 : index
    %687 = vector.load %arg5[%c0_177, %c80_178] : memref<1x256xf32, #tpu.memory_space<vmem>>, vector<1x16xf32>
    tpu.vector_store %arg5[%c0_177, %c80_178], %686 {strides = array<i32>} : memref<1x256xf32, #tpu.memory_space<vmem>>, vector<1x16xf32>,
    %688 = vector.extract_strided_slice %675 {offsets = [6, 0], sizes = [1, 16], strides = [1, 1]} : vector<16x16xf32> to vector<1x16xf32>
    %c0_179 = arith.constant 0 : index
    %c96_180 = arith.constant 96 : index
    %689 = vector.load %arg5[%c0_179, %c96_180] : memref<1x256xf32, #tpu.memory_space<vmem>>, vector<1x16xf32>
    tpu.vector_store %arg5[%c0_179, %c96_180], %688 {strides = array<i32>} : memref<1x256xf32, #tpu.memory_space<vmem>>, vector<1x16xf32>,
    %690 = vector.extract_strided_slice %675 {offsets = [7, 0], sizes = [1, 16], strides = [1, 1]} : vector<16x16xf32> to vector<1x16xf32>
    %c0_181 = arith.constant 0 : index
    %c112 = arith.constant 112 : index
    %691 = vector.load %arg5[%c0_181, %c112] : memref<1x256xf32, #tpu.memory_space<vmem>>, vector<1x16xf32>
    tpu.vector_store %arg5[%c0_181, %c112], %690 {strides = array<i32>} : memref<1x256xf32, #tpu.memory_space<vmem>>, vector<1x16xf32>,
    %692 = vector.extract_strided_slice %675 {offsets = [8, 0], sizes = [1, 16], strides = [1, 1]} : vector<16x16xf32> to vector<1x16xf32>
    %c0_182 = arith.constant 0 : index
    %c128 = arith.constant 128 : index
    %693 = vector.load %arg5[%c0_182, %c128] : memref<1x256xf32, #tpu.memory_space<vmem>>, vector<1x16xf32>
    tpu.vector_store %arg5[%c0_182, %c128], %692 {strides = array<i32>} : memref<1x256xf32, #tpu.memory_space<vmem>>, vector<1x16xf32>,
    %694 = vector.extract_strided_slice %675 {offsets = [9, 0], sizes = [1, 16], strides = [1, 1]} : vector<16x16xf32> to vector<1x16xf32>
    %c0_183 = arith.constant 0 : index
    %c144 = arith.constant 144 : index
    %695 = vector.load %arg5[%c0_183, %c144] : memref<1x256xf32, #tpu.memory_space<vmem>>, vector<1x16xf32>
    tpu.vector_store %arg5[%c0_183, %c144], %694 {strides = array<i32>} : memref<1x256xf32, #tpu.memory_space<vmem>>, vector<1x16xf32>,
    %696 = vector.extract_strided_slice %675 {offsets = [10, 0], sizes = [1, 16], strides = [1, 1]} : vector<16x16xf32> to vector<1x16xf32>
    %c0_184 = arith.constant 0 : index
    %c160 = arith.constant 160 : index
    %697 = vector.load %arg5[%c0_184, %c160] : memref<1x256xf32, #tpu.memory_space<vmem>>, vector<1x16xf32>
    tpu.vector_store %arg5[%c0_184, %c160], %696 {strides = array<i32>} : memref<1x256xf32, #tpu.memory_space<vmem>>, vector<1x16xf32>,
    %698 = vector.extract_strided_slice %675 {offsets = [11, 0], sizes = [1, 16], strides = [1, 1]} : vector<16x16xf32> to vector<1x16xf32>
    %c0_185 = arith.constant 0 : index
    %c176 = arith.constant 176 : index
    %699 = vector.load %arg5[%c0_185, %c176] : memref<1x256xf32, #tpu.memory_space<vmem>>, vector<1x16xf32>
    tpu.vector_store %arg5[%c0_185, %c176], %698 {strides = array<i32>} : memref<1x256xf32, #tpu.memory_space<vmem>>, vector<1x16xf32>,
    %700 = vector.extract_strided_slice %675 {offsets = [12, 0], sizes = [1, 16], strides = [1, 1]} : vector<16x16xf32> to vector<1x16xf32>
    %c0_186 = arith.constant 0 : index
    %c192 = arith.constant 192 : index
    %701 = vector.load %arg5[%c0_186, %c192] : memref<1x256xf32, #tpu.memory_space<vmem>>, vector<1x16xf32>
    tpu.vector_store %arg5[%c0_186, %c192], %700 {strides = array<i32>} : memref<1x256xf32, #tpu.memory_space<vmem>>, vector<1x16xf32>,
    %702 = vector.extract_strided_slice %675 {offsets = [13, 0], sizes = [1, 16], strides = [1, 1]} : vector<16x16xf32> to vector<1x16xf32>
    %c0_187 = arith.constant 0 : index
    %c208 = arith.constant 208 : index
    %703 = vector.load %arg5[%c0_187, %c208] : memref<1x256xf32, #tpu.memory_space<vmem>>, vector<1x16xf32>
    tpu.vector_store %arg5[%c0_187, %c208], %702 {strides = array<i32>} : memref<1x256xf32, #tpu.memory_space<vmem>>, vector<1x16xf32>,
    %704 = vector.extract_strided_slice %675 {offsets = [14, 0], sizes = [1, 16], strides = [1, 1]} : vector<16x16xf32> to vector<1x16xf32>
    %c0_188 = arith.constant 0 : index
    %c224 = arith.constant 224 : index
    %705 = vector.load %arg5[%c0_188, %c224] : memref<1x256xf32, #tpu.memory_space<vmem>>, vector<1x16xf32>
    tpu.vector_store %arg5[%c0_188, %c224], %704 {strides = array<i32>} : memref<1x256xf32, #tpu.memory_space<vmem>>, vector<1x16xf32>,
    %706 = vector.extract_strided_slice %675 {offsets = [15, 0], sizes = [1, 16], strides = [1, 1]} : vector<16x16xf32> to vector<1x16xf32>
    %c0_189 = arith.constant 0 : index
    %c240 = arith.constant 240 : index
    %707 = vector.load %arg5[%c0_189, %c240] : memref<1x256xf32, #tpu.memory_space<vmem>>, vector<1x16xf32>
    tpu.vector_store %arg5[%c0_189, %c240], %706 {strides = array<i32>} : memref<1x256xf32, #tpu.memory_space<vmem>>, vector<1x16xf32>,
    %c0_190 = arith.constant 0 : index
    %c0_191 = arith.constant 0 : index
    %c0_192 = arith.constant 0 : index
    %708 = vector.load %arg1[%c0_190, %c0_191, %c0_192] : memref<1x4x256xf32, #tpu.memory_space<vmem>>, vector<1x4x256xf32>
    %709 = vector.shape_cast %708 : vector<1x4x256xf32> to vector<4x256xf32>
    %c0_193 = arith.constant 0 : index
    %c0_194 = arith.constant 0 : index
    %710 = vector.load %arg5[%c0_193, %c0_194] : memref<1x256xf32, #tpu.memory_space<vmem>>, vector<1x256xf32>
    %711 = vector.broadcast %710 : vector<1x256xf32> to vector<4x256xf32>
    %712 = arith.mulf %709, %711 : vector<4x256xf32>
    %c0_195 = arith.constant 0 : index
    %c0_196 = arith.constant 0 : index
    %c0_197 = arith.constant 0 : index
    %713 = vector.load %arg3[%c0_195, %c0_196, %c0_197] : memref<1x4x256xf32, #tpu.memory_space<vmem>>, vector<1x4x256xf32>
    %714 = vector.shape_cast %713 : vector<1x4x256xf32> to vector<4x256xf32>
    %715 = vector.shape_cast %712 : vector<4x256xf32> to vector<1x4x256xf32>
    tpu.vector_store %arg3[%c0_195, %c0_196, %c0_197], %715 {strides = array<i32>} : memref<1x4x256xf32, #tpu.memory_space<vmem>>, vector<1x4x256xf32>,
    return
  }
  func.func @transform_0(%arg0: i32) -> (i32, i32, i32) {
    %c0_i32 = arith.constant 0 : i32
    %c0_i32_0 = arith.constant 0 : i32
    %c0_i32_1 = arith.constant 0 : i32
    return %arg0, %c0_i32, %c0_i32_0 : i32, i32, i32
  }
  func.func @transform_1(%arg0: i32) -> i32 {
    %c0_i32 = arith.constant 0 : i32
    %c0_i32_0 = arith.constant 0 : i32
    return %c0_i32 : i32
  }
  func.func @transform_2(%arg0: i32) -> (i32, i32, i32) {
    %c0_i32 = arith.constant 0 : i32
    %c0_i32_0 = arith.constant 0 : i32
    %c0_i32_1 = arith.constant 0 : i32
    return %arg0, %c0_i32, %c0_i32_0 : i32, i32, i32
  }
}

</mosaic_0001>

<llo_original>
// kernel: tpu_custom_call.1
$region0: #{tpu_custom_call.1}
  #allocation0 [shape = 'u32[]', space=smem, size = 0x4, offset = 0x4, fixed_abs, tag = 'smem constant byte address 0x4 - core index']
  #allocation1 [shape = 'u32[144,128]{1,0:T(1,128)}', space=vmem, size = 0x12000, scoped, tag = 'internal scratch']
  #allocation2 [shape = 'f32[2,22,22]{2,1,0:T(8,128)}', space=vmem, size = 0x6000, scoped, tag = 'scratch operand']
  #allocation3 [shape = 'f32[1,256]{1,0:T(1,128)}', space=vmem, size = 0x400, scoped, tag = 'scratch operand']
  %s0 = inlined_call_operand.hbm [shape: f32[2,4,256], index: 0, kind: input, shape index: {}]
  %s1 = inlined_call_operand.hbm [shape: f32[98], index: 1, kind: input, shape index: {}]
  %s2 = inlined_call_operand.hbm [shape: f32[2,4,256], index: 2, kind: output, shape index: {}]
  %s3 = sld [smem:[#allocation0]]
  $region49: #{tpu_custom_call.1} parent=0
    _
  %s5 = ssub.s32 1, %s3
  %s6 = scalar_select 0, %s5, %s3
  $region1: #{tpu_custom_call.1} parent=0
    #allocation4 [shape = 'u8[8192]{0}', space=vmem, size = 0x2000, scoped, tag = 'input window, operand 0']
    #allocation5 [shape = 's32[2]{0}', space=sflag, size = 0x8, scoped, tag = 'scoped memory for tpu_custom_call.1']
    #allocation6 [shape = 's32[2]{0}', space=sflag, size = 0x8, scoped, tag = 'scoped memory for tpu_custom_call.1']
    #allocation7 [shape = 's32[2]{0}', space=sflag, size = 0x8, scoped, tag = 'scoped memory for tpu_custom_call.1']
    #allocation8 [shape = 'u8[512]{0}', space=smem, size = 0x200, scoped, tag = 'input window, operand 1, single buffered']
    #allocation9 [shape = 'u8[8192]{0}', space=vmem, size = 0x2000, scoped, tag = 'output window, operand 0']
    %7 = vsyncpa [#allocation5], 0
    %s8 = scalar_lea.sflag [#allocation5], 1
    %9 = vsyncpa %s8, 0
    %10 = vsyncpa [#allocation7], 0
    %11 = vsyncpa [#allocation6], 0
    %s12 = scalar_lea.sflag [#allocation6], 1
    %13 = vsyncpa %s12, 0
    loop: start=0, step=1, limit=4
    $region2: #{tpu_custom_call.1} parent=1 // loop_pre_header
      _
    $region3: #{tpu_custom_call.1} parent=1 // loop_header
      %s15 = sphi 0, %s19
      %p16 = scmp.ge.s32.totalorder %s15, 4
      %s25 = sphi 0, %s27
      %s28 = sphi 0, %s25
      %s29 = sphi 0, %s28
      %s45 = sphi 0, %s29
      %s49 = sphi 0, %s49
      %s51 = sphi 0, %s49
      %s52 = sphi 0, %s51
      %s66 = sphi 0, %s52
      %s72 = sphi 0, %s74
      %s75 = sphi 0, %s72
      %s76 = sphi 0, %s75
      %s92 = sphi 0, %s76
    $region4: #{tpu_custom_call.1} parent=1 // loop_header_branch
      %18 = sbr.rel (%p16) target = $region8
    $region5: #{tpu_custom_call.1} parent=1 // loop_body
      %s20 = ssub.s32 %s15, 1
      %s21 = ssub.s32 %s15, 2
      %s22 = sadd.s32 %s15, 1
      %s23 = ssub.s32 %s15, %s22
      %p24 = scmp.eq.s32.totalorder %s23, 0
      %s26 = sadd.s32 %s25, 1
      %s27 = scalar_select %p24, %s25, %s26
      %p30 = pneg %p24
      %p31 = scmp.eq.s32.totalorder %s15, 1
      %p32 = por %p30, %p31
      %p33 = scmp.ne.s32.totalorder %s25, %s28
      %p34 = scmp.eq.s32.totalorder %s15, 0
      %p35 = por %p33, %p34
      %p36 = scmp.ne.s32.totalorder %s25, %s28
      %p37 = scmp.eq.s32.totalorder %s20, 1
      %p38 = por %p36, %p37
      %p39 = scmp.ne.s32.totalorder %s28, %s29
      %p40 = scmp.eq.s32.totalorder %s20, 0
      %p41 = por %p39, %p40
      %p42 = scmp.ne.s32.totalorder %s28, %s29
      %p43 = scmp.eq.s32.totalorder %s21, 1
      %p44 = por %p42, %p43
      %p46 = scmp.ne.s32.totalorder %s29, %s45
      %p47 = scmp.eq.s32.totalorder %s21, 0
      %p48 = por %p46, %p47
      %s50 = sadd.s32 %s49, 1
      %p53 = scmp.eq.s32.totalorder %s15, 1
      %p54 = scmp.ne.s32.totalorder %s49, %s51
      %p55 = scmp.eq.s32.totalorder %s15, 0
      %p56 = por %p54, %p55
      %p57 = scmp.ne.s32.totalorder %s49, %s51
      %p58 = scmp.eq.s32.totalorder %s20, 1
      %p59 = por %p57, %p58
      %p60 = scmp.ne.s32.totalorder %s51, %s52
      %p61 = scmp.eq.s32.totalorder %s20, 0
      %p62 = por %p60, %p61
      %p63 = scmp.ne.s32.totalorder %s51, %s52
      %p64 = scmp.eq.s32.totalorder %s21, 1
      %p65 = por %p63, %p64
      %p67 = scmp.ne.s32.totalorder %s52, %s66
      %p68 = scmp.eq.s32.totalorder %s21, 0
      %p69 = por %p67, %p68
      %s70 = ssub.s32 %s15, %s22
      %p71 = scmp.eq.s32.totalorder %s70, 0
      %s73 = sadd.s32 %s72, 1
      %s74 = scalar_select %p71, %s72, %s73
      %p77 = pneg %p71
      %p78 = scmp.eq.s32.totalorder %s15, 1
      %p79 = por %p77, %p78
      %p80 = scmp.ne.s32.totalorder %s72, %s75
      %p81 = scmp.eq.s32.totalorder %s15, 0
      %p82 = por %p80, %p81
      %p83 = scmp.ne.s32.totalorder %s72, %s75
      %p84 = scmp.eq.s32.totalorder %s20, 1
      %p85 = por %p83, %p84
      %p86 = scmp.ne.s32.totalorder %s75, %s76
      %p87 = scmp.eq.s32.totalorder %s20, 0
      %p88 = por %p86, %p87
      %p89 = scmp.ne.s32.totalorder %s75, %s76
      %p90 = scmp.eq.s32.totalorder %s21, 1
      %p91 = por %p89, %p90
      %p93 = scmp.ne.s32.totalorder %s76, %s92
      %p94 = scmp.eq.s32.totalorder %s21, 0
      %p95 = por %p93, %p94
      %p96 = scmp.le.s32.totalorder 1, %s15
      %p97 = scmp.lt.s32.totalorder %s15, 3
      %p98 = pnand %p96, %p97
      %p99 = pneg %p98
      // Predicated region
      $region9: #{tpu_custom_call.1} parent=5 // pred_check
        _
      $region10: #{tpu_custom_call.1} parent=5 // pred_check_branch
        %101 = sbr.rel (%p98) target = $region12
      $region11: #{tpu_custom_call.1} parent=5 // pred_region
        %s102 = ssub.s32 %s15, 1
        // Predicated region
        $region13: #{tpu_custom_call.1} parent=11 // pred_check
          %p103 = pneg %p62
        $region14: #{tpu_custom_call.1} parent=11 // pred_check_branch
          %105 = sbr.rel (%p103) target = $region16
        $region15: #{tpu_custom_call.1} parent=11 // pred_region
          %s107 = ssub.s32 16, 16
          %108 = vsyncadd [#allocation7], %s107
          %111 = dma.hbm_to_smem %s1, 16, [#allocation8], [#allocation7]
        $region16: #{tpu_custom_call.1} parent=11 // pred_fallthru
          _
      $region12: #{tpu_custom_call.1} parent=5 // pred_fallthru
        _
      %p112 = scmp.lt.s32.totalorder %s15, 2
      // Predicated region
      $region17: #{tpu_custom_call.1} parent=5 // pred_check
        %p113 = pneg %p112
      $region18: #{tpu_custom_call.1} parent=5 // pred_check_branch
        %115 = sbr.rel (%p113) target = $region20
      $region19: #{tpu_custom_call.1} parent=5 // pred_region
        // Predicated region
        $region21: #{tpu_custom_call.1} parent=19 // pred_check
          %p116 = pneg %p35
        $region22: #{tpu_custom_call.1} parent=19 // pred_check_branch
          %118 = sbr.rel (%p116) target = $region24
        $region23: #{tpu_custom_call.1} parent=19 // pred_region
          %s119 = sand.u32 %s25, 1
          %s120 = scalar_lea.sflag [#allocation5], %s119
          %s121 = sand.u32 %s25, 1
          %s122 = smul.addr %s121, 8
          %s123 = scalar_lea.vmem [#allocation4], %s122
          %s125 = ssub.s32 128, 128
          %126 = vsyncadd %s120, %s125
          %s127 = smul.addr %s15, 2
          %s128 = smul.addr %s127, 64
          %s129 = scalar_lea.hbm %s0, %s128
          %s131 = sshll.u32 %s123, 4
          %s132 = int_to_ptr.vmem [resolvable:$true] %s131
          %134 = dma.hbm_to_vmem [thread:$0]  %s129, 128, %s132, %s120
        $region24: #{tpu_custom_call.1} parent=19 // pred_fallthru
          _
      $region20: #{tpu_custom_call.1} parent=5 // pred_fallthru
        _
      %p135 = scmp.le.s32.totalorder 1, %s15
      %p136 = scmp.lt.s32.totalorder %s15, 3
      %p137 = pnand %p135, %p136
      %p138 = pneg %p137
      // Predicated region
      $region25: #{tpu_custom_call.1} parent=5 // pred_check
        _
      $region26: #{tpu_custom_call.1} parent=5 // pred_check_branch
        %140 = sbr.rel (%p137) target = $region28
      $region27: #{tpu_custom_call.1} parent=5 // pred_region
        %s141 = ssub.s32 %s15, 1
        %s142 = sand.u32 %s28, 1
        %s143 = scalar_lea.sflag [#allocation5], %s142
        %s144 = sand.u32 %s28, 1
        %s145 = smul.addr %s144, 8
        %s146 = scalar_lea.vmem [#allocation4], %s145
        // Predicated region
        $region29: #{tpu_custom_call.1} parent=27 // pred_check
          %p147 = pneg %p41
        $region30: #{tpu_custom_call.1} parent=27 // pred_check_branch
          %149 = sbr.rel (%p147) target = $region32
        $region31: #{tpu_custom_call.1} parent=27 // pred_region
          %150 = dma.done %s143, 128
        $region32: #{tpu_custom_call.1} parent=27 // pred_fallthru
          _
        // Predicated region
        $region33: #{tpu_custom_call.1} parent=27 // pred_check
          %p151 = pneg %p62
        $region34: #{tpu_custom_call.1} parent=27 // pred_check_branch
          %153 = sbr.rel (%p151) target = $region36
        $region35: #{tpu_custom_call.1} parent=27 // pred_region
          %154 = dma.done [#allocation7], 16
        $region36: #{tpu_custom_call.1} parent=27 // pred_fallthru
          _
        %155 = sfence
        %s156 = sand.u32 %s28, 1
        %s157 = scalar_lea.sflag [#allocation5], %s156
        %s158 = sand.u32 %s28, 1
        %s159 = smul.addr %s158, 8
        %s160 = scalar_lea.vmem [#allocation4], %s159
        %p161 = pneg %p41
        %p162 = pneg %p38
        %p163 = pneg %p62
        %p164 = pneg %p59
        %p165 = pneg %p88
        %p166 = pneg %p85
        %s167 = sand.u32 %s75, 1
        %s168 = scalar_lea.sflag [#allocation6], %s167
        %s169 = sand.u32 %s75, 1
        %s170 = smul.addr %s169, 8
        %s171 = scalar_lea.vmem [#allocation9], %s170
        %v172 = vld [vmem:[%s146] sm:$0xff]
        %v174 = vcombine.high %v172, %v172
        %vm176 = vcmask 1043456
        %v177 = vsel %vm176, %v172, -inf
        %v178 = vrot.slane %v177, 4
        %v179 = vmax.f32 %v177, %v178
        %v180 = vrot.slane %v179, 2
        %v181 = vmax.f32 %v179, %v180
        %v182 = vrot.slane %v181, 1
        %v183 = vmax.f32 %v181, %v182
        %v184 = vsel %vm176, %v174, -inf
        %v185 = vrot.slane %v184, 4
        %v186 = vmax.f32 %v184, %v185
        %v187 = vrot.slane %v186, 2
        %v188 = vmax.f32 %v186, %v187
        %v189 = vrot.slane %v188, 1
        %v190 = vmax.f32 %v188, %v189
        %v191 = vsel %vm176, %v172, 0.0
        %v192 = vrot.slane %v191, 4
        %v193 = vadd.f32 %v191, %v192
        %v194 = vrot.slane %v193, 2
        %v195 = vadd.f32 %v193, %v194
        %v196 = vrot.slane %v195, 1
        %v197 = vadd.f32 %v195, %v196
        %v198 = vsel %vm176, %v174, 0.0
        %v199 = vrot.slane %v198, 4
        %v200 = vadd.f32 %v198, %v199
        %v201 = vrot.slane %v200, 2
        %v202 = vadd.f32 %v200, %v201
        %v203 = vrot.slane %v202, 1
        %v204 = vadd.f32 %v202, %v203
        %v205 = vmul.f32 %v197, 0.25
        %v206 = vmul.f32 %v204, 0.25
        %vm207 = vcmask 174080
        %208 = vst.msk [vmem:[#allocation2] sm:$0x7] %vm207, 0.0
        %209 = vst.msk [vmem:[#allocation2 + $0x18] sm:$0x7] %vm207, 0.0
        %210 = vst.msk [vmem:[#allocation2 + $0x13] sm:$0x7] %vm207, 0.0
        %211 = vst.msk [vmem:[#allocation2 + $0x2b] sm:$0x7] %vm207, 0.0
        %vm212 = vcmask 23552
        %213 = vst.msk [vmem:[#allocation2] sm:$0xff] %vm212, 0.0
        %214 = vst.msk [vmem:[#allocation2 + $0x8] sm:$0xff] %vm212, 0.0
        %vm215 = vcmask 21504
        %216 = vst.msk [vmem:[#allocation2 + $0x10] sm:$0x3f] %vm215, 0.0
        %217 = vst.msk [vmem:[#allocation2 + $0x18] sm:$0xff] %vm212, 0.0
        %218 = vst.msk [vmem:[#allocation2 + $0x20] sm:$0xff] %vm212, 0.0
        %219 = vst.msk [vmem:[#allocation2 + $0x28] sm:$0x3f] %vm215, 0.0
        %vm220 = vcmask 179352
        %221 = vst.msk [vmem:[#allocation2] sm:$0xff] %vm220, 0.0
        %222 = vst.msk [vmem:[#allocation2 + $0x8] sm:$0xff] %vm220, 0.0
        %vm223 = vcmask 177304
        %224 = vst.msk [vmem:[#allocation2 + $0x10] sm:$0x3f] %vm223, 0.0
        %225 = vst.msk [vmem:[#allocation2 + $0x18] sm:$0xff] %vm220, 0.0
        %226 = vst.msk [vmem:[#allocation2 + $0x20] sm:$0xff] %vm220, 0.0
        %227 = vst.msk [vmem:[#allocation2 + $0x28] sm:$0x3f] %vm223, 0.0
        %229 = vrot.lane.b32.xlu0 %v183, 3
        %v230 = vpop.permute.xlu0 %229
        %vm232 = vcmask 147480
        %233 = vst.msk [vmem:[#allocation2 + $0x3] sm:$0x1] %vm232, %v230
        %235 = vrot.lane.b32.xlu0 %v205, 3
        %v236 = vpop.permute.xlu0 %235
        %s238 = scalar_lea.vmem [#allocation2], 24
        %239 = vst.msk [vmem:[%s238 + $0x3] sm:$0x1] %vm232, %v236
        %240 = vrot.lane.b32.xlu0 %v183, 115
        %v241 = vpop.permute.xlu0 %240
        %243 = vst.msk [vmem:[#allocation2 + $0x4] sm:$0x1] %vm232, %v241
        %244 = vrot.lane.b32.xlu0 %v205, 115
        %v245 = vpop.permute.xlu0 %244
        %247 = vst.msk [vmem:[%s238 + $0x4] sm:$0x1] %vm232, %v245
        %248 = vrot.lane.b32.xlu0 %v183, 99
        %v249 = vpop.permute.xlu0 %248
        %251 = vst.msk [vmem:[#allocation2 + $0x5] sm:$0x1] %vm232, %v249
        %252 = vrot.lane.b32.xlu0 %v205, 99
        %v253 = vpop.permute.xlu0 %252
        %255 = vst.msk [vmem:[%s238 + $0x5] sm:$0x1] %vm232, %v253
        %256 = vrot.lane.b32.xlu0 %v183, 83
        %v257 = vpop.permute.xlu0 %256
        %259 = vst.msk [vmem:[#allocation2 + $0x6] sm:$0x1] %vm232, %v257
        %260 = vrot.lane.b32.xlu0 %v205, 83
        %v261 = vpop.permute.xlu0 %260
        %263 = vst.msk [vmem:[%s238 + $0x6] sm:$0x1] %vm232, %v261
        %264 = vrot.lane.b32.xlu0 %v183, 67
        %v265 = vpop.permute.xlu0 %264
        %267 = vst.msk [vmem:[#allocation2 + $0x7] sm:$0x1] %vm232, %v265
        %268 = vrot.lane.b32.xlu0 %v205, 67
        %v269 = vpop.permute.xlu0 %268
        %271 = vst.msk [vmem:[%s238 + $0x7] sm:$0x1] %vm232, %v269
        %272 = vrot.lane.b32.xlu0 %v183, 51
        %v273 = vpop.permute.xlu0 %272
        %275 = vst.msk [vmem:[#allocation2 + $0x8] sm:$0x1] %vm232, %v273
        %276 = vrot.lane.b32.xlu0 %v205, 51
        %v277 = vpop.permute.xlu0 %276
        %279 = vst.msk [vmem:[%s238 + $0x8] sm:$0x1] %vm232, %v277
        %280 = vrot.lane.b32.xlu0 %v183, 35
        %v281 = vpop.permute.xlu0 %280
        %283 = vst.msk [vmem:[#allocation2 + $0x9] sm:$0x1] %vm232, %v281
        %284 = vrot.lane.b32.xlu0 %v205, 35
        %v285 = vpop.permute.xlu0 %284
        %287 = vst.msk [vmem:[%s238 + $0x9] sm:$0x1] %vm232, %v285
        %288 = vrot.lane.b32.xlu0 %v183, 19
        %v289 = vpop.permute.xlu0 %288
        %291 = vst.msk [vmem:[#allocation2 + $0xa] sm:$0x1] %vm232, %v289
        %292 = vrot.lane.b32.xlu0 %v205, 19
        %v293 = vpop.permute.xlu0 %292
        %295 = vst.msk [vmem:[%s238 + $0xa] sm:$0x1] %vm232, %v293
        %297 = vrot.lane.b32.xlu0 %v190, 3
        %v298 = vpop.permute.xlu0 %297
        %300 = vst.msk [vmem:[#allocation2 + $0xb] sm:$0x1] %vm232, %v298
        %302 = vrot.lane.b32.xlu0 %v206, 3
        %v303 = vpop.permute.xlu0 %302
        %305 = vst.msk [vmem:[%s238 + $0xb] sm:$0x1] %vm232, %v303
        %306 = vrot.lane.b32.xlu0 %v190, 115
        %v307 = vpop.permute.xlu0 %306
        %309 = vst.msk [vmem:[#allocation2 + $0xc] sm:$0x1] %vm232, %v307
        %310 = vrot.lane.b32.xlu0 %v206, 115
        %v311 = vpop.permute.xlu0 %310
        %313 = vst.msk [vmem:[%s238 + $0xc] sm:$0x1] %vm232, %v311
        %314 = vrot.lane.b32.xlu0 %v190, 99
        %v315 = vpop.permute.xlu0 %314
        %317 = vst.msk [vmem:[#allocation2 + $0xd] sm:$0x1] %vm232, %v315
        %318 = vrot.lane.b32.xlu0 %v206, 99
        %v319 = vpop.permute.xlu0 %318
        %321 = vst.msk [vmem:[%s238 + $0xd] sm:$0x1] %vm232, %v319
        %322 = vrot.lane.b32.xlu0 %v190, 83
        %v323 = vpop.permute.xlu0 %322
        %325 = vst.msk [vmem:[#allocation2 + $0xe] sm:$0x1] %vm232, %v323
        %326 = vrot.lane.b32.xlu0 %v206, 83
        %v327 = vpop.permute.xlu0 %326
        %329 = vst.msk [vmem:[%s238 + $0xe] sm:$0x1] %vm232, %v327
        %330 = vrot.lane.b32.xlu0 %v190, 67
        %v331 = vpop.permute.xlu0 %330
        %333 = vst.msk [vmem:[#allocation2 + $0xf] sm:$0x1] %vm232, %v331
        %334 = vrot.lane.b32.xlu0 %v206, 67
        %v335 = vpop.permute.xlu0 %334
        %337 = vst.msk [vmem:[%s238 + $0xf] sm:$0x1] %vm232, %v335
        %338 = vrot.lane.b32.xlu0 %v190, 51
        %v339 = vpop.permute.xlu0 %338
        %341 = vst.msk [vmem:[#allocation2 + $0x10] sm:$0x1] %vm232, %v339
        %342 = vrot.lane.b32.xlu0 %v206, 51
        %v343 = vpop.permute.xlu0 %342
        %345 = vst.msk [vmem:[%s238 + $0x10] sm:$0x1] %vm232, %v343
        %346 = vrot.lane.b32.xlu0 %v190, 35
        %v347 = vpop.permute.xlu0 %346
        %349 = vst.msk [vmem:[#allocation2 + $0x11] sm:$0x1] %vm232, %v347
        %350 = vrot.lane.b32.xlu0 %v206, 35
        %v351 = vpop.permute.xlu0 %350
        %353 = vst.msk [vmem:[%s238 + $0x11] sm:$0x1] %vm232, %v351
        %354 = vrot.lane.b32.xlu0 %v190, 19
        %v355 = vpop.permute.xlu0 %354
        %357 = vst.msk [vmem:[#allocation2 + $0x12] sm:$0x1] %vm232, %v355
        %358 = vrot.lane.b32.xlu0 %v206, 19
        %v359 = vpop.permute.xlu0 %358
        %361 = vst.msk [vmem:[%s238 + $0x12] sm:$0x1] %vm232, %v359
        %v362 = vld [vmem:[#allocation2] sm:$0xff]
        %v363 = vld [vmem:[#allocation2 + $0x8] sm:$0xff]
        %s364 = sld [smem:[#allocation8]]
        %v365 = vstv %s364
        %v366 = vmul.f32 %v365, %v362
        %v367 = vmul.f32 %v365, %v363
        %v368 = vadd.f32 %v366, 0.0
        %v369 = vadd.f32 %v367, 0.0
        %s370 = sld [smem:[#allocation8 + $0x1]]
        %v371 = vstv %s370
        %v372 = vmul.f32 %v371, %v362
        %v373 = vmul.f32 %v371, %v363
        %v374 = vadd.f32 %v372, 0.0
        %v375 = vadd.f32 %v373, 0.0
        %s376 = sld [smem:[#allocation8 + $0x2]]
        %v377 = vstv %s376
        %v378 = vmul.f32 %v377, %v362
        %v379 = vmul.f32 %v377, %v363
        %v380 = vadd.f32 %v378, 0.0
        %v381 = vadd.f32 %v379, 0.0
        %s382 = sld [smem:[#allocation8 + $0x3]]
        %v383 = vstv %s382
        %v384 = vmul.f32 %v383, %v362
        %v385 = vmul.f32 %v383, %v363
        %v386 = vadd.f32 %v384, 0.0
        %v387 = vadd.f32 %v385, 0.0
        %s388 = sld [smem:[#allocation8 + $0x4]]
        %v389 = vstv %s388
        %v390 = vmul.f32 %v389, %v362
        %v391 = vmul.f32 %v389, %v363
        %394 = vrot.lane.b32.xlu0 %v390, 124
        %v395 = vpop.permute.xlu0 %394
        %396 = vrot.lane.b32.xlu0 %v391, 124
        %v397 = vpop.permute.xlu0 %396
        %v400 = vadd.f32 %v368, %v395
        %v401 = vadd.f32 %v369, %v397
        %s402 = sld [smem:[#allocation8 + $0x5]]
        %v403 = vstv %s402
        %v404 = vmul.f32 %v403, %v362
        %v405 = vmul.f32 %v403, %v363
        %408 = vrot.lane.b32.xlu0 %v404, 124
        %v409 = vpop.permute.xlu0 %408
        %410 = vrot.lane.b32.xlu0 %v405, 124
        %v411 = vpop.permute.xlu0 %410
        %v414 = vadd.f32 %v374, %v409
        %v415 = vadd.f32 %v375, %v411
        %s416 = sld [smem:[#allocation8 + $0x6]]
        %v417 = vstv %s416
        %v418 = vmul.f32 %v417, %v362
        %v419 = vmul.f32 %v417, %v363
        %422 = vrot.lane.b32.xlu0 %v418, 124
        %v423 = vpop.permute.xlu0 %422
        %424 = vrot.lane.b32.xlu0 %v419, 124
        %v425 = vpop.permute.xlu0 %424
        %v428 = vadd.f32 %v380, %v423
        %v429 = vadd.f32 %v381, %v425
        %v430 = vld [vmem:[#allocation2 + $0x1] sm:$0xff]
        %v431 = vld [vmem:[#allocation2 + $0x9] sm:$0xff]
        %s432 = sld [smem:[#allocation8 + $0x7]]
        %v433 = vstv %s432
        %v434 = vmul.f32 %v433, %v430
        %v435 = vmul.f32 %v433, %v431
        %438 = vrot.lane.b32.xlu0 %v434, 3
        %v439 = vpop.permute.xlu0 %438
        %440 = vrot.lane.b32.xlu0 %v435, 3
        %v441 = vpop.permute.xlu0 %440
        %v444 = vadd.f32 %v386, %v439
        %v445 = vadd.f32 %v387, %v441
        %s446 = sld [smem:[#allocation8 + $0x8]]
        %v447 = vstv %s446
        %v448 = vmul.f32 %v447, %v430
        %v449 = vmul.f32 %v447, %v431
        %452 = vrot.lane.b32.xlu0 %v448, 127
        %v453 = vpop.permute.xlu0 %452
        %454 = vrot.lane.b32.xlu0 %v449, 127
        %v455 = vpop.permute.xlu0 %454
        %v458 = vadd.f32 %v400, %v453
        %v459 = vadd.f32 %v401, %v455
        %s460 = sld [smem:[#allocation8 + $0x9]]
        %v461 = vstv %s460
        %v462 = vmul.f32 %v461, %v430
        %v463 = vmul.f32 %v461, %v431
        %466 = vrot.lane.b32.xlu0 %v462, 127
        %v467 = vpop.permute.xlu0 %466
        %468 = vrot.lane.b32.xlu0 %v463, 127
        %v469 = vpop.permute.xlu0 %468
        %v472 = vadd.f32 %v414, %v467
        %v473 = vadd.f32 %v415, %v469
        %s474 = sld [smem:[#allocation8 + $0xa]]
        %v475 = vstv %s474
        %v476 = vmul.f32 %v475, %v430
        %v477 = vmul.f32 %v475, %v431
        %480 = vrot.lane.b32.xlu0 %v476, 127
        %v481 = vpop.permute.xlu0 %480
        %482 = vrot.lane.b32.xlu0 %v477, 127
        %v483 = vpop.permute.xlu0 %482
        %v486 = vadd.f32 %v428, %v481
        %v487 = vadd.f32 %v429, %v483
        %s488 = sld [smem:[#allocation8 + $0xb]]
        %v489 = vstv %s488
        %v490 = vmul.f32 %v489, %v430
        %v491 = vmul.f32 %v489, %v431
        %494 = vrot.lane.b32.xlu0 %v490, 127
        %v495 = vpop.permute.xlu0 %494
        %496 = vrot.lane.b32.xlu0 %v491, 127
        %v497 = vpop.permute.xlu0 %496
        %v500 = vadd.f32 %v444, %v495
        %v501 = vadd.f32 %v445, %v497
        %s502 = sld [smem:[#allocation8 + $0xc]]
        %v503 = vstv %s502
        %v504 = vmul.f32 %v503, %v430
        %v505 = vmul.f32 %v503, %v431
        %508 = vrot.lane.b32.xlu0 %v504, 123
        %v509 = vpop.permute.xlu0 %508
        %510 = vrot.lane.b32.xlu0 %v505, 123
        %v511 = vpop.permute.xlu0 %510
        %v514 = vadd.f32 %v458, %v509
        %v515 = vadd.f32 %v459, %v511
        %s516 = sld [smem:[#allocation8 + $0xd]]
        %v517 = vstv %s516
        %v518 = vmul.f32 %v517, %v430
        %v519 = vmul.f32 %v517, %v431
        %522 = vrot.lane.b32.xlu0 %v518, 123
        %v523 = vpop.permute.xlu0 %522
        %524 = vrot.lane.b32.xlu0 %v519, 123
        %v525 = vpop.permute.xlu0 %524
        %v528 = vadd.f32 %v472, %v523
        %v529 = vadd.f32 %v473, %v525
        %v530 = vld [vmem:[#allocation2 + $0x2] sm:$0xff]
        %v531 = vld [vmem:[#allocation2 + $0xa] sm:$0xff]
        %s532 = sld [smem:[#allocation8 + $0xe]]
        %v533 = vstv %s532
        %v534 = vmul.f32 %v533, %v530
        %v535 = vmul.f32 %v533, %v531
        %538 = vrot.lane.b32.xlu0 %v534, 2
        %v539 = vpop.permute.xlu0 %538
        %540 = vrot.lane.b32.xlu0 %v535, 2
        %v541 = vpop.permute.xlu0 %540
        %v544 = vadd.f32 %v486, %v539
        %v545 = vadd.f32 %v487, %v541
        %s546 = sld [smem:[#allocation8 + $0xf]]
        %v547 = vstv %s546
        %v548 = vmul.f32 %v547, %v530
        %v549 = vmul.f32 %v547, %v531
        %552 = vrot.lane.b32.xlu0 %v548, 2
        %v553 = vpop.permute.xlu0 %552
        %554 = vrot.lane.b32.xlu0 %v549, 2
        %v555 = vpop.permute.xlu0 %554
        %v558 = vadd.f32 %v500, %v553
        %v559 = vadd.f32 %v501, %v555
        %s560 = sld [smem:[#allocation8 + $0x10]]
        %v561 = vstv %s560
        %v562 = vmul.f32 %v561, %v530
        %v563 = vmul.f32 %v561, %v531
        %566 = vrot.lane.b32.xlu0 %v562, 126
        %v567 = vpop.permute.xlu0 %566
        %568 = vrot.lane.b32.xlu0 %v563, 126
        %v569 = vpop.permute.xlu0 %568
        %v572 = vadd.f32 %v514, %v567
        %v573 = vadd.f32 %v515, %v569
        %s574 = sld [smem:[#allocation8 + $0x11]]
        %v575 = vstv %s574
        %v576 = vmul.f32 %v575, %v530
        %v577 = vmul.f32 %v575, %v531
        %580 = vrot.lane.b32.xlu0 %v576, 126
        %v581 = vpop.permute.xlu0 %580
        %582 = vrot.lane.b32.xlu0 %v577, 126
        %v583 = vpop.permute.xlu0 %582
        %v586 = vadd.f32 %v528, %v581
        %v587 = vadd.f32 %v529, %v583
        %s588 = sld [smem:[#allocation8 + $0x12]]
        %v589 = vstv %s588
        %v590 = vmul.f32 %v589, %v530
        %v591 = vmul.f32 %v589, %v531
        %594 = vrot.lane.b32.xlu0 %v590, 126
        %v595 = vpop.permute.xlu0 %594
        %596 = vrot.lane.b32.xlu0 %v591, 126
        %v597 = vpop.permute.xlu0 %596
        %v600 = vadd.f32 %v544, %v595
        %v601 = vadd.f32 %v545, %v597
        %s602 = sld [smem:[#allocation8 + $0x13]]
        %v603 = vstv %s602
        %v604 = vmul.f32 %v603, %v530
        %v605 = vmul.f32 %v603, %v531
        %608 = vrot.lane.b32.xlu0 %v604, 126
        %v609 = vpop.permute.xlu0 %608
        %610 = vrot.lane.b32.xlu0 %v605, 126
        %v611 = vpop.permute.xlu0 %610
        %v614 = vadd.f32 %v558, %v609
        %v615 = vadd.f32 %v559, %v611
        %s616 = sld [smem:[#allocation8 + $0x14]]
        %v617 = vstv %s616
        %v618 = vmul.f32 %v617, %v530
        %v619 = vmul.f32 %v617, %v531
        %622 = vrot.lane.b32.xlu0 %v618, 122
        %v623 = vpop.permute.xlu0 %622
        %624 = vrot.lane.b32.xlu0 %v619, 122
        %v625 = vpop.permute.xlu0 %624
        %v628 = vadd.f32 %v572, %v623
        %v629 = vadd.f32 %v573, %v625
        %v630 = vld [vmem:[#allocation2 + $0x3] sm:$0xff]
        %v631 = vld [vmem:[#allocation2 + $0xb] sm:$0xff]
        %s632 = sld [smem:[#allocation8 + $0x15]]
        %v633 = vstv %s632
        %v634 = vmul.f32 %v633, %v630
        %v635 = vmul.f32 %v633, %v631
        %638 = vrot.lane.b32.xlu0 %v634, 1
        %v639 = vpop.permute.xlu0 %638
        %640 = vrot.lane.b32.xlu0 %v635, 1
        %v641 = vpop.permute.xlu0 %640
        %v644 = vadd.f32 %v586, %v639
        %v645 = vadd.f32 %v587, %v641
        %s646 = sld [smem:[#allocation8 + $0x16]]
        %v647 = vstv %s646
        %v648 = vmul.f32 %v647, %v630
        %v649 = vmul.f32 %v647, %v631
        %652 = vrot.lane.b32.xlu0 %v648, 1
        %v653 = vpop.permute.xlu0 %652
        %654 = vrot.lane.b32.xlu0 %v649, 1
        %v655 = vpop.permute.xlu0 %654
        %v658 = vadd.f32 %v600, %v653
        %v659 = vadd.f32 %v601, %v655
        %s660 = sld [smem:[#allocation8 + $0x17]]
        %v661 = vstv %s660
        %v662 = vmul.f32 %v661, %v630
        %v663 = vmul.f32 %v661, %v631
        %666 = vrot.lane.b32.xlu0 %v662, 1
        %v667 = vpop.permute.xlu0 %666
        %668 = vrot.lane.b32.xlu0 %v663, 1
        %v669 = vpop.permute.xlu0 %668
        %v672 = vadd.f32 %v614, %v667
        %v673 = vadd.f32 %v615, %v669
        %s674 = sld [smem:[#allocation8 + $0x18]]
        %v675 = vstv %s674
        %v676 = vmul.f32 %v675, %v630
        %v677 = vmul.f32 %v675, %v631
        %680 = vrot.lane.b32.xlu0 %v676, 125
        %v681 = vpop.permute.xlu0 %680
        %682 = vrot.lane.b32.xlu0 %v677, 125
        %v683 = vpop.permute.xlu0 %682
        %v686 = vadd.f32 %v628, %v681
        %v687 = vadd.f32 %v629, %v683
        %s688 = sld [smem:[#allocation8 + $0x19]]
        %v689 = vstv %s688
        %v690 = vmul.f32 %v689, %v630
        %v691 = vmul.f32 %v689, %v631
        %694 = vrot.lane.b32.xlu0 %v690, 125
        %v695 = vpop.permute.xlu0 %694
        %696 = vrot.lane.b32.xlu0 %v691, 125
        %v697 = vpop.permute.xlu0 %696
        %v700 = vadd.f32 %v644, %v695
        %v701 = vadd.f32 %v645, %v697
        %s702 = sld [smem:[#allocation8 + $0x1a]]
        %v703 = vstv %s702
        %v704 = vmul.f32 %v703, %v630
        %v705 = vmul.f32 %v703, %v631
        %708 = vrot.lane.b32.xlu0 %v704, 125
        %v709 = vpop.permute.xlu0 %708
        %710 = vrot.lane.b32.xlu0 %v705, 125
        %v711 = vpop.permute.xlu0 %710
        %v714 = vadd.f32 %v658, %v709
        %v715 = vadd.f32 %v659, %v711
        %s716 = sld [smem:[#allocation8 + $0x1b]]
        %v717 = vstv %s716
        %v718 = vmul.f32 %v717, %v630
        %v719 = vmul.f32 %v717, %v631
        %722 = vrot.lane.b32.xlu0 %v718, 125
        %v723 = vpop.permute.xlu0 %722
        %724 = vrot.lane.b32.xlu0 %v719, 125
        %v725 = vpop.permute.xlu0 %724
        %v728 = vadd.f32 %v672, %v723
        %v729 = vadd.f32 %v673, %v725
        %v730 = vld [vmem:[#allocation2 + $0x4] sm:$0xff]
        %v731 = vld [vmem:[#allocation2 + $0xc] sm:$0xff]
        %s732 = sld [smem:[#allocation8 + $0x1c]]
        %v733 = vstv %s732
        %v734 = vmul.f32 %v733, %v730
        %v735 = vmul.f32 %v733, %v731
        %v736 = vadd.f32 %v686, %v734
        %v737 = vadd.f32 %v687, %v735
        %s738 = sld [smem:[#allocation8 + $0x1d]]
        %v739 = vstv %s738
        %v740 = vmul.f32 %v739, %v730
        %v741 = vmul.f32 %v739, %v731
        %v742 = vadd.f32 %v700, %v740
        %v743 = vadd.f32 %v701, %v741
        %s744 = sld [smem:[#allocation8 + $0x1e]]
        %v745 = vstv %s744
        %v746 = vmul.f32 %v745, %v730
        %v747 = vmul.f32 %v745, %v731
        %v748 = vadd.f32 %v714, %v746
        %v749 = vadd.f32 %v715, %v747
        %s750 = sld [smem:[#allocation8 + $0x1f]]
        %v751 = vstv %s750
        %v752 = vmul.f32 %v751, %v730
        %v753 = vmul.f32 %v751, %v731
        %v754 = vadd.f32 %v728, %v752
        %v755 = vadd.f32 %v729, %v753
        %s756 = sld [smem:[#allocation8 + $0x20]]
        %v757 = vstv %s756
        %v758 = vmul.f32 %v757, %v730
        %v759 = vmul.f32 %v757, %v731
        %762 = vrot.lane.b32.xlu0 %v758, 124
        %v763 = vpop.permute.xlu0 %762
        %764 = vrot.lane.b32.xlu0 %v759, 124
        %v765 = vpop.permute.xlu0 %764
        %v768 = vadd.f32 %v736, %v763
        %v769 = vadd.f32 %v737, %v765
        %s770 = sld [smem:[#allocation8 + $0x21]]
        %v771 = vstv %s770
        %v772 = vmul.f32 %v771, %v730
        %v773 = vmul.f32 %v771, %v731
        %776 = vrot.lane.b32.xlu0 %v772, 124
        %v777 = vpop.permute.xlu0 %776
        %778 = vrot.lane.b32.xlu0 %v773, 124
        %v779 = vpop.permute.xlu0 %778
        %v782 = vadd.f32 %v742, %v777
        %v783 = vadd.f32 %v743, %v779
        %s784 = sld [smem:[#allocation8 + $0x22]]
        %v785 = vstv %s784
        %v786 = vmul.f32 %v785, %v730
        %v787 = vmul.f32 %v785, %v731
        %790 = vrot.lane.b32.xlu0 %v786, 124
        %v791 = vpop.permute.xlu0 %790
        %792 = vrot.lane.b32.xlu0 %v787, 124
        %v793 = vpop.permute.xlu0 %792
        %v796 = vadd.f32 %v748, %v791
        %v797 = vadd.f32 %v749, %v793
        %v798 = vld [vmem:[#allocation2 + $0x5] sm:$0xff]
        %v799 = vld [vmem:[#allocation2 + $0xd] sm:$0xff]
        %s800 = sld [smem:[#allocation8 + $0x23]]
        %v801 = vstv %s800
        %v802 = vmul.f32 %v801, %v798
        %v803 = vmul.f32 %v801, %v799
        %806 = vrot.lane.b32.xlu0 %v802, 3
        %v807 = vpop.permute.xlu0 %806
        %808 = vrot.lane.b32.xlu0 %v803, 3
        %v809 = vpop.permute.xlu0 %808
        %v812 = vadd.f32 %v754, %v807
        %v813 = vadd.f32 %v755, %v809
        %s814 = sld [smem:[#allocation8 + $0x24]]
        %v815 = vstv %s814
        %v816 = vmul.f32 %v815, %v798
        %v817 = vmul.f32 %v815, %v799
        %820 = vrot.lane.b32.xlu0 %v816, 127
        %v821 = vpop.permute.xlu0 %820
        %822 = vrot.lane.b32.xlu0 %v817, 127
        %v823 = vpop.permute.xlu0 %822
        %v826 = vadd.f32 %v768, %v821
        %v827 = vadd.f32 %v769, %v823
        %s828 = sld [smem:[#allocation8 + $0x25]]
        %v829 = vstv %s828
        %v830 = vmul.f32 %v829, %v798
        %v831 = vmul.f32 %v829, %v799
        %834 = vrot.lane.b32.xlu0 %v830, 127
        %v835 = vpop.permute.xlu0 %834
        %836 = vrot.lane.b32.xlu0 %v831, 127
        %v837 = vpop.permute.xlu0 %836
        %v840 = vadd.f32 %v782, %v835
        %v841 = vadd.f32 %v783, %v837
        %s842 = sld [smem:[#allocation8 + $0x26]]
        %v843 = vstv %s842
        %v844 = vmul.f32 %v843, %v798
        %v845 = vmul.f32 %v843, %v799
        %848 = vrot.lane.b32.xlu0 %v844, 127
        %v849 = vpop.permute.xlu0 %848
        %850 = vrot.lane.b32.xlu0 %v845, 127
        %v851 = vpop.permute.xlu0 %850
        %v854 = vadd.f32 %v796, %v849
        %v855 = vadd.f32 %v797, %v851
        %s856 = sld [smem:[#allocation8 + $0x27]]
        %v857 = vstv %s856
        %v858 = vmul.f32 %v857, %v798
        %v859 = vmul.f32 %v857, %v799
        %862 = vrot.lane.b32.xlu0 %v858, 127
        %v863 = vpop.permute.xlu0 %862
        %864 = vrot.lane.b32.xlu0 %v859, 127
        %v865 = vpop.permute.xlu0 %864
        %v868 = vadd.f32 %v812, %v863
        %v869 = vadd.f32 %v813, %v865
        %s870 = sld [smem:[#allocation8 + $0x28]]
        %v871 = vstv %s870
        %v872 = vmul.f32 %v871, %v798
        %v873 = vmul.f32 %v871, %v799
        %876 = vrot.lane.b32.xlu0 %v872, 123
        %v877 = vpop.permute.xlu0 %876
        %878 = vrot.lane.b32.xlu0 %v873, 123
        %v879 = vpop.permute.xlu0 %878
        %v882 = vadd.f32 %v826, %v877
        %v883 = vadd.f32 %v827, %v879
        %s884 = sld [smem:[#allocation8 + $0x29]]
        %v885 = vstv %s884
        %v886 = vmul.f32 %v885, %v798
        %v887 = vmul.f32 %v885, %v799
        %890 = vrot.lane.b32.xlu0 %v886, 123
        %v891 = vpop.permute.xlu0 %890
        %892 = vrot.lane.b32.xlu0 %v887, 123
        %v893 = vpop.permute.xlu0 %892
        %v896 = vadd.f32 %v840, %v891
        %v897 = vadd.f32 %v841, %v893
        %v898 = vld [vmem:[#allocation2 + $0x6] sm:$0xff]
        %v899 = vld [vmem:[#allocation2 + $0xe] sm:$0xff]
        %s900 = sld [smem:[#allocation8 + $0x2a]]
        %v901 = vstv %s900
        %v902 = vmul.f32 %v901, %v898
        %v903 = vmul.f32 %v901, %v899
        %906 = vrot.lane.b32.xlu0 %v902, 2
        %v907 = vpop.permute.xlu0 %906
        %908 = vrot.lane.b32.xlu0 %v903, 2
        %v909 = vpop.permute.xlu0 %908
        %v912 = vadd.f32 %v854, %v907
        %v913 = vadd.f32 %v855, %v909
        %s914 = sld [smem:[#allocation8 + $0x2b]]
        %v915 = vstv %s914
        %v916 = vmul.f32 %v915, %v898
        %v917 = vmul.f32 %v915, %v899
        %920 = vrot.lane.b32.xlu0 %v916, 2
        %v921 = vpop.permute.xlu0 %920
        %922 = vrot.lane.b32.xlu0 %v917, 2
        %v923 = vpop.permute.xlu0 %922
        %v926 = vadd.f32 %v868, %v921
        %v927 = vadd.f32 %v869, %v923
        %s928 = sld [smem:[#allocation8 + $0x2c]]
        %v929 = vstv %s928
        %v930 = vmul.f32 %v929, %v898
        %v931 = vmul.f32 %v929, %v899
        %934 = vrot.lane.b32.xlu0 %v930, 126
        %v935 = vpop.permute.xlu0 %934
        %936 = vrot.lane.b32.xlu0 %v931, 126
        %v937 = vpop.permute.xlu0 %936
        %v940 = vadd.f32 %v882, %v935
        %v941 = vadd.f32 %v883, %v937
        %s942 = sld [smem:[#allocation8 + $0x2d]]
        %v943 = vstv %s942
        %v944 = vmul.f32 %v943, %v898
        %v945 = vmul.f32 %v943, %v899
        %948 = vrot.lane.b32.xlu0 %v944, 126
        %v949 = vpop.permute.xlu0 %948
        %950 = vrot.lane.b32.xlu0 %v945, 126
        %v951 = vpop.permute.xlu0 %950
        %v954 = vadd.f32 %v896, %v949
        %v955 = vadd.f32 %v897, %v951
        %s956 = sld [smem:[#allocation8 + $0x2e]]
        %v957 = vstv %s956
        %v958 = vmul.f32 %v957, %v898
        %v959 = vmul.f32 %v957, %v899
        %962 = vrot.lane.b32.xlu0 %v958, 126
        %v963 = vpop.permute.xlu0 %962
        %964 = vrot.lane.b32.xlu0 %v959, 126
        %v965 = vpop.permute.xlu0 %964
        %v968 = vadd.f32 %v912, %v963
        %v969 = vadd.f32 %v913, %v965
        %s970 = sld [smem:[#allocation8 + $0x2f]]
        %v971 = vstv %s970
        %v972 = vmul.f32 %v971, %v898
        %v973 = vmul.f32 %v971, %v899
        %976 = vrot.lane.b32.xlu0 %v972, 126
        %v977 = vpop.permute.xlu0 %976
        %978 = vrot.lane.b32.xlu0 %v973, 126
        %v979 = vpop.permute.xlu0 %978
        %v982 = vadd.f32 %v926, %v977
        %v983 = vadd.f32 %v927, %v979
        %s984 = sld [smem:[#allocation8 + $0x30]]
        %v985 = vstv %s984
        %v986 = vmul.f32 %v985, %v898
        %v987 = vmul.f32 %v985, %v899
        %990 = vrot.lane.b32.xlu0 %v986, 122
        %v991 = vpop.permute.xlu0 %990
        %992 = vrot.lane.b32.xlu0 %v987, 122
        %v993 = vpop.permute.xlu0 %992
        %v996 = vadd.f32 %v940, %v991
        %v997 = vadd.f32 %v941, %v993
        %v998 = vld [vmem:[%s238] sm:$0xff]
        %v999 = vld [vmem:[%s238 + $0x8] sm:$0xff]
        %s1000 = sld [smem:[#allocation8 + $0x31]]
        %v1001 = vstv %s1000
        %v1002 = vmul.f32 %v1001, %v998
        %v1003 = vmul.f32 %v1001, %v999
        %1006 = vrot.lane.b32.xlu0 %v1002, 1
        %v1007 = vpop.permute.xlu0 %1006
        %1008 = vrot.lane.b32.xlu0 %v1003, 1
        %v1009 = vpop.permute.xlu0 %1008
        %v1012 = vadd.f32 %v954, %v1007
        %v1013 = vadd.f32 %v955, %v1009
        %s1014 = sld [smem:[#allocation8 + $0x32]]
        %v1015 = vstv %s1014
        %v1016 = vmul.f32 %v1015, %v998
        %v1017 = vmul.f32 %v1015, %v999
        %1020 = vrot.lane.b32.xlu0 %v1016, 1
        %v1021 = vpop.permute.xlu0 %1020
        %1022 = vrot.lane.b32.xlu0 %v1017, 1
        %v1023 = vpop.permute.xlu0 %1022
        %v1026 = vadd.f32 %v968, %v1021
        %v1027 = vadd.f32 %v969, %v1023
        %s1028 = sld [smem:[#allocation8 + $0x33]]
        %v1029 = vstv %s1028
        %v1030 = vmul.f32 %v1029, %v998
        %v1031 = vmul.f32 %v1029, %v999
        %1034 = vrot.lane.b32.xlu0 %v1030, 1
        %v1035 = vpop.permute.xlu0 %1034
        %1036 = vrot.lane.b32.xlu0 %v1031, 1
        %v1037 = vpop.permute.xlu0 %1036
        %v1040 = vadd.f32 %v982, %v1035
        %v1041 = vadd.f32 %v983, %v1037
        %s1042 = sld [smem:[#allocation8 + $0x34]]
        %v1043 = vstv %s1042
        %v1044 = vmul.f32 %v1043, %v998
        %v1045 = vmul.f32 %v1043, %v999
        %1048 = vrot.lane.b32.xlu0 %v1044, 125
        %v1049 = vpop.permute.xlu0 %1048
        %1050 = vrot.lane.b32.xlu0 %v1045, 125
        %v1051 = vpop.permute.xlu0 %1050
        %v1054 = vadd.f32 %v996, %v1049
        %v1055 = vadd.f32 %v997, %v1051
        %s1056 = sld [smem:[#allocation8 + $0x35]]
        %v1057 = vstv %s1056
        %v1058 = vmul.f32 %v1057, %v998
        %v1059 = vmul.f32 %v1057, %v999
        %1062 = vrot.lane.b32.xlu0 %v1058, 125
        %v1063 = vpop.permute.xlu0 %1062
        %1064 = vrot.lane.b32.xlu0 %v1059, 125
        %v1065 = vpop.permute.xlu0 %1064
        %v1068 = vadd.f32 %v1012, %v1063
        %v1069 = vadd.f32 %v1013, %v1065
        %s1070 = sld [smem:[#allocation8 + $0x36]]
        %v1071 = vstv %s1070
        %v1072 = vmul.f32 %v1071, %v998
        %v1073 = vmul.f32 %v1071, %v999
        %1076 = vrot.lane.b32.xlu0 %v1072, 125
        %v1077 = vpop.permute.xlu0 %1076
        %1078 = vrot.lane.b32.xlu0 %v1073, 125
        %v1079 = vpop.permute.xlu0 %1078
        %v1082 = vadd.f32 %v1026, %v1077
        %v1083 = vadd.f32 %v1027, %v1079
        %s1084 = sld [smem:[#allocation8 + $0x37]]
        %v1085 = vstv %s1084
        %v1086 = vmul.f32 %v1085, %v998
        %v1087 = vmul.f32 %v1085, %v999
        %1090 = vrot.lane.b32.xlu0 %v1086, 125
        %v1091 = vpop.permute.xlu0 %1090
        %1092 = vrot.lane.b32.xlu0 %v1087, 125
        %v1093 = vpop.permute.xlu0 %1092
        %v1096 = vadd.f32 %v1040, %v1091
        %v1097 = vadd.f32 %v1041, %v1093
        %v1098 = vld [vmem:[%s238 + $0x1] sm:$0xff]
        %v1099 = vld [vmem:[%s238 + $0x9] sm:$0xff]
        %s1100 = sld [smem:[#allocation8 + $0x38]]
        %v1101 = vstv %s1100
        %v1102 = vmul.f32 %v1101, %v1098
        %v1103 = vmul.f32 %v1101, %v1099
        %v1104 = vadd.f32 %v1054, %v1102
        %v1105 = vadd.f32 %v1055, %v1103
        %s1106 = sld [smem:[#allocation8 + $0x39]]
        %v1107 = vstv %s1106
        %v1108 = vmul.f32 %v1107, %v1098
        %v1109 = vmul.f32 %v1107, %v1099
        %v1110 = vadd.f32 %v1068, %v1108
        %v1111 = vadd.f32 %v1069, %v1109
        %s1112 = sld [smem:[#allocation8 + $0x3a]]
        %v1113 = vstv %s1112
        %v1114 = vmul.f32 %v1113, %v1098
        %v1115 = vmul.f32 %v1113, %v1099
        %v1116 = vadd.f32 %v1082, %v1114
        %v1117 = vadd.f32 %v1083, %v1115
        %s1118 = sld [smem:[#allocation8 + $0x3b]]
        %v1119 = vstv %s1118
        %v1120 = vmul.f32 %v1119, %v1098
        %v1121 = vmul.f32 %v1119, %v1099
        %v1122 = vadd.f32 %v1096, %v1120
        %v1123 = vadd.f32 %v1097, %v1121
        %s1124 = sld [smem:[#allocation8 + $0x3c]]
        %v1125 = vstv %s1124
        %v1126 = vmul.f32 %v1125, %v1098
        %v1127 = vmul.f32 %v1125, %v1099
        %1130 = vrot.lane.b32.xlu0 %v1126, 124
        %v1131 = vpop.permute.xlu0 %1130
        %1132 = vrot.lane.b32.xlu0 %v1127, 124
        %v1133 = vpop.permute.xlu0 %1132
        %v1136 = vadd.f32 %v1104, %v1131
        %v1137 = vadd.f32 %v1105, %v1133
        %s1138 = sld [smem:[#allocation8 + $0x3d]]
        %v1139 = vstv %s1138
        %v1140 = vmul.f32 %v1139, %v1098
        %v1141 = vmul.f32 %v1139, %v1099
        %1144 = vrot.lane.b32.xlu0 %v1140, 124
        %v1145 = vpop.permute.xlu0 %1144
        %1146 = vrot.lane.b32.xlu0 %v1141, 124
        %v1147 = vpop.permute.xlu0 %1146
        %v1150 = vadd.f32 %v1110, %v1145
        %v1151 = vadd.f32 %v1111, %v1147
        %s1152 = sld [smem:[#allocation8 + $0x3e]]
        %v1153 = vstv %s1152
        %v1154 = vmul.f32 %v1153, %v1098
        %v1155 = vmul.f32 %v1153, %v1099
        %1158 = vrot.lane.b32.xlu0 %v1154, 124
        %v1159 = vpop.permute.xlu0 %1158
        %1160 = vrot.lane.b32.xlu0 %v1155, 124
        %v1161 = vpop.permute.xlu0 %1160
        %v1164 = vadd.f32 %v1116, %v1159
        %v1165 = vadd.f32 %v1117, %v1161
        %v1166 = vld [vmem:[%s238 + $0x2] sm:$0xff]
        %v1167 = vld [vmem:[%s238 + $0xa] sm:$0xff]
        %s1168 = sld [smem:[#allocation8 + $0x3f]]
        %v1169 = vstv %s1168
        %v1170 = vmul.f32 %v1169, %v1166
        %v1171 = vmul.f32 %v1169, %v1167
        %1174 = vrot.lane.b32.xlu0 %v1170, 3
        %v1175 = vpop.permute.xlu0 %1174
        %1176 = vrot.lane.b32.xlu0 %v1171, 3
        %v1177 = vpop.permute.xlu0 %1176
        %v1180 = vadd.f32 %v1122, %v1175
        %v1181 = vadd.f32 %v1123, %v1177
        %s1182 = sld [smem:[#allocation8 + $0x40]]
        %v1183 = vstv %s1182
        %v1184 = vmul.f32 %v1183, %v1166
        %v1185 = vmul.f32 %v1183, %v1167
        %1188 = vrot.lane.b32.xlu0 %v1184, 127
        %v1189 = vpop.permute.xlu0 %1188
        %1190 = vrot.lane.b32.xlu0 %v1185, 127
        %v1191 = vpop.permute.xlu0 %1190
        %v1194 = vadd.f32 %v1136, %v1189
        %v1195 = vadd.f32 %v1137, %v1191
        %s1196 = sld [smem:[#allocation8 + $0x41]]
        %v1197 = vstv %s1196
        %v1198 = vmul.f32 %v1197, %v1166
        %v1199 = vmul.f32 %v1197, %v1167
        %1202 = vrot.lane.b32.xlu0 %v1198, 127
        %v1203 = vpop.permute.xlu0 %1202
        %1204 = vrot.lane.b32.xlu0 %v1199, 127
        %v1205 = vpop.permute.xlu0 %1204
        %v1208 = vadd.f32 %v1150, %v1203
        %v1209 = vadd.f32 %v1151, %v1205
        %s1210 = sld [smem:[#allocation8 + $0x42]]
        %v1211 = vstv %s1210
        %v1212 = vmul.f32 %v1211, %v1166
        %v1213 = vmul.f32 %v1211, %v1167
        %1216 = vrot.lane.b32.xlu0 %v1212, 127
        %v1217 = vpop.permute.xlu0 %1216
        %1218 = vrot.lane.b32.xlu0 %v1213, 127
        %v1219 = vpop.permute.xlu0 %1218
        %v1222 = vadd.f32 %v1164, %v1217
        %v1223 = vadd.f32 %v1165, %v1219
        %s1224 = sld [smem:[#allocation8 + $0x43]]
        %v1225 = vstv %s1224
        %v1226 = vmul.f32 %v1225, %v1166
        %v1227 = vmul.f32 %v1225, %v1167
        %1230 = vrot.lane.b32.xlu0 %v1226, 127
        %v1231 = vpop.permute.xlu0 %1230
        %1232 = vrot.lane.b32.xlu0 %v1227, 127
        %v1233 = vpop.permute.xlu0 %1232
        %v1236 = vadd.f32 %v1180, %v1231
        %v1237 = vadd.f32 %v1181, %v1233
        %s1238 = sld [smem:[#allocation8 + $0x44]]
        %v1239 = vstv %s1238
        %v1240 = vmul.f32 %v1239, %v1166
        %v1241 = vmul.f32 %v1239, %v1167
        %1244 = vrot.lane.b32.xlu0 %v1240, 123
        %v1245 = vpop.permute.xlu0 %1244
        %1246 = vrot.lane.b32.xlu0 %v1241, 123
        %v1247 = vpop.permute.xlu0 %1246
        %v1250 = vadd.f32 %v1194, %v1245
        %v1251 = vadd.f32 %v1195, %v1247
        %s1252 = sld [smem:[#allocation8 + $0x45]]
        %v1253 = vstv %s1252
        %v1254 = vmul.f32 %v1253, %v1166
        %v1255 = vmul.f32 %v1253, %v1167
        %1258 = vrot.lane.b32.xlu0 %v1254, 123
        %v1259 = vpop.permute.xlu0 %1258
        %1260 = vrot.lane.b32.xlu0 %v1255, 123
        %v1261 = vpop.permute.xlu0 %1260
        %v1264 = vadd.f32 %v1208, %v1259
        %v1265 = vadd.f32 %v1209, %v1261
        %v1266 = vld [vmem:[%s238 + $0x3] sm:$0xff]
        %v1267 = vld [vmem:[%s238 + $0xb] sm:$0xff]
        %s1268 = sld [smem:[#allocation8 + $0x46]]
        %v1269 = vstv %s1268
        %v1270 = vmul.f32 %v1269, %v1266
        %v1271 = vmul.f32 %v1269, %v1267
        %1274 = vrot.lane.b32.xlu0 %v1270, 2
        %v1275 = vpop.permute.xlu0 %1274
        %1276 = vrot.lane.b32.xlu0 %v1271, 2
        %v1277 = vpop.permute.xlu0 %1276
        %v1280 = vadd.f32 %v1222, %v1275
        %v1281 = vadd.f32 %v1223, %v1277
        %s1282 = sld [smem:[#allocation8 + $0x47]]
        %v1283 = vstv %s1282
        %v1284 = vmul.f32 %v1283, %v1266
        %v1285 = vmul.f32 %v1283, %v1267
        %1288 = vrot.lane.b32.xlu0 %v1284, 2
        %v1289 = vpop.permute.xlu0 %1288
        %1290 = vrot.lane.b32.xlu0 %v1285, 2
        %v1291 = vpop.permute.xlu0 %1290
        %v1294 = vadd.f32 %v1236, %v1289
        %v1295 = vadd.f32 %v1237, %v1291
        %s1296 = sld [smem:[#allocation8 + $0x48]]
        %v1297 = vstv %s1296
        %v1298 = vmul.f32 %v1297, %v1266
        %v1299 = vmul.f32 %v1297, %v1267
        %1302 = vrot.lane.b32.xlu0 %v1298, 126
        %v1303 = vpop.permute.xlu0 %1302
        %1304 = vrot.lane.b32.xlu0 %v1299, 126
        %v1305 = vpop.permute.xlu0 %1304
        %v1308 = vadd.f32 %v1250, %v1303
        %v1309 = vadd.f32 %v1251, %v1305
        %s1310 = sld [smem:[#allocation8 + $0x49]]
        %v1311 = vstv %s1310
        %v1312 = vmul.f32 %v1311, %v1266
        %v1313 = vmul.f32 %v1311, %v1267
        %1316 = vrot.lane.b32.xlu0 %v1312, 126
        %v1317 = vpop.permute.xlu0 %1316
        %1318 = vrot.lane.b32.xlu0 %v1313, 126
        %v1319 = vpop.permute.xlu0 %1318
        %v1322 = vadd.f32 %v1264, %v1317
        %v1323 = vadd.f32 %v1265, %v1319
        %s1324 = sld [smem:[#allocation8 + $0x4a]]
        %v1325 = vstv %s1324
        %v1326 = vmul.f32 %v1325, %v1266
        %v1327 = vmul.f32 %v1325, %v1267
        %1330 = vrot.lane.b32.xlu0 %v1326, 126
        %v1331 = vpop.permute.xlu0 %1330
        %1332 = vrot.lane.b32.xlu0 %v1327, 126
        %v1333 = vpop.permute.xlu0 %1332
        %v1336 = vadd.f32 %v1280, %v1331
        %v1337 = vadd.f32 %v1281, %v1333
        %s1338 = sld [smem:[#allocation8 + $0x4b]]
        %v1339 = vstv %s1338
        %v1340 = vmul.f32 %v1339, %v1266
        %v1341 = vmul.f32 %v1339, %v1267
        %1344 = vrot.lane.b32.xlu0 %v1340, 126
        %v1345 = vpop.permute.xlu0 %1344
        %1346 = vrot.lane.b32.xlu0 %v1341, 126
        %v1347 = vpop.permute.xlu0 %1346
        %v1350 = vadd.f32 %v1294, %v1345
        %v1351 = vadd.f32 %v1295, %v1347
        %s1352 = sld [smem:[#allocation8 + $0x4c]]
        %v1353 = vstv %s1352
        %v1354 = vmul.f32 %v1353, %v1266
        %v1355 = vmul.f32 %v1353, %v1267
        %1358 = vrot.lane.b32.xlu0 %v1354, 122
        %v1359 = vpop.permute.xlu0 %1358
        %1360 = vrot.lane.b32.xlu0 %v1355, 122
        %v1361 = vpop.permute.xlu0 %1360
        %v1364 = vadd.f32 %v1308, %v1359
        %v1365 = vadd.f32 %v1309, %v1361
        %v1366 = vld [vmem:[%s238 + $0x4] sm:$0xff]
        %v1367 = vld [vmem:[%s238 + $0xc] sm:$0xff]
        %s1368 = sld [smem:[#allocation8 + $0x4d]]
        %v1369 = vstv %s1368
        %v1370 = vmul.f32 %v1369, %v1366
        %v1371 = vmul.f32 %v1369, %v1367
        %1374 = vrot.lane.b32.xlu0 %v1370, 1
        %v1375 = vpop.permute.xlu0 %1374
        %1376 = vrot.lane.b32.xlu0 %v1371, 1
        %v1377 = vpop.permute.xlu0 %1376
        %v1380 = vadd.f32 %v1322, %v1375
        %v1381 = vadd.f32 %v1323, %v1377
        %s1382 = sld [smem:[#allocation8 + $0x4e]]
        %v1383 = vstv %s1382
        %v1384 = vmul.f32 %v1383, %v1366
        %v1385 = vmul.f32 %v1383, %v1367
        %1388 = vrot.lane.b32.xlu0 %v1384, 1
        %v1389 = vpop.permute.xlu0 %1388
        %1390 = vrot.lane.b32.xlu0 %v1385, 1
        %v1391 = vpop.permute.xlu0 %1390
        %v1394 = vadd.f32 %v1336, %v1389
        %v1395 = vadd.f32 %v1337, %v1391
        %s1396 = sld [smem:[#allocation8 + $0x4f]]
        %v1397 = vstv %s1396
        %v1398 = vmul.f32 %v1397, %v1366
        %v1399 = vmul.f32 %v1397, %v1367
        %1402 = vrot.lane.b32.xlu0 %v1398, 1
        %v1403 = vpop.permute.xlu0 %1402
        %1404 = vrot.lane.b32.xlu0 %v1399, 1
        %v1405 = vpop.permute.xlu0 %1404
        %v1408 = vadd.f32 %v1350, %v1403
        %v1409 = vadd.f32 %v1351, %v1405
        %s1410 = sld [smem:[#allocation8 + $0x50]]
        %v1411 = vstv %s1410
        %v1412 = vmul.f32 %v1411, %v1366
        %v1413 = vmul.f32 %v1411, %v1367
        %1416 = vrot.lane.b32.xlu0 %v1412, 125
        %v1417 = vpop.permute.xlu0 %1416
        %1418 = vrot.lane.b32.xlu0 %v1413, 125
        %v1419 = vpop.permute.xlu0 %1418
        %v1422 = vadd.f32 %v1364, %v1417
        %v1423 = vadd.f32 %v1365, %v1419
        %s1424 = sld [smem:[#allocation8 + $0x51]]
        %v1425 = vstv %s1424
        %v1426 = vmul.f32 %v1425, %v1366
        %v1427 = vmul.f32 %v1425, %v1367
        %1430 = vrot.lane.b32.xlu0 %v1426, 125
        %v1431 = vpop.permute.xlu0 %1430
        %1432 = vrot.lane.b32.xlu0 %v1427, 125
        %v1433 = vpop.permute.xlu0 %1432
        %v1436 = vadd.f32 %v1380, %v1431
        %v1437 = vadd.f32 %v1381, %v1433
        %s1438 = sld [smem:[#allocation8 + $0x52]]
        %v1439 = vstv %s1438
        %v1440 = vmul.f32 %v1439, %v1366
        %v1441 = vmul.f32 %v1439, %v1367
        %1444 = vrot.lane.b32.xlu0 %v1440, 125
        %v1445 = vpop.permute.xlu0 %1444
        %1446 = vrot.lane.b32.xlu0 %v1441, 125
        %v1447 = vpop.permute.xlu0 %1446
        %v1450 = vadd.f32 %v1394, %v1445
        %v1451 = vadd.f32 %v1395, %v1447
        %s1452 = sld [smem:[#allocation8 + $0x53]]
        %v1453 = vstv %s1452
        %v1454 = vmul.f32 %v1453, %v1366
        %v1455 = vmul.f32 %v1453, %v1367
        %1458 = vrot.lane.b32.xlu0 %v1454, 125
        %v1459 = vpop.permute.xlu0 %1458
        %1460 = vrot.lane.b32.xlu0 %v1455, 125
        %v1461 = vpop.permute.xlu0 %1460
        %v1464 = vadd.f32 %v1408, %v1459
        %v1465 = vadd.f32 %v1409, %v1461
        %v1466 = vld [vmem:[%s238 + $0x5] sm:$0xff]
        %v1467 = vld [vmem:[%s238 + $0xd] sm:$0xff]
        %s1468 = sld [smem:[#allocation8 + $0x54]]
        %v1469 = vstv %s1468
        %v1470 = vmul.f32 %v1469, %v1466
        %v1471 = vmul.f32 %v1469, %v1467
        %v1472 = vadd.f32 %v1422, %v1470
        %v1473 = vadd.f32 %v1423, %v1471
        %s1474 = sld [smem:[#allocation8 + $0x55]]
        %v1475 = vstv %s1474
        %v1476 = vmul.f32 %v1475, %v1466
        %v1477 = vmul.f32 %v1475, %v1467
        %v1478 = vadd.f32 %v1436, %v1476
        %v1479 = vadd.f32 %v1437, %v1477
        %s1480 = sld [smem:[#allocation8 + $0x56]]
        %v1481 = vstv %s1480
        %v1482 = vmul.f32 %v1481, %v1466
        %v1483 = vmul.f32 %v1481, %v1467
        %v1484 = vadd.f32 %v1450, %v1482
        %v1485 = vadd.f32 %v1451, %v1483
        %s1486 = sld [smem:[#allocation8 + $0x57]]
        %v1487 = vstv %s1486
        %v1488 = vmul.f32 %v1487, %v1466
        %v1489 = vmul.f32 %v1487, %v1467
        %v1490 = vadd.f32 %v1464, %v1488
        %v1491 = vadd.f32 %v1465, %v1489
        %s1492 = sld [smem:[#allocation8 + $0x58]]
        %v1493 = vstv %s1492
        %v1494 = vmul.f32 %v1493, %v1466
        %v1495 = vmul.f32 %v1493, %v1467
        %1498 = vrot.lane.b32.xlu0 %v1494, 124
        %v1499 = vpop.permute.xlu0 %1498
        %1500 = vrot.lane.b32.xlu0 %v1495, 124
        %v1501 = vpop.permute.xlu0 %1500
        %v1504 = vadd.f32 %v1472, %v1499
        %v1505 = vadd.f32 %v1473, %v1501
        %s1506 = sld [smem:[#allocation8 + $0x59]]
        %v1507 = vstv %s1506
        %v1508 = vmul.f32 %v1507, %v1466
        %v1509 = vmul.f32 %v1507, %v1467
        %1512 = vrot.lane.b32.xlu0 %v1508, 124
        %v1513 = vpop.permute.xlu0 %1512
        %1514 = vrot.lane.b32.xlu0 %v1509, 124
        %v1515 = vpop.permute.xlu0 %1514
        %v1518 = vadd.f32 %v1478, %v1513
        %v1519 = vadd.f32 %v1479, %v1515
        %s1520 = sld [smem:[#allocation8 + $0x5a]]
        %v1521 = vstv %s1520
        %v1522 = vmul.f32 %v1521, %v1466
        %v1523 = vmul.f32 %v1521, %v1467
        %1526 = vrot.lane.b32.xlu0 %v1522, 124
        %v1527 = vpop.permute.xlu0 %1526
        %1528 = vrot.lane.b32.xlu0 %v1523, 124
        %v1529 = vpop.permute.xlu0 %1528
        %v1532 = vadd.f32 %v1484, %v1527
        %v1533 = vadd.f32 %v1485, %v1529
        %v1534 = vld [vmem:[%s238 + $0x6] sm:$0xff]
        %v1535 = vld [vmem:[%s238 + $0xe] sm:$0xff]
        %s1536 = sld [smem:[#allocation8 + $0x5b]]
        %v1537 = vstv %s1536
        %v1538 = vmul.f32 %v1537, %v1534
        %v1539 = vmul.f32 %v1537, %v1535
        %1542 = vrot.lane.b32.xlu0 %v1538, 3
        %v1543 = vpop.permute.xlu0 %1542
        %1544 = vrot.lane.b32.xlu0 %v1539, 3
        %v1545 = vpop.permute.xlu0 %1544
        %v1548 = vadd.f32 %v1490, %v1543
        %v1549 = vadd.f32 %v1491, %v1545
        %s1550 = sld [smem:[#allocation8 + $0x5c]]
        %v1551 = vstv %s1550
        %v1552 = vmul.f32 %v1551, %v1534
        %v1553 = vmul.f32 %v1551, %v1535
        %1556 = vrot.lane.b32.xlu0 %v1552, 127
        %v1557 = vpop.permute.xlu0 %1556
        %1558 = vrot.lane.b32.xlu0 %v1553, 127
        %v1559 = vpop.permute.xlu0 %1558
        %v1562 = vadd.f32 %v1504, %v1557
        %v1563 = vadd.f32 %v1505, %v1559
        %s1564 = sld [smem:[#allocation8 + $0x5d]]
        %v1565 = vstv %s1564
        %v1566 = vmul.f32 %v1565, %v1534
        %v1567 = vmul.f32 %v1565, %v1535
        %1570 = vrot.lane.b32.xlu0 %v1566, 127
        %v1571 = vpop.permute.xlu0 %1570
        %1572 = vrot.lane.b32.xlu0 %v1567, 127
        %v1573 = vpop.permute.xlu0 %1572
        %v1576 = vadd.f32 %v1518, %v1571
        %v1577 = vadd.f32 %v1519, %v1573
        %s1578 = sld [smem:[#allocation8 + $0x5e]]
        %v1579 = vstv %s1578
        %v1580 = vmul.f32 %v1579, %v1534
        %v1581 = vmul.f32 %v1579, %v1535
        %1584 = vrot.lane.b32.xlu0 %v1580, 127
        %v1585 = vpop.permute.xlu0 %1584
        %1586 = vrot.lane.b32.xlu0 %v1581, 127
        %v1587 = vpop.permute.xlu0 %1586
        %v1590 = vadd.f32 %v1532, %v1585
        %v1591 = vadd.f32 %v1533, %v1587
        %s1592 = sld [smem:[#allocation8 + $0x5f]]
        %v1593 = vstv %s1592
        %v1594 = vmul.f32 %v1593, %v1534
        %v1595 = vmul.f32 %v1593, %v1535
        %1598 = vrot.lane.b32.xlu0 %v1594, 127
        %v1599 = vpop.permute.xlu0 %1598
        %1600 = vrot.lane.b32.xlu0 %v1595, 127
        %v1601 = vpop.permute.xlu0 %1600
        %v1604 = vadd.f32 %v1548, %v1599
        %v1605 = vadd.f32 %v1549, %v1601
        %s1606 = sld [smem:[#allocation8 + $0x60]]
        %v1607 = vstv %s1606
        %v1608 = vmul.f32 %v1607, %v1534
        %v1609 = vmul.f32 %v1607, %v1535
        %1612 = vrot.lane.b32.xlu0 %v1608, 123
        %v1613 = vpop.permute.xlu0 %1612
        %1614 = vrot.lane.b32.xlu0 %v1609, 123
        %v1615 = vpop.permute.xlu0 %1614
        %v1618 = vadd.f32 %v1562, %v1613
        %v1619 = vadd.f32 %v1563, %v1615
        %s1620 = sld [smem:[#allocation8 + $0x61]]
        %v1621 = vstv %s1620
        %v1622 = vmul.f32 %v1621, %v1534
        %v1623 = vmul.f32 %v1621, %v1535
        %1626 = vrot.lane.b32.xlu0 %v1622, 123
        %v1627 = vpop.permute.xlu0 %1626
        %1628 = vrot.lane.b32.xlu0 %v1623, 123
        %v1629 = vpop.permute.xlu0 %1628
        %v1632 = vadd.f32 %v1576, %v1627
        %v1633 = vadd.f32 %v1577, %v1629
        %1636 = vrot.lane.b32.xlu0 %v1632, 127
        %v1637 = vpop.permute.xlu0 %1636
        %1638 = vrot.lane.b32.xlu0 %v1633, 127
        %v1639 = vpop.permute.xlu0 %1638
        %v1642 = vadd.f32 %v1618, %v1637
        %v1643 = vadd.f32 %v1619, %v1639
        %1646 = vrot.lane.b32.xlu0 %v1604, 127
        %v1647 = vpop.permute.xlu0 %1646
        %1648 = vrot.lane.b32.xlu0 %v1605, 127
        %v1649 = vpop.permute.xlu0 %1648
        %v1652 = vadd.f32 %v1590, %v1647
        %v1653 = vadd.f32 %v1591, %v1649
        %1656 = vrot.lane.b32.xlu0 %v1652, 126
        %v1657 = vpop.permute.xlu0 %1656
        %1658 = vrot.lane.b32.xlu0 %v1653, 126
        %v1659 = vpop.permute.xlu0 %1658
        %v1662 = vadd.f32 %v1642, %v1657
        %v1663 = vadd.f32 %v1643, %v1659
        %v1664 = vxor.u32 %v1662, 2147483648
        %v1665 = vxor.u32 %v1663, 2147483648
        %v1666 = vmul.f32 %v1664, 1.442695
        %v1667 = vpow.pop %v1666
        %v1668 = vmul.f32 %v1665, 1.442695
        %v1669 = vpow.pop %v1668
        %v1670 = vadd.f32 %v1667, 1.0
        %v1671 = vadd.f32 %v1669, 1.0
        %v1672 = vrcp.pop %v1670
        %v1673 = vmul.f32 1.0, %v1672
        %v1674 = vrcp.pop %v1671
        %v1675 = vmul.f32 1.0, %v1674
        %v1676 = vlaneseq
        %vm1677 = vcmp.ge.s32.totalorder %v1676, 0
        %vm1678 = vcmp.lt.s32.totalorder %v1676, 16
        %vm1679 = vmand %vm1677, %vm1678
        %1680 = vst.msk [vmem:[#allocation3] sm:$0x1] %vm1679, %v1673
        %v1683 = vunpack.c.l.s4 1966171168
        %v1684 = vunpack.c.0.s8 %v1683
        %v1685 = vlaneseq
        %v1686 = vshrl.u32 %v1685, 7
        %v1687 = vsub.s32 %v1684, %v1686
        %v1688 = vrot.slane %v1673, %v1687
        %v1689 = vcombine.high %v1688, %v1688
        %v1691 = vunpack.c.l.s4 1966171168
        %v1692 = vunpack.c.0.s8 %v1691
        %v1693 = vlaneseq
        %v1694 = vshrl.u32 %v1693, 7
        %v1695 = vsub.s32 %v1692, %v1694
        %v1696 = vrot.slane %v1688, %v1695
        %v1698 = vunpack.c.l.s4 1966171168
        %v1699 = vunpack.c.0.s8 %v1698
        %v1700 = vlaneseq
        %v1701 = vshrl.u32 %v1700, 7
        %v1702 = vsub.s32 %v1699, %v1701
        %v1703 = vrot.slane %v1689, %v1702
        %1704 = vrot.lane.b32.xlu0 %v1703, 16
        %v1705 = vpop.permute.xlu0 %1704
        %vm1707 = vcmp.ge.s32.totalorder %v1676, 16
        %vm1708 = vcmp.lt.s32.totalorder %v1676, 32
        %vm1709 = vmand %vm1707, %vm1708
        %1710 = vst.msk [vmem:[#allocation3] sm:$0x1] %vm1709, %v1705
        %v1711 = vcombine.high %v1696, %v1696
        %1712 = vrot.lane.b32.xlu0 %v1711, 32
        %v1713 = vpop.permute.xlu0 %1712
        %vm1715 = vcmp.ge.s32.totalorder %v1676, 32
        %vm1716 = vcmp.lt.s32.totalorder %v1676, 48
        %vm1717 = vmand %vm1715, %vm1716
        %1718 = vst.msk [vmem:[#allocation3] sm:$0x1] %vm1717, %v1713
        %v1719 = vcombine.high %v1703, %v1703
        %1720 = vrot.lane.b32.xlu0 %v1719, 48
        %v1721 = vpop.permute.xlu0 %1720
        %vm1723 = vcmp.ge.s32.totalorder %v1676, 48
        %vm1724 = vcmp.lt.s32.totalorder %v1676, 64
        %vm1725 = vmand %vm1723, %vm1724
        %1726 = vst.msk [vmem:[#allocation3] sm:$0x1] %vm1725, %v1721
        %v1727 = vcombine.high %v1673, %v1673
        %v1729 = vunpack.c.l.s4 1966171168
        %v1730 = vunpack.c.0.s8 %v1729
        %v1731 = vlaneseq
        %v1732 = vshrl.u32 %v1731, 7
        %v1733 = vsub.s32 %v1730, %v1732
        %v1734 = vrot.slane %v1727, %v1733
        %v1736 = vunpack.c.l.s4 1966171168
        %v1737 = vunpack.c.0.s8 %v1736
        %v1738 = vlaneseq
        %v1739 = vshrl.u32 %v1738, 7
        %v1740 = vsub.s32 %v1737, %v1739
        %v1741 = vrot.slane %v1734, %v1740
        %1742 = vrot.lane.b32.xlu0 %v1741, 64
        %v1743 = vpop.permute.xlu0 %1742
        %vm1745 = vcmp.ge.s32.totalorder %v1676, 64
        %vm1746 = vcmp.lt.s32.totalorder %v1676, 80
        %vm1747 = vmand %vm1745, %vm1746
        %1748 = vst.msk [vmem:[#allocation3] sm:$0x1] %vm1747, %v1743
        %v1749 = vcombine.high %v1734, %v1734
        %v1751 = vunpack.c.l.s4 1966171168
        %v1752 = vunpack.c.0.s8 %v1751
        %v1753 = vlaneseq
        %v1754 = vshrl.u32 %v1753, 7
        %v1755 = vsub.s32 %v1752, %v1754
        %v1756 = vrot.slane %v1749, %v1755
        %1757 = vrot.lane.b32.xlu0 %v1756, 80
        %v1758 = vpop.permute.xlu0 %1757
        %vm1760 = vcmp.ge.s32.totalorder %v1676, 80
        %vm1761 = vcmp.lt.s32.totalorder %v1676, 96
        %vm1762 = vmand %vm1760, %vm1761
        %1763 = vst.msk [vmem:[#allocation3] sm:$0x1] %vm1762, %v1758
        %v1764 = vcombine.high %v1741, %v1741
        %1765 = vrot.lane.b32.xlu0 %v1764, 96
        %v1766 = vpop.permute.xlu0 %1765
        %vm1768 = vcmp.ge.s32.totalorder %v1676, 96
        %vm1769 = vcmp.lt.s32.totalorder %v1676, 112
        %vm1770 = vmand %vm1768, %vm1769
        %1771 = vst.msk [vmem:[#allocation3] sm:$0x1] %vm1770, %v1766
        %v1772 = vcombine.high %v1756, %v1756
        %1773 = vrot.lane.b32.xlu0 %v1772, 112
        %v1774 = vpop.permute.xlu0 %1773
        %vm1776 = vcmp.ge.s32.totalorder %v1676, 112
        %vm1777 = vcmp.lt.s32.totalorder %v1676, 128
        %vm1778 = vmand %vm1776, %vm1777
        %1779 = vst.msk [vmem:[#allocation3] sm:$0x1] %vm1778, %v1774
        %1780 = vst.msk [vmem:[#allocation3 + $0x1] sm:$0x1] %vm1679, %v1675
        %v1783 = vunpack.c.l.s4 1966171168
        %v1784 = vunpack.c.0.s8 %v1783
        %v1785 = vlaneseq
        %v1786 = vshrl.u32 %v1785, 7
        %v1787 = vsub.s32 %v1784, %v1786
        %v1788 = vrot.slane %v1675, %v1787
        %v1789 = vcombine.high %v1788, %v1788
        %v1791 = vunpack.c.l.s4 1966171168
        %v1792 = vunpack.c.0.s8 %v1791
        %v1793 = vlaneseq
        %v1794 = vshrl.u32 %v1793, 7
        %v1795 = vsub.s32 %v1792, %v1794
        %v1796 = vrot.slane %v1788, %v1795
        %v1798 = vunpack.c.l.s4 1966171168
        %v1799 = vunpack.c.0.s8 %v1798
        %v1800 = vlaneseq
        %v1801 = vshrl.u32 %v1800, 7
        %v1802 = vsub.s32 %v1799, %v1801
        %v1803 = vrot.slane %v1789, %v1802
        %1804 = vrot.lane.b32.xlu0 %v1803, 16
        %v1805 = vpop.permute.xlu0 %1804
        %1807 = vst.msk [vmem:[#allocation3 + $0x1] sm:$0x1] %vm1709, %v1805
        %v1808 = vcombine.high %v1796, %v1796
        %1809 = vrot.lane.b32.xlu0 %v1808, 32
        %v1810 = vpop.permute.xlu0 %1809
        %1812 = vst.msk [vmem:[#allocation3 + $0x1] sm:$0x1] %vm1717, %v1810
        %v1813 = vcombine.high %v1803, %v1803
        %1814 = vrot.lane.b32.xlu0 %v1813, 48
        %v1815 = vpop.permute.xlu0 %1814
        %1817 = vst.msk [vmem:[#allocation3 + $0x1] sm:$0x1] %vm1725, %v1815
        %v1818 = vcombine.high %v1675, %v1675
        %v1820 = vunpack.c.l.s4 1966171168
        %v1821 = vunpack.c.0.s8 %v1820
        %v1822 = vlaneseq
        %v1823 = vshrl.u32 %v1822, 7
        %v1824 = vsub.s32 %v1821, %v1823
        %v1825 = vrot.slane %v1818, %v1824
        %v1827 = vunpack.c.l.s4 1966171168
        %v1828 = vunpack.c.0.s8 %v1827
        %v1829 = vlaneseq
        %v1830 = vshrl.u32 %v1829, 7
        %v1831 = vsub.s32 %v1828, %v1830
        %v1832 = vrot.slane %v1825, %v1831
        %1833 = vrot.lane.b32.xlu0 %v1832, 64
        %v1834 = vpop.permute.xlu0 %1833
        %1836 = vst.msk [vmem:[#allocation3 + $0x1] sm:$0x1] %vm1747, %v1834
        %v1837 = vcombine.high %v1825, %v1825
        %v1839 = vunpack.c.l.s4 1966171168
        %v1840 = vunpack.c.0.s8 %v1839
        %v1841 = vlaneseq
        %v1842 = vshrl.u32 %v1841, 7
        %v1843 = vsub.s32 %v1840, %v1842
        %v1844 = vrot.slane %v1837, %v1843
        %1845 = vrot.lane.b32.xlu0 %v1844, 80
        %v1846 = vpop.permute.xlu0 %1845
        %1848 = vst.msk [vmem:[#allocation3 + $0x1] sm:$0x1] %vm1762, %v1846
        %v1849 = vcombine.high %v1832, %v1832
        %1850 = vrot.lane.b32.xlu0 %v1849, 96
        %v1851 = vpop.permute.xlu0 %1850
        %1853 = vst.msk [vmem:[#allocation3 + $0x1] sm:$0x1] %vm1770, %v1851
        %v1854 = vcombine.high %v1844, %v1844
        %1855 = vrot.lane.b32.xlu0 %v1854, 112
        %v1856 = vpop.permute.xlu0 %1855
        %1858 = vst.msk [vmem:[#allocation3 + $0x1] sm:$0x1] %vm1778, %v1856
        %v1859 = vld [vmem:[%s146] sm:$0xff]
        %v1860 = vld [vmem:[#allocation3] sm:$0x3]
        %v1862 = vlaneseq
        %v1863 = vshrl.u32 %v1862, 7
        %v1864 = vsub.s32 0, %v1863
        %v1865 = vrot.slane %v1860, %v1864
        %v1866 = vlaneseq
        %v1867 = vshrl.u32 %v1866, 7
        %v1868 = vsub.s32 1, %v1867
        %v1869 = vrot.slane %v1860, %v1868
        %v1870 = vcombine.low %v1865, %v1869
        %v1872 = vmul.f32 %v1859, %v1870
        %1873 = vst [vmem:[%s171] sm:$0xff] %v1872
        %s1874 = sand.u32 %s75, 1
        %s1875 = scalar_lea.sflag [#allocation6], %s1874
        %s1876 = sand.u32 %s75, 1
        %s1877 = smul.addr %s1876, 8
        %s1878 = scalar_lea.vmem [#allocation9], %s1877
        // Predicated region
        $region37: #{tpu_custom_call.1} parent=27 // pred_check
          %p1879 = pneg %p85
        $region38: #{tpu_custom_call.1} parent=27 // pred_check_branch
          %1881 = sbr.rel (%p1879) target = $region40
        $region39: #{tpu_custom_call.1} parent=27 // pred_region
          %s1883 = ssub.s32 128, 128
          %1884 = vsyncadd %s1875, %s1883
          %s1885 = smul.addr %s20, 2
          %s1886 = smul.addr %s1885, 64
          %s1887 = scalar_lea.hbm %s2, %s1886
          %s1889 = sshll.u32 %s1878, 4
          %s1890 = int_to_ptr.vmem [resolvable:$true] %s1889
          %1892 = dma.vmem_to_hbm [thread:$0]  %s1890, 128, %s1887, %s1875
        $region40: #{tpu_custom_call.1} parent=27 // pred_fallthru
          _
      $region28: #{tpu_custom_call.1} parent=5 // pred_fallthru
        _
      %p1893 = scmp.le.s32.totalorder 2, %s15
      // Predicated region
      $region41: #{tpu_custom_call.1} parent=5 // pred_check
        %p1894 = pneg %p1893
      $region42: #{tpu_custom_call.1} parent=5 // pred_check_branch
        %1896 = sbr.rel (%p1894) target = $region44
      $region43: #{tpu_custom_call.1} parent=5 // pred_region
        %s1897 = ssub.s32 %s15, 2
        // Predicated region
        $region45: #{tpu_custom_call.1} parent=43 // pred_check
          %p1898 = pneg %p91
        $region46: #{tpu_custom_call.1} parent=43 // pred_check_branch
          %1900 = sbr.rel (%p1898) target = $region48
        $region47: #{tpu_custom_call.1} parent=43 // pred_region
          %s1901 = sand.u32 %s76, 1
          %s1902 = scalar_lea.sflag [#allocation6], %s1901
          %s1903 = sand.u32 %s76, 1
          %s1904 = smul.addr %s1903, 8
          %s1905 = scalar_lea.vmem [#allocation9], %s1904
          %1906 = dma.done %s1902, 128
        $region48: #{tpu_custom_call.1} parent=43 // pred_fallthru
          _
      $region44: #{tpu_custom_call.1} parent=5 // pred_fallthru
        _
    $region6: #{tpu_custom_call.1} parent=1 // loop_footer
      %s19 = sadd.s32 1, %s15
    $region7: #{tpu_custom_call.1} parent=1 // loop_footer_branch
      %14 = sbr.rel target = $region3
    $region8: #{tpu_custom_call.1} parent=1 // loop_exit
      _
    %1907 = vsyncpa [#allocation5], 1
    %s1908 = scalar_lea.sflag [#allocation5], 1
    %1909 = vsyncpa %s1908, 1
    %1910 = vsyncpa [#allocation6], 1
    %s1911 = scalar_lea.sflag [#allocation6], 1
    %1912 = vsyncpa %s1911, 1
    %1913 = vsyncpa [#allocation7], 1
    %s1914 = scalar_lea.sflag [#allocation7], 1
    %1915 = vsyncpa %s1914, 1

</llo_original>
